<compile_context>
chip_gen: v7x
topology: tpu7x:2x2x1
jax: 0.10.0
libtpu: 0.0.40
codegen_flags: <defaults>
</compile_context>

<pallas_src>
import functools

import jax
import jax.numpy as jnp
from jax.experimental import pallas as pl
from jax.experimental.pallas import tpu as pltpu

# ---------------- model hyper-parameters (synthetic, deterministic) ----------
N_LAYERS = 4       # number of affine coupling layers in the Flow
HIDDEN = 128       # hidden width of each coupling MLP (MXU friendly)
_ROW_ALIGN = 16    # batch-row granularity (safe sublane tiling for bf16 blocks)


def _init_params(key, d, hidden, n_layers):
    """Deterministic small-scale init for the coupling MLPs (f32 master)."""
    half = d // 2
    keys = jax.random.split(key, 4 * n_layers)
    w1 = jnp.stack([0.05 * jax.random.normal(keys[4 * k + 0], (half, hidden),
                                             dtype=jnp.float32)
                    for k in range(n_layers)])                      # (K, D/2, H)
    b1 = jnp.stack([0.01 * jax.random.normal(keys[4 * k + 1], (1, hidden),
                                             dtype=jnp.float32)
                    for k in range(n_layers)])                      # (K, 1, H)
    w2 = jnp.stack([0.05 * jax.random.normal(keys[4 * k + 2], (hidden, d),
                                             dtype=jnp.float32)
                    for k in range(n_layers)])                      # (K, H, D)
    b2 = jnp.stack([0.01 * jax.random.normal(keys[4 * k + 3], (1, d),
                                             dtype=jnp.float32)
                    for k in range(n_layers)])                      # (K, 1, D)
    return w1, b1, w2, b2


# ---------------- device-adaptive knobs --------------------------------------
def _tpu_generation():
    """Best-effort TPU generation from device_kind; 0 if unknown."""
    try:
        kind = jax.devices()[0].device_kind.lower()
    except Exception:
        return 0
    if "v7" in kind or "7x" in kind:
        return 7
    if "v6" in kind:
        return 6
    if "v5" in kind:
        return 5
    if "v4" in kind:
        return 4
    return 0


def _auto_flags():
    """(use_bf16_transcendentals, max_batch_tile_rows) for the local chip."""
    gen = _tpu_generation()
    use_bf16_eup = gen >= 6                     # v6e/v7x EUP has a bf16 path
    max_tile = 1024 if gen in (5, 6) else 512   # v7x/unknown: 64 MiB VMEM -> 512
    return use_bf16_eup, max_tile


def _round_up(a, m):
    return ((a + m - 1) // m) * m


def _pick_tiling(n, max_tile):
    """Pick (tile_n, n_pad): batch tile rows and padded batch size.

    * Pad only to 16-row granularity for small batches (not a full tile).
    * Use >=2 grid steps whenever the batch allows it so v7x's two
      TensorCores both get work under dimension_semantics=("parallel",).
    * Cap the tile at max_tile (512 on v7x, 1024 on v5e/v6e).
    """
    n_al = _round_up(max(n, 1), _ROW_ALIGN)
    if n_al <= max_tile:
        if n_al >= 2 * _ROW_ALIGN:
            tile = _round_up((n_al + 1) // 2, _ROW_ALIGN)
            return tile, 2 * tile
        return n_al, n_al
    return max_tile, _round_up(n_al, max_tile)


# ---------------- the fused kernel --------------------------------------------
def _flow_kernel(x_ref, w1_ref, b1_ref, w2_ref, b2_ref, y_ref, ld_ref, *,
                 bf16_eup):
    """Fused Flow forward over one batch tile.

    x_ref : (TN, D)      bf16 (input streamed as bf16 to halve HBM reads)
    w1_ref: (K, D/2, H)  bf16     b1_ref: (K, 1, H) f32
    w2_ref: (K, H, D)    bf16     b2_ref: (K, 1, D) f32
    y_ref : (TN, D)      f32      ld_ref: (TN, 1)   f32
    """
    tn, d = y_ref.shape
    half = d // 2
    eup_dt = jnp.bfloat16 if bf16_eup else jnp.float32

    # Carry the two halves separately (no concatenates); working precision f32.
    h0 = x_ref[:, :half].astype(jnp.float32)
    h1 = x_ref[:, half:].astype(jnp.float32)
    ld_acc = jnp.zeros((tn, 1), dtype=jnp.float32)   # per-row log-det acc

    # Static unroll over the (small, fixed) layer stack.
    for k in range(N_LAYERS):
        if k % 2 == 0:
            cond, tgt = h0, h1    # condition on first half, transform second
        else:
            cond, tgt = h1, h0    # condition on second half, transform first

        # Conditioner MLP: cond -> (s, t). bf16 MXU operands, f32 accumulate.
        pre = (jnp.dot(cond.astype(jnp.bfloat16), w1_ref[k],
                       preferred_element_type=jnp.float32)
               + b1_ref[k])                                        # (TN, H) f32
        hid = jnp.tanh(pre.astype(eup_dt))                         # EUP (bf16 on v6e/v7x)
        st = (jnp.dot(hid.astype(jnp.bfloat16), w2_ref[k],
                      preferred_element_type=jnp.float32)
              + b2_ref[k])                                         # (TN, D) f32
        s_lo = jnp.tanh(st[:, :half].astype(eup_dt))               # log-scale (EUP)
        exp_s = jnp.exp(s_lo).astype(jnp.float32)                  # EUP
        s = s_lo.astype(jnp.float32)
        t = st[:, half:]                                           # shift (f32)

        new = tgt * exp_s + t                                      # f32 affine
        # Per-layer lane reduction (XLU has slack) instead of a full-width carry.
        ld_acc = ld_acc + jnp.sum(s, axis=-1, keepdims=True)

        if k % 2 == 0:
            h1 = new
        else:
            h0 = new

    # Aligned, 128-multiple-wide unmasked stores of the two halves.
    y_ref[:, :half] = h0.astype(y_ref.dtype)
    y_ref[:, half:] = h1.astype(y_ref.dtype)
    ld_ref[...] = ld_acc


# ---------------- wrapper ------------------------------------------------------
def flow_forward(x_nchw, params, *, bf16_eup=None, max_tile=None):
    """Flow.forward: returns (out, log_det_j) with out in NCHW layout."""
    w1, b1, w2, b2 = params
    n, c, h, w = x_nchw.shape
    d = c * h * w
    half = d // 2
    k_layers, _, hidden = w1.shape

    auto_bf16, auto_tile = _auto_flags()
    if bf16_eup is None:
        bf16_eup = auto_bf16
    if max_tile is None:
        max_tile = auto_tile

    tile_n, n_pad = _pick_tiling(n, max_tile)
    grid = (n_pad // tile_n,)

    # Stream the input as bf16 (one cast here) to cut HBM read bytes ~2x.
    x2d = x_nchw.reshape(n, d).astype(jnp.bfloat16)
    if n_pad != n:
        # Padded rows compute bounded finite garbage and are sliced off below.
        x2d = jnp.pad(x2d, ((0, n_pad - n), (0, 0)))

    # One-time cast of weights to bf16 for the MXU fast path (also halves the
    # resident weight footprint in VMEM). Biases stay f32 (post-accumulation).
    w1b = w1.astype(jnp.bfloat16)
    w2b = w2.astype(jnp.bfloat16)

    flops = 2 * n_pad * k_layers * (half * hidden + hidden * d)
    transcendentals = n_pad * k_layers * (hidden + d)          # tanh + tanh/exp
    bytes_accessed = (n_pad * d * 2          # bf16 input read
                      + n_pad * d * 4        # f32 output write
                      + n_pad * 4            # log-det write
                      + (w1b.size + w2b.size) * 2
                      + (b1.size + b2.size) * 4)

    kernel = functools.partial(_flow_kernel, bf16_eup=bf16_eup)

    # Constant index_map + single buffering: weights/biases are DMA'd once and
    # stay VMEM-resident with no second (unused) pipeline buffer.
    resident = pl.Buffered(1)

    y2d, log_det = pl.pallas_call(
        kernel,
        out_shape=(
            jax.ShapeDtypeStruct((n_pad, d), jnp.float32),
            jax.ShapeDtypeStruct((n_pad, 1), jnp.float32),
        ),
        grid_spec=pltpu.PrefetchScalarGridSpec(
            num_scalar_prefetch=0,
            grid=grid,
            in_specs=[
                pl.BlockSpec((tile_n, d), lambda i: (i, 0)),
                pl.BlockSpec((k_layers, half, hidden), lambda i: (0, 0, 0),
                             pipeline_mode=resident),
                pl.BlockSpec((k_layers, 1, hidden), lambda i: (0, 0, 0),
                             pipeline_mode=resident),
                pl.BlockSpec((k_layers, hidden, d), lambda i: (0, 0, 0),
                             pipeline_mode=resident),
                pl.BlockSpec((k_layers, 1, d), lambda i: (0, 0, 0),
                             pipeline_mode=resident),
            ],
            out_specs=(
                pl.BlockSpec((tile_n, d), lambda i: (i, 0)),
                # TODO(synk): (TN,1) log-det store is the one non-lane-dense
                # store left (masked vst); ~4 B/row, deliberately kept simple.
                pl.BlockSpec((tile_n, 1), lambda i: (i, 0)),
            ),
        ),
        compiler_params=pltpu.CompilerParams(
            dimension_semantics=("parallel",),          # megacore on v7x
            vmem_limit_bytes=48 * 1024 * 1024,          # safe on v5e/v6e/v7x
        ),
        cost_estimate=pl.CostEstimate(
            flops=flops,
            transcendentals=transcendentals,
            bytes_accessed=bytes_accessed,
        ),
    )(x2d, w1b, b1, w2b, b2)

    return y2d[:n].reshape(n, c, h, w), log_det[:n, 0]


# ---------------- pure-JAX reference (mirrors kernel numerics) -----------------
def _flow_forward_ref(x_nchw, params, *, bf16_eup):
    w1, b1, w2, b2 = params
    n, c, hh, ww = x_nchw.shape
    d = c * hh * ww
    half = d // 2
    eup_dt = jnp.bfloat16 if bf16_eup else jnp.float32

    x = x_nchw.reshape(n, d).astype(jnp.bfloat16).astype(jnp.float32)
    w1b = w1.astype(jnp.bfloat16)
    w2b = w2.astype(jnp.bfloat16)
    log_det = jnp.zeros((n,), dtype=jnp.float32)
    for k in range(N_LAYERS):
        if k % 2 == 0:
            xa, xb = x[:, :half], x[:, half:]
        else:
            xa, xb = x[:, half:], x[:, :half]
        pre = jnp.dot(xa.astype(jnp.bfloat16), w1b[k],
                      preferred_element_type=jnp.float32) + b1[k]
        hid = jnp.tanh(pre.astype(eup_dt))
        st = jnp.dot(hid.astype(jnp.bfloat16), w2b[k],
                     preferred_element_type=jnp.float32) + b2[k]
        s_lo = jnp.tanh(st[:, :half].astype(eup_dt))
        exp_s = jnp.exp(s_lo).astype(jnp.float32)
        s = s_lo.astype(jnp.float32)
        t = st[:, half:]
        yb = xb * exp_s + t
        log_det = log_det + jnp.sum(s, axis=-1)
        x = (jnp.concatenate([xa, yb], axis=-1) if k % 2 == 0
             else jnp.concatenate([yb, xa], axis=-1))
    return x.reshape(n, c, hh, ww), log_det


if __name__ == "__main__":
    key = jax.random.PRNGKey(0)
    k_x, k_p = jax.random.split(key)

    # Small NCHW input, flow over flattened features (D = 4*16*16 = 1024).
    x = jax.random.normal(k_x, (2, 4, 16, 16), dtype=jnp.float32)
    params = _init_params(k_p, d=4 * 16 * 16, hidden=HIDDEN, n_layers=N_LAYERS)

    out, log_det_j = jax.block_until_ready(flow_forward(x, params))
    assert out.shape == x.shape and log_det_j.shape == (x.shape[0],)

    # Correctness check against a plain-JAX reference that mirrors the kernel's
    # precision choices (bf16 weights/input; bf16 transcendentals on v6e/v7x).
    use_bf16_eup, _ = _auto_flags()
    out_exp, ld_exp = _flow_forward_ref(x, params, bf16_eup=use_bf16_eup)
    if use_bf16_eup:
        y_tol = dict(atol=2e-2, rtol=1e-2)       # bf16 tanh/exp impl differences
        ld_tol = dict(atol=2e-1, rtol=2e-2)
    else:
        y_tol = dict(atol=2e-3, rtol=2e-3)       # bit-for-bit-equivalent math
        ld_tol = dict(atol=2e-2, rtol=2e-3)
    assert jnp.allclose(out, out_exp, **y_tol)
    assert jnp.allclose(log_det_j, ld_exp, **ld_tol)

    print("KERNEL_OK")
</pallas_src>

<mosaic_0001>
module attributes {stable_mosaic.version = 11 : i64} {
  func.func @_flow_kernel(%arg0: i32, %arg1: memref<16x1024xbf16, #tpu.memory_space<vmem>>, %arg2: memref<4x512x128xbf16, #tpu.memory_space<vmem>>, %arg3: memref<4x1x128xf32, #tpu.memory_space<vmem>>, %arg4: memref<4x128x1024xbf16, #tpu.memory_space<vmem>>, %arg5: memref<4x1x1024xf32, #tpu.memory_space<vmem>>, %arg6: memref<16x1024xf32, #tpu.memory_space<vmem>>, %arg7: memref<16x1xf32, #tpu.memory_space<vmem>>) attributes {dimension_semantics = [#tpu.dimension_semantics<parallel>], iteration_bounds = array<i64: 1>, scalar_prefetch = 0 : i64, scratch_operands = 0 : i64, tpu.core_type = #tpu.core_type<tc>, window_params = [{transform_indices = @transform_0, window_bounds = array<i64: 16, 1024>}, {pipeline_mode = #tpu.pipeline_mode<synchronous>, transform_indices = @transform_1, window_bounds = array<i64: 4, 512, 128>}, {pipeline_mode = #tpu.pipeline_mode<synchronous>, transform_indices = @transform_2, window_bounds = array<i64: 4, 1, 128>}, {pipeline_mode = #tpu.pipeline_mode<synchronous>, transform_indices = @transform_3, window_bounds = array<i64: 4, 128, 1024>}, {pipeline_mode = #tpu.pipeline_mode<synchronous>, transform_indices = @transform_4, window_bounds = array<i64: 4, 1, 1024>}, {transform_indices = @transform_5, window_bounds = array<i64: 16, 1024>}, {transform_indices = @transform_6, window_bounds = array<i64: 16, 1>}]} {
    %c0 = arith.constant 0 : index
    %c0_0 = arith.constant 0 : index
    %0 = vector.load %arg1[%c0, %c0_0] : memref<16x1024xbf16, #tpu.memory_space<vmem>>, vector<16x512xbf16>
    %1 = arith.extf %0 : vector<16x512xbf16> to vector<16x512xf32>
    %c0_1 = arith.constant 0 : index
    %c512 = arith.constant 512 : index
    %2 = vector.load %arg1[%c0_1, %c512] : memref<16x1024xbf16, #tpu.memory_space<vmem>>, vector<16x512xbf16>
    %3 = arith.extf %2 : vector<16x512xbf16> to vector<16x512xf32>
    %cst = arith.constant 0.000000e+00 : f32
    %4 = vector.broadcast %cst : f32 to vector<16x1xf32>
    %5 = arith.truncf %1 : vector<16x512xf32> to vector<16x512xbf16>
    %c0_2 = arith.constant 0 : index
    %c0_3 = arith.constant 0 : index
    %c0_4 = arith.constant 0 : index
    %6 = vector.load %arg2[%c0_2, %c0_3, %c0_4] : memref<4x512x128xbf16, #tpu.memory_space<vmem>>, vector<1x512x128xbf16>
    %7 = vector.shape_cast %6 : vector<1x512x128xbf16> to vector<512x128xbf16>
    %cst_5 = arith.constant dense<0.000000e+00> : vector<16x128xf32>
    %8 = tpu.matmul %5, %7, %cst_5 {dimension_numbers = #tpu.dot_dimension_numbers<[1], [0], [0], [1], [0, 0, 1, 1], [], []>} : vector<16x512xbf16>, vector<512x128xbf16>, vector<16x128xf32> -> vector<16x128xf32>
    %c0_6 = arith.constant 0 : index
    %c0_7 = arith.constant 0 : index
    %c0_8 = arith.constant 0 : index
    %9 = vector.load %arg3[%c0_6, %c0_7, %c0_8] : memref<4x1x128xf32, #tpu.memory_space<vmem>>, vector<1x1x128xf32>
    %10 = vector.shape_cast %9 : vector<1x1x128xf32> to vector<1x128xf32>
    %11 = vector.broadcast %10 : vector<1x128xf32> to vector<16x128xf32>
    %12 = arith.addf %8, %11 : vector<16x128xf32>
    %13 = math.tanh %12 : vector<16x128xf32>
    %14 = arith.truncf %13 : vector<16x128xf32> to vector<16x128xbf16>
    %c0_9 = arith.constant 0 : index
    %c0_10 = arith.constant 0 : index
    %c0_11 = arith.constant 0 : index
    %15 = vector.load %arg4[%c0_9, %c0_10, %c0_11] : memref<4x128x1024xbf16, #tpu.memory_space<vmem>>, vector<1x128x1024xbf16>
    %16 = vector.shape_cast %15 : vector<1x128x1024xbf16> to vector<128x1024xbf16>
    %cst_12 = arith.constant dense<0.000000e+00> : vector<16x1024xf32>
    %17 = tpu.matmul %14, %16, %cst_12 {dimension_numbers = #tpu.dot_dimension_numbers<[1], [0], [0], [1], [0, 0, 1, 1], [], []>} : vector<16x128xbf16>, vector<128x1024xbf16>, vector<16x1024xf32> -> vector<16x1024xf32>
    %c0_13 = arith.constant 0 : index
    %c0_14 = arith.constant 0 : index
    %c0_15 = arith.constant 0 : index
    %18 = vector.load %arg5[%c0_13, %c0_14, %c0_15] : memref<4x1x1024xf32, #tpu.memory_space<vmem>>, vector<1x1x1024xf32>
    %19 = vector.shape_cast %18 : vector<1x1x1024xf32> to vector<1x1024xf32>
    %20 = vector.broadcast %19 : vector<1x1024xf32> to vector<16x1024xf32>
    %21 = arith.addf %17, %20 : vector<16x1024xf32>
    %22 = vector.extract_strided_slice %21 {offsets = [0, 0], sizes = [16, 512], strides = [1, 1]} : vector<16x1024xf32> to vector<16x512xf32>
    %23 = math.tanh %22 : vector<16x512xf32>
    %24 = math.exp %23 : vector<16x512xf32>
    %25 = vector.extract_strided_slice %21 {offsets = [0, 512], sizes = [16, 512], strides = [1, 1]} : vector<16x1024xf32> to vector<16x512xf32>
    %26 = arith.mulf %3, %24 : vector<16x512xf32>
    %27 = arith.addf %26, %25 : vector<16x512xf32>
    %cst_16 = arith.constant dense<0.000000e+00> : vector<16xf32>
    %28 = vector.multi_reduction <add>, %23, %cst_16 [1] : vector<16x512xf32> to vector<16xf32>
    %29 = vector.shape_cast %28 : vector<16xf32> to vector<16x1xf32>
    %30 = arith.addf %4, %29 : vector<16x1xf32>
    %31 = arith.truncf %27 : vector<16x512xf32> to vector<16x512xbf16>
    %c1 = arith.constant 1 : index
    %c0_17 = arith.constant 0 : index
    %c0_18 = arith.constant 0 : index
    %32 = vector.load %arg2[%c1, %c0_17, %c0_18] : memref<4x512x128xbf16, #tpu.memory_space<vmem>>, vector<1x512x128xbf16>
    %33 = vector.shape_cast %32 : vector<1x512x128xbf16> to vector<512x128xbf16>
    %cst_19 = arith.constant dense<0.000000e+00> : vector<16x128xf32>
    %34 = tpu.matmul %31, %33, %cst_19 {dimension_numbers = #tpu.dot_dimension_numbers<[1], [0], [0], [1], [0, 0, 1, 1], [], []>} : vector<16x512xbf16>, vector<512x128xbf16>, vector<16x128xf32> -> vector<16x128xf32>
    %c1_20 = arith.constant 1 : index
    %c0_21 = arith.constant 0 : index
    %c0_22 = arith.constant 0 : index
    %35 = vector.load %arg3[%c1_20, %c0_21, %c0_22] : memref<4x1x128xf32, #tpu.memory_space<vmem>>, vector<1x1x128xf32>
    %36 = vector.shape_cast %35 : vector<1x1x128xf32> to vector<1x128xf32>
    %37 = vector.broadcast %36 : vector<1x128xf32> to vector<16x128xf32>
    %38 = arith.addf %34, %37 : vector<16x128xf32>
    %39 = math.tanh %38 : vector<16x128xf32>
    %40 = arith.truncf %39 : vector<16x128xf32> to vector<16x128xbf16>
    %c1_23 = arith.constant 1 : index
    %c0_24 = arith.constant 0 : index
    %c0_25 = arith.constant 0 : index
    %41 = vector.load %arg4[%c1_23, %c0_24, %c0_25] : memref<4x128x1024xbf16, #tpu.memory_space<vmem>>, vector<1x128x1024xbf16>
    %42 = vector.shape_cast %41 : vector<1x128x1024xbf16> to vector<128x1024xbf16>
    %cst_26 = arith.constant dense<0.000000e+00> : vector<16x1024xf32>
    %43 = tpu.matmul %40, %42, %cst_26 {dimension_numbers = #tpu.dot_dimension_numbers<[1], [0], [0], [1], [0, 0, 1, 1], [], []>} : vector<16x128xbf16>, vector<128x1024xbf16>, vector<16x1024xf32> -> vector<16x1024xf32>
    %c1_27 = arith.constant 1 : index
    %c0_28 = arith.constant 0 : index
    %c0_29 = arith.constant 0 : index
    %44 = vector.load %arg5[%c1_27, %c0_28, %c0_29] : memref<4x1x1024xf32, #tpu.memory_space<vmem>>, vector<1x1x1024xf32>
    %45 = vector.shape_cast %44 : vector<1x1x1024xf32> to vector<1x1024xf32>
    %46 = vector.broadcast %45 : vector<1x1024xf32> to vector<16x1024xf32>
    %47 = arith.addf %43, %46 : vector<16x1024xf32>
    %48 = vector.extract_strided_slice %47 {offsets = [0, 0], sizes = [16, 512], strides = [1, 1]} : vector<16x1024xf32> to vector<16x512xf32>
    %49 = math.tanh %48 : vector<16x512xf32>
    %50 = math.exp %49 : vector<16x512xf32>
    %51 = vector.extract_strided_slice %47 {offsets = [0, 512], sizes = [16, 512], strides = [1, 1]} : vector<16x1024xf32> to vector<16x512xf32>
    %52 = arith.mulf %1, %50 : vector<16x512xf32>
    %53 = arith.addf %52, %51 : vector<16x512xf32>
    %cst_30 = arith.constant dense<0.000000e+00> : vector<16xf32>
    %54 = vector.multi_reduction <add>, %49, %cst_30 [1] : vector<16x512xf32> to vector<16xf32>
    %55 = vector.shape_cast %54 : vector<16xf32> to vector<16x1xf32>
    %56 = arith.addf %30, %55 : vector<16x1xf32>
    %57 = arith.truncf %53 : vector<16x512xf32> to vector<16x512xbf16>
    %c2 = arith.constant 2 : index
    %c0_31 = arith.constant 0 : index
    %c0_32 = arith.constant 0 : index
    %58 = vector.load %arg2[%c2, %c0_31, %c0_32] : memref<4x512x128xbf16, #tpu.memory_space<vmem>>, vector<1x512x128xbf16>
    %59 = vector.shape_cast %58 : vector<1x512x128xbf16> to vector<512x128xbf16>
    %cst_33 = arith.constant dense<0.000000e+00> : vector<16x128xf32>
    %60 = tpu.matmul %57, %59, %cst_33 {dimension_numbers = #tpu.dot_dimension_numbers<[1], [0], [0], [1], [0, 0, 1, 1], [], []>} : vector<16x512xbf16>, vector<512x128xbf16>, vector<16x128xf32> -> vector<16x128xf32>
    %c2_34 = arith.constant 2 : index
    %c0_35 = arith.constant 0 : index
    %c0_36 = arith.constant 0 : index
    %61 = vector.load %arg3[%c2_34, %c0_35, %c0_36] : memref<4x1x128xf32, #tpu.memory_space<vmem>>, vector<1x1x128xf32>
    %62 = vector.shape_cast %61 : vector<1x1x128xf32> to vector<1x128xf32>
    %63 = vector.broadcast %62 : vector<1x128xf32> to vector<16x128xf32>
    %64 = arith.addf %60, %63 : vector<16x128xf32>
    %65 = math.tanh %64 : vector<16x128xf32>
    %66 = arith.truncf %65 : vector<16x128xf32> to vector<16x128xbf16>
    %c2_37 = arith.constant 2 : index
    %c0_38 = arith.constant 0 : index
    %c0_39 = arith.constant 0 : index
    %67 = vector.load %arg4[%c2_37, %c0_38, %c0_39] : memref<4x128x1024xbf16, #tpu.memory_space<vmem>>, vector<1x128x1024xbf16>
    %68 = vector.shape_cast %67 : vector<1x128x1024xbf16> to vector<128x1024xbf16>
    %cst_40 = arith.constant dense<0.000000e+00> : vector<16x1024xf32>
    %69 = tpu.matmul %66, %68, %cst_40 {dimension_numbers = #tpu.dot_dimension_numbers<[1], [0], [0], [1], [0, 0, 1, 1], [], []>} : vector<16x128xbf16>, vector<128x1024xbf16>, vector<16x1024xf32> -> vector<16x1024xf32>
    %c2_41 = arith.constant 2 : index
    %c0_42 = arith.constant 0 : index
    %c0_43 = arith.constant 0 : index
    %70 = vector.load %arg5[%c2_41, %c0_42, %c0_43] : memref<4x1x1024xf32, #tpu.memory_space<vmem>>, vector<1x1x1024xf32>
    %71 = vector.shape_cast %70 : vector<1x1x1024xf32> to vector<1x1024xf32>
    %72 = vector.broadcast %71 : vector<1x1024xf32> to vector<16x1024xf32>
    %73 = arith.addf %69, %72 : vector<16x1024xf32>
    %74 = vector.extract_strided_slice %73 {offsets = [0, 0], sizes = [16, 512], strides = [1, 1]} : vector<16x1024xf32> to vector<16x512xf32>
    %75 = math.tanh %74 : vector<16x512xf32>
    %76 = math.exp %75 : vector<16x512xf32>
    %77 = vector.extract_strided_slice %73 {offsets = [0, 512], sizes = [16, 512], strides = [1, 1]} : vector<16x1024xf32> to vector<16x512xf32>
    %78 = arith.mulf %27, %76 : vector<16x512xf32>
    %79 = arith.addf %78, %77 : vector<16x512xf32>
    %cst_44 = arith.constant dense<0.000000e+00> : vector<16xf32>
    %80 = vector.multi_reduction <add>, %75, %cst_44 [1] : vector<16x512xf32> to vector<16xf32>
    %81 = vector.shape_cast %80 : vector<16xf32> to vector<16x1xf32>
    %82 = arith.addf %56, %81 : vector<16x1xf32>
    %83 = arith.truncf %79 : vector<16x512xf32> to vector<16x512xbf16>
    %c3 = arith.constant 3 : index
    %c0_45 = arith.constant 0 : index
    %c0_46 = arith.constant 0 : index
    %84 = vector.load %arg2[%c3, %c0_45, %c0_46] : memref<4x512x128xbf16, #tpu.memory_space<vmem>>, vector<1x512x128xbf16>
    %85 = vector.shape_cast %84 : vector<1x512x128xbf16> to vector<512x128xbf16>
    %cst_47 = arith.constant dense<0.000000e+00> : vector<16x128xf32>
    %86 = tpu.matmul %83, %85, %cst_47 {dimension_numbers = #tpu.dot_dimension_numbers<[1], [0], [0], [1], [0, 0, 1, 1], [], []>} : vector<16x512xbf16>, vector<512x128xbf16>, vector<16x128xf32> -> vector<16x128xf32>
    %c3_48 = arith.constant 3 : index
    %c0_49 = arith.constant 0 : index
    %c0_50 = arith.constant 0 : index
    %87 = vector.load %arg3[%c3_48, %c0_49, %c0_50] : memref<4x1x128xf32, #tpu.memory_space<vmem>>, vector<1x1x128xf32>
    %88 = vector.shape_cast %87 : vector<1x1x128xf32> to vector<1x128xf32>
    %89 = vector.broadcast %88 : vector<1x128xf32> to vector<16x128xf32>
    %90 = arith.addf %86, %89 : vector<16x128xf32>
    %91 = math.tanh %90 : vector<16x128xf32>
    %92 = arith.truncf %91 : vector<16x128xf32> to vector<16x128xbf16>
    %c3_51 = arith.constant 3 : index
    %c0_52 = arith.constant 0 : index
    %c0_53 = arith.constant 0 : index
    %93 = vector.load %arg4[%c3_51, %c0_52, %c0_53] : memref<4x128x1024xbf16, #tpu.memory_space<vmem>>, vector<1x128x1024xbf16>
    %94 = vector.shape_cast %93 : vector<1x128x1024xbf16> to vector<128x1024xbf16>
    %cst_54 = arith.constant dense<0.000000e+00> : vector<16x1024xf32>
    %95 = tpu.matmul %92, %94, %cst_54 {dimension_numbers = #tpu.dot_dimension_numbers<[1], [0], [0], [1], [0, 0, 1, 1], [], []>} : vector<16x128xbf16>, vector<128x1024xbf16>, vector<16x1024xf32> -> vector<16x1024xf32>
    %c3_55 = arith.constant 3 : index
    %c0_56 = arith.constant 0 : index
    %c0_57 = arith.constant 0 : index
    %96 = vector.load %arg5[%c3_55, %c0_56, %c0_57] : memref<4x1x1024xf32, #tpu.memory_space<vmem>>, vector<1x1x1024xf32>
    %97 = vector.shape_cast %96 : vector<1x1x1024xf32> to vector<1x1024xf32>
    %98 = vector.broadcast %97 : vector<1x1024xf32> to vector<16x1024xf32>
    %99 = arith.addf %95, %98 : vector<16x1024xf32>
    %100 = vector.extract_strided_slice %99 {offsets = [0, 0], sizes = [16, 512], strides = [1, 1]} : vector<16x1024xf32> to vector<16x512xf32>
    %101 = math.tanh %100 : vector<16x512xf32>
    %102 = math.exp %101 : vector<16x512xf32>
    %103 = vector.extract_strided_slice %99 {offsets = [0, 512], sizes = [16, 512], strides = [1, 1]} : vector<16x1024xf32> to vector<16x512xf32>
    %104 = arith.mulf %53, %102 : vector<16x512xf32>
    %105 = arith.addf %104, %103 : vector<16x512xf32>
    %cst_58 = arith.constant dense<0.000000e+00> : vector<16xf32>
    %106 = vector.multi_reduction <add>, %101, %cst_58 [1] : vector<16x512xf32> to vector<16xf32>
    %107 = vector.shape_cast %106 : vector<16xf32> to vector<16x1xf32>
    %108 = arith.addf %82, %107 : vector<16x1xf32>
    %c0_59 = arith.constant 0 : index
    %c0_60 = arith.constant 0 : index
    %109 = vector.load %arg6[%c0_59, %c0_60] : memref<16x1024xf32, #tpu.memory_space<vmem>>, vector<16x512xf32>
    tpu.vector_store %arg6[%c0_59, %c0_60], %105 {strides = array<i32>} : memref<16x1024xf32, #tpu.memory_space<vmem>>, vector<16x512xf32>,
    %c0_61 = arith.constant 0 : index
    %c512_62 = arith.constant 512 : index
    %110 = vector.load %arg6[%c0_61, %c512_62] : memref<16x1024xf32, #tpu.memory_space<vmem>>, vector<16x512xf32>
    tpu.vector_store %arg6[%c0_61, %c512_62], %79 {strides = array<i32>} : memref<16x1024xf32, #tpu.memory_space<vmem>>, vector<16x512xf32>,
    %c0_63 = arith.constant 0 : index
    %c0_64 = arith.constant 0 : index
    %111 = vector.load %arg7[%c0_63, %c0_64] : memref<16x1xf32, #tpu.memory_space<vmem>>, vector<16x1xf32>
    tpu.vector_store %arg7[%c0_63, %c0_64], %108 {strides = array<i32>} : memref<16x1xf32, #tpu.memory_space<vmem>>, vector<16x1xf32>,
    return
  }
  func.func @transform_0(%arg0: i32) -> (i32, i32) {
    %c0_i32 = arith.constant 0 : i32
    %c0_i32_0 = arith.constant 0 : i32
    return %arg0, %c0_i32 : i32, i32
  }
  func.func @transform_1(%arg0: i32) -> (i32, i32, i32) {
    %c0_i32 = arith.constant 0 : i32
    %c0_i32_0 = arith.constant 0 : i32
    %c0_i32_1 = arith.constant 0 : i32
    %c0_i32_2 = arith.constant 0 : i32
    return %c0_i32, %c0_i32_0, %c0_i32_1 : i32, i32, i32
  }
  func.func @transform_2(%arg0: i32) -> (i32, i32, i32) {
    %c0_i32 = arith.constant 0 : i32
    %c0_i32_0 = arith.constant 0 : i32
    %c0_i32_1 = arith.constant 0 : i32
    %c0_i32_2 = arith.constant 0 : i32
    return %c0_i32, %c0_i32_0, %c0_i32_1 : i32, i32, i32
  }
  func.func @transform_3(%arg0: i32) -> (i32, i32, i32) {
    %c0_i32 = arith.constant 0 : i32
    %c0_i32_0 = arith.constant 0 : i32
    %c0_i32_1 = arith.constant 0 : i32
    %c0_i32_2 = arith.constant 0 : i32
    return %c0_i32, %c0_i32_0, %c0_i32_1 : i32, i32, i32
  }
  func.func @transform_4(%arg0: i32) -> (i32, i32, i32) {
    %c0_i32 = arith.constant 0 : i32
    %c0_i32_0 = arith.constant 0 : i32
    %c0_i32_1 = arith.constant 0 : i32
    %c0_i32_2 = arith.constant 0 : i32
    return %c0_i32, %c0_i32_0, %c0_i32_1 : i32, i32, i32
  }
  func.func @transform_5(%arg0: i32) -> (i32, i32) {
    %c0_i32 = arith.constant 0 : i32
    %c0_i32_0 = arith.constant 0 : i32
    return %arg0, %c0_i32 : i32, i32
  }
  func.func @transform_6(%arg0: i32) -> (i32, i32) {
    %c0_i32 = arith.constant 0 : i32
    %c0_i32_0 = arith.constant 0 : i32
    return %arg0, %c0_i32 : i32, i32
  }
}

</mosaic_0001>

<llo_original>
// kernel: tpu_custom_call.1
$region0: #{tpu_custom_call.1}
  #allocation0 [shape = 'u32[]', space=smem, size = 0x4, offset = 0x4, fixed_abs, tag = 'smem constant byte address 0x4 - core index']
  #allocation1 [shape = 'u32[144,128]{1,0:T(1,128)}', space=vmem, size = 0x12000, scoped, tag = 'internal scratch']
  %s0 = inlined_call_operand.hbm [shape: bf16[16,1024], index: 0, kind: input, shape index: {}]
  %s1 = inlined_call_operand.hbm [shape: bf16[4,512,128], index: 1, kind: input, shape index: {}]
  %s2 = inlined_call_operand.vmem [shape: f32[4,1,128], index: 2, kind: input, shape index: {}]
  %s3 = inlined_call_operand.hbm [shape: bf16[4,128,1024], index: 3, kind: input, shape index: {}]
  %s4 = inlined_call_operand.hbm [shape: f32[4,1,1024], index: 4, kind: input, shape index: {}]
  %s5 = inlined_call_operand.hbm [shape: f32[16,1024], index: 5, kind: output, shape index: {0}]
  %s6 = inlined_call_operand.vmem [shape: f32[16,1], index: 6, kind: output, shape index: {1}]
  %7 = xla_tuple %s5, %s6
  %s8 = sld [smem:[#allocation0]]
  $region54: #{tpu_custom_call.1} parent=0
    _
  %s10 = ssub.s32 1, %s8
  %s11 = scalar_select 0, %s10, %s8
  $region1: #{tpu_custom_call.1} parent=0
    #allocation2 [shape = 'u8[32768]{0}', space=vmem, size = 0x8000, scoped, tag = 'input window, operand 0, single buffered']
    #allocation3 [shape = 's32[1]{0}', space=sflag, size = 0x4, scoped, tag = 'scoped memory for tpu_custom_call.1']
    #allocation4 [shape = 's32[1]{0}', space=sflag, size = 0x4, scoped, tag = 'scoped memory for tpu_custom_call.1']
    #allocation5 [shape = 'u8[524288]{0}', space=vmem, size = 0x80000, scoped, tag = 'input window, operand 1, single buffered']
    #allocation6 [shape = 's32[1]{0}', space=sflag, size = 0x4, scoped, tag = 'scoped memory for tpu_custom_call.1']
    #allocation7 [shape = 'u8[1048576]{0}', space=vmem, size = 0x100000, scoped, tag = 'input window, operand 3, single buffered']
    #allocation8 [shape = 'u8[16384]{0}', space=vmem, size = 0x4000, scoped, tag = 'input window, operand 4, single buffered']
    #allocation9 [shape = 's32[1]{0}', space=sflag, size = 0x4, scoped, tag = 'scoped memory for tpu_custom_call.1']
    #allocation10 [shape = 'u8[65536]{0}', space=vmem, size = 0x10000, scoped, tag = 'output window, operand 0, single buffered']
    %12 = vsyncpa [#allocation3], 0
    %13 = vsyncpa [#allocation6], 0
    %14 = vsyncpa [#allocation9], 0
    %15 = vsyncpa [#allocation4], 0
    // Predicated region
    $region2: #{tpu_custom_call.1} parent=1 // pred_check
      _
    $region3: #{tpu_custom_call.1} parent=1 // pred_check_branch
      %17 = sbr.rel (0) target = $region5
    $region4: #{tpu_custom_call.1} parent=1 // pred_region
      %s19 = ssub.s32 1024, 1024
      %20 = vsyncadd [#allocation3], %s19
      %s21 = sshll.u32 [#allocation2], 4
      %s22 = int_to_ptr.vmem [resolvable:$true] %s21
      %27 = dma.hbm_to_vmem [thread:$0]  %s0, 1024, %s22, [#allocation3], 512, 512, 32
    $region5: #{tpu_custom_call.1} parent=1 // pred_fallthru
      _
    // Predicated region
    $region6: #{tpu_custom_call.1} parent=1 // pred_check
      _
    $region7: #{tpu_custom_call.1} parent=1 // pred_check_branch
      %29 = sbr.rel (0) target = $region9
    $region8: #{tpu_custom_call.1} parent=1 // pred_region
      %s31 = ssub.s32 16384, 16384
      %32 = vsyncadd [#allocation6], %s31
      %s33 = sshll.u32 [#allocation5], 4
      %s34 = int_to_ptr.vmem [resolvable:$true] %s33
      %39 = dma.hbm_to_vmem [thread:$0]  %s1, 16384, %s34, [#allocation6], 64, 64, 4
    $region9: #{tpu_custom_call.1} parent=1 // pred_fallthru
      _
    // Predicated region
    $region10: #{tpu_custom_call.1} parent=1 // pred_check
      _
    $region11: #{tpu_custom_call.1} parent=1 // pred_check_branch
      %41 = sbr.rel (0) target = $region13
    $region12: #{tpu_custom_call.1} parent=1 // pred_region
      _
    $region13: #{tpu_custom_call.1} parent=1 // pred_fallthru
      _
    // Predicated region
    $region14: #{tpu_custom_call.1} parent=1 // pred_check
      _
    $region15: #{tpu_custom_call.1} parent=1 // pred_check_branch
      %43 = sbr.rel (0) target = $region17
    $region16: #{tpu_custom_call.1} parent=1 // pred_region
      %s45 = ssub.s32 32768, 32768
      %46 = vsyncadd [#allocation6], %s45
      %s47 = sshll.u32 [#allocation7], 4
      %s48 = int_to_ptr.vmem [resolvable:$true] %s47
      %53 = dma.hbm_to_vmem [thread:$0]  %s3, 32768, %s48, [#allocation6], 512, 512, 32
    $region17: #{tpu_custom_call.1} parent=1 // pred_fallthru
      _
    // Predicated region
    $region18: #{tpu_custom_call.1} parent=1 // pred_check
      _
    $region19: #{tpu_custom_call.1} parent=1 // pred_check_branch
      %55 = sbr.rel (0) target = $region21
    $region20: #{tpu_custom_call.1} parent=1 // pred_region
      %s57 = ssub.s32 512, 512
      %58 = vsyncadd [#allocation9], %s57
      %s59 = sshll.u32 [#allocation8], 4
      %s60 = int_to_ptr.vmem [resolvable:$true] %s59
      %65 = dma.hbm_to_vmem [thread:$0]  %s4, 512, %s60, [#allocation9], 128, 128, 8
    $region21: #{tpu_custom_call.1} parent=1 // pred_fallthru
      _
    // Predicated region
    $region22: #{tpu_custom_call.1} parent=1 // pred_check
      _
    $region23: #{tpu_custom_call.1} parent=1 // pred_check_branch
      %67 = sbr.rel (0) target = $region25
    $region24: #{tpu_custom_call.1} parent=1 // pred_region
      %68 = dma.done [#allocation3], 1024
    $region25: #{tpu_custom_call.1} parent=1 // pred_fallthru
      _
    // Predicated region
    $region26: #{tpu_custom_call.1} parent=1 // pred_check
      _
    $region27: #{tpu_custom_call.1} parent=1 // pred_check_branch
      %70 = sbr.rel (0) target = $region29
    $region28: #{tpu_custom_call.1} parent=1 // pred_region
      %71 = dma.done [#allocation6], 16384
    $region29: #{tpu_custom_call.1} parent=1 // pred_fallthru
      _
    // Predicated region
    $region30: #{tpu_custom_call.1} parent=1 // pred_check
      _
    $region31: #{tpu_custom_call.1} parent=1 // pred_check_branch
      %73 = sbr.rel (0) target = $region33
    $region32: #{tpu_custom_call.1} parent=1 // pred_region
      %74 = dma.done [#allocation6], 32768
    $region33: #{tpu_custom_call.1} parent=1 // pred_fallthru
      _
    // Predicated region
    $region34: #{tpu_custom_call.1} parent=1 // pred_check
      _
    $region35: #{tpu_custom_call.1} parent=1 // pred_check_branch
      %76 = sbr.rel (0) target = $region37
    $region36: #{tpu_custom_call.1} parent=1 // pred_region
      %77 = dma.done [#allocation9], 512
    $region37: #{tpu_custom_call.1} parent=1 // pred_fallthru
      _
    %v79 = vld [vmem:[#allocation2] sm:$0xff]
    %v80 = vld [vmem:[#allocation2 + $0x8] sm:$0xff]
    %v81 = vld [vmem:[#allocation2 + $0x20] sm:$0xff]
    %v82 = vld [vmem:[#allocation2 + $0x28] sm:$0xff]
    %v83 = vunpack.c.l.bf16 %v79
    %v84 = vunpack.c.h.bf16 %v79
    %v85 = vunpack.c.l.bf16 %v80
    %v86 = vunpack.c.h.bf16 %v80
    %v87 = vunpack.c.l.bf16 %v81
    %v88 = vunpack.c.h.bf16 %v81
    %v89 = vunpack.c.l.bf16 %v82
    %v90 = vunpack.c.h.bf16 %v82
    %v91 = vld [vmem:[#allocation2 + $0x10] sm:$0xff]
    %v92 = vld [vmem:[#allocation2 + $0x18] sm:$0xff]
    %v93 = vld [vmem:[#allocation2 + $0x30] sm:$0xff]
    %v94 = vld [vmem:[#allocation2 + $0x38] sm:$0xff]
    %v95 = vunpack.c.l.bf16 %v91
    %v96 = vunpack.c.h.bf16 %v91
    %v97 = vunpack.c.l.bf16 %v92
    %v98 = vunpack.c.h.bf16 %v92
    %v99 = vunpack.c.l.bf16 %v93
    %v100 = vunpack.c.h.bf16 %v93
    %v101 = vunpack.c.l.bf16 %v94
    %v102 = vunpack.c.h.bf16 %v94
    %v103 = vld [vmem:[#allocation5] sm:$0xf]
    %v104 = vld [vmem:[#allocation5 + $0x4] sm:$0xf]
    %v105 = vld [vmem:[#allocation5 + $0x8] sm:$0xf]
    %v106 = vld [vmem:[#allocation5 + $0xc] sm:$0xf]
    %v107 = vld [vmem:[#allocation5 + $0x10] sm:$0xf]
    %v108 = vld [vmem:[#allocation5 + $0x14] sm:$0xf]
    %v109 = vld [vmem:[#allocation5 + $0x18] sm:$0xf]
    %v110 = vld [vmem:[#allocation5 + $0x1c] sm:$0xf]
    %v111 = vld [vmem:[#allocation5 + $0x20] sm:$0xf]
    %v112 = vld [vmem:[#allocation5 + $0x24] sm:$0xf]
    %v113 = vld [vmem:[#allocation5 + $0x28] sm:$0xf]
    %v114 = vld [vmem:[#allocation5 + $0x2c] sm:$0xf]
    %v115 = vld [vmem:[#allocation5 + $0x30] sm:$0xf]
    %v116 = vld [vmem:[#allocation5 + $0x34] sm:$0xf]
    %v117 = vld [vmem:[#allocation5 + $0x38] sm:$0xf]
    %v118 = vld [vmem:[#allocation5 + $0x3c] sm:$0xf]
    %v119 = vld [vmem:[#allocation5 + $0x40] sm:$0xf]
    %v120 = vld [vmem:[#allocation5 + $0x44] sm:$0xf]
    %v121 = vld [vmem:[#allocation5 + $0x48] sm:$0xf]
    %v122 = vld [vmem:[#allocation5 + $0x4c] sm:$0xf]
    %v123 = vld [vmem:[#allocation5 + $0x50] sm:$0xf]
    %v124 = vld [vmem:[#allocation5 + $0x54] sm:$0xf]
    %v125 = vld [vmem:[#allocation5 + $0x58] sm:$0xf]
    %v126 = vld [vmem:[#allocation5 + $0x5c] sm:$0xf]
    %v127 = vld [vmem:[#allocation5 + $0x60] sm:$0xf]
    %v128 = vld [vmem:[#allocation5 + $0x64] sm:$0xf]
    %v129 = vld [vmem:[#allocation5 + $0x68] sm:$0xf]
    %v130 = vld [vmem:[#allocation5 + $0x6c] sm:$0xf]
    %v131 = vld [vmem:[#allocation5 + $0x70] sm:$0xf]
    %v132 = vld [vmem:[#allocation5 + $0x74] sm:$0xf]
    %v133 = vld [vmem:[#allocation5 + $0x78] sm:$0xf]
    %v134 = vld [vmem:[#allocation5 + $0x7c] sm:$0xf]
    %v135 = vld [vmem:[#allocation5 + $0x80] sm:$0xf]
    %v136 = vld [vmem:[#allocation5 + $0x84] sm:$0xf]
    %v137 = vld [vmem:[#allocation5 + $0x88] sm:$0xf]
    %v138 = vld [vmem:[#allocation5 + $0x8c] sm:$0xf]
    %v139 = vld [vmem:[#allocation5 + $0x90] sm:$0xf]
    %v140 = vld [vmem:[#allocation5 + $0x94] sm:$0xf]
    %v141 = vld [vmem:[#allocation5 + $0x98] sm:$0xf]
    %v142 = vld [vmem:[#allocation5 + $0x9c] sm:$0xf]
    %v143 = vld [vmem:[#allocation5 + $0xa0] sm:$0xf]
    %v144 = vld [vmem:[#allocation5 + $0xa4] sm:$0xf]
    %v145 = vld [vmem:[#allocation5 + $0xa8] sm:$0xf]
    %v146 = vld [vmem:[#allocation5 + $0xac] sm:$0xf]
    %v147 = vld [vmem:[#allocation5 + $0xb0] sm:$0xf]
    %v148 = vld [vmem:[#allocation5 + $0xb4] sm:$0xf]
    %v149 = vld [vmem:[#allocation5 + $0xb8] sm:$0xf]
    %v150 = vld [vmem:[#allocation5 + $0xbc] sm:$0xf]
    %v151 = vld [vmem:[#allocation5 + $0xc0] sm:$0xf]
    %v152 = vld [vmem:[#allocation5 + $0xc4] sm:$0xf]
    %v153 = vld [vmem:[#allocation5 + $0xc8] sm:$0xf]
    %v154 = vld [vmem:[#allocation5 + $0xcc] sm:$0xf]
    %v155 = vld [vmem:[#allocation5 + $0xd0] sm:$0xf]
    %v156 = vld [vmem:[#allocation5 + $0xd4] sm:$0xf]
    %v157 = vld [vmem:[#allocation5 + $0xd8] sm:$0xf]
    %v158 = vld [vmem:[#allocation5 + $0xdc] sm:$0xf]
    %v159 = vld [vmem:[#allocation5 + $0xe0] sm:$0xf]
    %v160 = vld [vmem:[#allocation5 + $0xe4] sm:$0xf]
    %v161 = vld [vmem:[#allocation5 + $0xe8] sm:$0xf]
    %v162 = vld [vmem:[#allocation5 + $0xec] sm:$0xf]
    %v163 = vld [vmem:[#allocation5 + $0xf0] sm:$0xf]
    %v164 = vld [vmem:[#allocation5 + $0xf4] sm:$0xf]
    %v165 = vld [vmem:[#allocation5 + $0xf8] sm:$0xf]
    %v166 = vld [vmem:[#allocation5 + $0xfc] sm:$0xf]
    %v167 = vld [vmem:[%s2] sm:$0x1]
    %v169 = vlaneseq
    %v170 = vshrl.u32 %v169, 7
    %v171 = vsub.s32 0, %v170
    %v172 = vrot.slane %v167, %v171
    %v178 = vunpack.c.l.b16 %v79
    %v179 = vunpack.c.h.b16 %v79
    %v180 = vunpack.c.l.b16 %v80
    %v181 = vunpack.c.h.b16 %v80
    %v182 = vunpack.c.l.b16 %v81
    %v183 = vunpack.c.h.b16 %v81
    %v184 = vunpack.c.l.b16 %v82
    %v185 = vunpack.c.h.b16 %v82
    %v186 = vpack.c.b16 %v182, %v178
    %v187 = vpack.c.b16 %v183, %v179
    %v188 = vpack.c.b16 %v184, %v180
    %v189 = vpack.c.b16 %v185, %v181
    %v258 = vunpack.c.l.b16 %v103
    %v259 = vunpack.c.l.b16 %v104
    %v260 = vunpack.c.l.b16 %v105
    %v261 = vunpack.c.l.b16 %v106
    %v262 = vunpack.c.l.b16 %v107
    %v263 = vunpack.c.l.b16 %v108
    %v264 = vunpack.c.l.b16 %v109
    %v265 = vunpack.c.l.b16 %v110
    %v266 = vunpack.c.l.b16 %v111
    %v267 = vunpack.c.l.b16 %v112
    %v268 = vunpack.c.l.b16 %v113
    %v269 = vunpack.c.l.b16 %v114
    %v270 = vunpack.c.l.b16 %v115
    %v271 = vunpack.c.l.b16 %v116
    %v272 = vunpack.c.l.b16 %v117
    %v273 = vunpack.c.l.b16 %v118
    %v274 = vunpack.c.l.b16 %v119
    %v275 = vunpack.c.l.b16 %v120
    %v276 = vunpack.c.l.b16 %v121
    %v277 = vunpack.c.l.b16 %v122
    %v278 = vunpack.c.l.b16 %v123
    %v279 = vunpack.c.l.b16 %v124
    %v280 = vunpack.c.l.b16 %v125
    %v281 = vunpack.c.l.b16 %v126
    %v282 = vunpack.c.l.b16 %v127
    %v283 = vunpack.c.l.b16 %v128
    %v284 = vunpack.c.l.b16 %v129
    %v285 = vunpack.c.l.b16 %v130
    %v286 = vunpack.c.l.b16 %v131
    %v287 = vunpack.c.l.b16 %v132
    %v288 = vunpack.c.l.b16 %v133
    %v289 = vunpack.c.l.b16 %v134
    %v290 = vunpack.c.l.b16 %v135
    %v291 = vunpack.c.l.b16 %v136
    %v292 = vunpack.c.l.b16 %v137
    %v293 = vunpack.c.l.b16 %v138
    %v294 = vunpack.c.l.b16 %v139
    %v295 = vunpack.c.l.b16 %v140
    %v296 = vunpack.c.l.b16 %v141
    %v297 = vunpack.c.l.b16 %v142
    %v298 = vunpack.c.l.b16 %v143
    %v299 = vunpack.c.l.b16 %v144
    %v300 = vunpack.c.l.b16 %v145
    %v301 = vunpack.c.l.b16 %v146
    %v302 = vunpack.c.l.b16 %v147
    %v303 = vunpack.c.l.b16 %v148
    %v304 = vunpack.c.l.b16 %v149
    %v305 = vunpack.c.l.b16 %v150
    %v306 = vunpack.c.l.b16 %v151
    %v307 = vunpack.c.l.b16 %v152
    %v308 = vunpack.c.l.b16 %v153
    %v309 = vunpack.c.l.b16 %v154
    %v310 = vunpack.c.l.b16 %v155
    %v311 = vunpack.c.l.b16 %v156
    %v312 = vunpack.c.l.b16 %v157
    %v313 = vunpack.c.l.b16 %v158
    %v314 = vunpack.c.l.b16 %v159
    %v315 = vunpack.c.l.b16 %v160
    %v316 = vunpack.c.l.b16 %v161
    %v317 = vunpack.c.l.b16 %v162
    %v318 = vunpack.c.l.b16 %v163
    %v319 = vunpack.c.l.b16 %v164
    %v320 = vunpack.c.l.b16 %v165
    %v321 = vunpack.c.l.b16 %v166
    %v322 = vpack.c.b16 %v259, %v258
    %v323 = vpack.c.b16 %v261, %v260
    %v324 = vpack.c.b16 %v263, %v262
    %v325 = vpack.c.b16 %v265, %v264
    %v326 = vpack.c.b16 %v267, %v266
    %v327 = vpack.c.b16 %v269, %v268
    %v328 = vpack.c.b16 %v271, %v270
    %v329 = vpack.c.b16 %v273, %v272
    %v330 = vpack.c.b16 %v275, %v274
    %v331 = vpack.c.b16 %v277, %v276
    %v332 = vpack.c.b16 %v279, %v278
    %v333 = vpack.c.b16 %v281, %v280
    %v334 = vpack.c.b16 %v283, %v282
    %v335 = vpack.c.b16 %v285, %v284
    %v336 = vpack.c.b16 %v287, %v286
    %v337 = vpack.c.b16 %v289, %v288
    %v338 = vpack.c.b16 %v291, %v290
    %v339 = vpack.c.b16 %v293, %v292
    %v340 = vpack.c.b16 %v295, %v294
    %v341 = vpack.c.b16 %v297, %v296
    %v342 = vpack.c.b16 %v299, %v298
    %v343 = vpack.c.b16 %v301, %v300
    %v344 = vpack.c.b16 %v303, %v302
    %v345 = vpack.c.b16 %v305, %v304
    %v346 = vpack.c.b16 %v307, %v306
    %v347 = vpack.c.b16 %v309, %v308
    %v348 = vpack.c.b16 %v311, %v310
    %v349 = vpack.c.b16 %v313, %v312
    %v350 = vpack.c.b16 %v315, %v314
    %v351 = vpack.c.b16 %v317, %v316
    %v352 = vpack.c.b16 %v319, %v318
    %v353 = vpack.c.b16 %v321, %v320
    %386 = vmatprep.subr.bf16.mxu0 0
    %387 = vmatpush1.bf16.msra.mxu0 %v322
    %388 = vmatprep.subr.bf16.mxu0 0
    %389 = vmatpush1.bf16.msra.mxu0 %v323
    %390 = vmatprep.subr.bf16.mxu0 0
    %391 = vmatpush1.bf16.msra.mxu0 %v324
    %392 = vmatprep.subr.bf16.mxu0 0
    %393 = vmatpush1.bf16.msra.mxu0 %v325
    %394 = vmatprep.subr.bf16.mxu0 0
    %395 = vmatpush1.bf16.msra.mxu0 %v326
    %396 = vmatprep.subr.bf16.mxu0 0
    %397 = vmatpush1.bf16.msra.mxu0 %v327
    %398 = vmatprep.subr.bf16.mxu0 0
    %399 = vmatpush1.bf16.msra.mxu0 %v328
    %400 = vmatprep.subr.bf16.mxu0 0
    %401 = vmatpush1.bf16.msra.mxu0 %v329
    %402 = vmatprep.subr.bf16.mxu0 0
    %403 = vmatpush1.bf16.msra.mxu0 %v330
    %404 = vmatprep.subr.bf16.mxu0 0
    %405 = vmatpush1.bf16.msra.mxu0 %v331
    %406 = vmatprep.subr.bf16.mxu0 0
    %407 = vmatpush1.bf16.msra.mxu0 %v332
    %408 = vmatprep.subr.bf16.mxu0 0
    %409 = vmatpush1.bf16.msra.mxu0 %v333
    %410 = vmatprep.subr.bf16.mxu0 0
    %411 = vmatpush1.bf16.msra.mxu0 %v334
    %412 = vmatprep.subr.bf16.mxu0 0
    %413 = vmatpush1.bf16.msra.mxu0 %v335
    %414 = vmatprep.subr.bf16.mxu0 0
    %415 = vmatpush1.bf16.msra.mxu0 %v336
    %416 = vmatprep.subr.bf16.mxu0 0
    %417 = vmatpush1.bf16.msra.mxu0 %v337
    %418 = vmatprep.mubr.bf16.mxu0 %v187
    %419 = vmatmul.mubr.bf16.gmra.mrb[0].mxu0 %v186
    %v420 = vpop.f32.mrb[0].mxu0
    %v421 = vadd.f32 %v172, %v420
    %v422 = vpop.f32.mrb[0].mxu0
    %v423 = vpop.f32.mrb[0].mxu0
    %v424 = vadd.f32 %v172, %v423
    %v425 = vpop.f32.mrb[0].mxu0
    %426 = vdwg.mxu0
    %427 = vmatprep.subr.bf16.mxu0 0
    %428 = vmatpush1.bf16.msra.mxu0 %v338
    %429 = vmatprep.subr.bf16.mxu0 0
    %430 = vmatpush1.bf16.msra.mxu0 %v339
    %431 = vmatprep.subr.bf16.mxu0 0
    %432 = vmatpush1.bf16.msra.mxu0 %v340
    %433 = vmatprep.subr.bf16.mxu0 0
    %434 = vmatpush1.bf16.msra.mxu0 %v341
    %435 = vmatprep.subr.bf16.mxu0 0
    %436 = vmatpush1.bf16.msra.mxu0 %v342
    %437 = vmatprep.subr.bf16.mxu0 0
    %438 = vmatpush1.bf16.msra.mxu0 %v343
    %439 = vmatprep.subr.bf16.mxu0 0
    %440 = vmatpush1.bf16.msra.mxu0 %v344
    %441 = vmatprep.subr.bf16.mxu0 0
    %442 = vmatpush1.bf16.msra.mxu0 %v345
    %443 = vmatprep.subr.bf16.mxu0 0
    %444 = vmatpush1.bf16.msra.mxu0 %v346
    %445 = vmatprep.subr.bf16.mxu0 0
    %446 = vmatpush1.bf16.msra.mxu0 %v347
    %447 = vmatprep.subr.bf16.mxu0 0
    %448 = vmatpush1.bf16.msra.mxu0 %v348
    %449 = vmatprep.subr.bf16.mxu0 0
    %450 = vmatpush1.bf16.msra.mxu0 %v349
    %451 = vmatprep.subr.bf16.mxu0 0
    %452 = vmatpush1.bf16.msra.mxu0 %v350
    %453 = vmatprep.subr.bf16.mxu0 0
    %454 = vmatpush1.bf16.msra.mxu0 %v351
    %455 = vmatprep.subr.bf16.mxu0 0
    %456 = vmatpush1.bf16.msra.mxu0 %v352
    %457 = vmatprep.subr.bf16.mxu0 0
    %458 = vmatpush1.bf16.msra.mxu0 %v353
    %459 = vmatprep.mubr.bf16.mxu0 %v189
    %460 = vmatmul.mubr.bf16.gmra.mrb[0].mxu0 %v188
    %v461 = vpop.f32.mrb[0].mxu0
    %v462 = vadd.f32 %v421, %v461
    %v463 = vpop.f32.mrb[0].mxu0
    %v464 = vpop.f32.mrb[0].mxu0
    %v465 = vadd.f32 %v424, %v464
    %v466 = vpop.f32.mrb[0].mxu0
    %467 = vdwg.mxu0
    %v468 = vtanh.pop %v462
    %v469 = vtanh.pop %v465
    %v470 = vpack.c.bf16 %v469, %v468
    %v471 = vld [vmem:[#allocation7] sm:$0xff]
    %v472 = vld [vmem:[#allocation7 + $0x8] sm:$0xff]
    %v473 = vld [vmem:[#allocation7 + $0x10] sm:$0xff]
    %v474 = vld [vmem:[#allocation7 + $0x18] sm:$0xff]
    %v475 = vld [vmem:[#allocation7 + $0x20] sm:$0xff]
    %v476 = vld [vmem:[#allocation7 + $0x28] sm:$0xff]
    %v477 = vld [vmem:[#allocation7 + $0x30] sm:$0xff]
    %v478 = vld [vmem:[#allocation7 + $0x38] sm:$0xff]
    %v479 = vld [vmem:[#allocation7 + $0x40] sm:$0xff]
    %v480 = vld [vmem:[#allocation7 + $0x48] sm:$0xff]
    %v481 = vld [vmem:[#allocation7 + $0x50] sm:$0xff]
    %v482 = vld [vmem:[#allocation7 + $0x58] sm:$0xff]
    %v483 = vld [vmem:[#allocation7 + $0x60] sm:$0xff]
    %v484 = vld [vmem:[#allocation7 + $0x68] sm:$0xff]
    %v485 = vld [vmem:[#allocation7 + $0x70] sm:$0xff]
    %v486 = vld [vmem:[#allocation7 + $0x78] sm:$0xff]
    %v487 = vld [vmem:[#allocation7 + $0x80] sm:$0xff]
    %v488 = vld [vmem:[#allocation7 + $0x88] sm:$0xff]
    %v489 = vld [vmem:[#allocation7 + $0x90] sm:$0xff]
    %v490 = vld [vmem:[#allocation7 + $0x98] sm:$0xff]
    %v491 = vld [vmem:[#allocation7 + $0xa0] sm:$0xff]
    %v492 = vld [vmem:[#allocation7 + $0xa8] sm:$0xff]
    %v493 = vld [vmem:[#allocation7 + $0xb0] sm:$0xff]
    %v494 = vld [vmem:[#allocation7 + $0xb8] sm:$0xff]
    %v495 = vld [vmem:[#allocation7 + $0xc0] sm:$0xff]
    %v496 = vld [vmem:[#allocation7 + $0xc8] sm:$0xff]
    %v497 = vld [vmem:[#allocation7 + $0xd0] sm:$0xff]
    %v498 = vld [vmem:[#allocation7 + $0xd8] sm:$0xff]
    %v499 = vld [vmem:[#allocation7 + $0xe0] sm:$0xff]
    %v500 = vld [vmem:[#allocation7 + $0xe8] sm:$0xff]
    %v501 = vld [vmem:[#allocation7 + $0xf0] sm:$0xff]
    %v502 = vld [vmem:[#allocation7 + $0xf8] sm:$0xff]
    %v503 = vld [vmem:[#allocation7 + $0x100] sm:$0xff]
    %v504 = vld [vmem:[#allocation7 + $0x108] sm:$0xff]
    %v505 = vld [vmem:[#allocation7 + $0x110] sm:$0xff]
    %v506 = vld [vmem:[#allocation7 + $0x118] sm:$0xff]
    %v507 = vld [vmem:[#allocation7 + $0x120] sm:$0xff]
    %v508 = vld [vmem:[#allocation7 + $0x128] sm:$0xff]
    %v509 = vld [vmem:[#allocation7 + $0x130] sm:$0xff]
    %v510 = vld [vmem:[#allocation7 + $0x138] sm:$0xff]
    %v511 = vld [vmem:[#allocation7 + $0x140] sm:$0xff]
    %v512 = vld [vmem:[#allocation7 + $0x148] sm:$0xff]
    %v513 = vld [vmem:[#allocation7 + $0x150] sm:$0xff]
    %v514 = vld [vmem:[#allocation7 + $0x158] sm:$0xff]
    %v515 = vld [vmem:[#allocation7 + $0x160] sm:$0xff]
    %v516 = vld [vmem:[#allocation7 + $0x168] sm:$0xff]
    %v517 = vld [vmem:[#allocation7 + $0x170] sm:$0xff]
    %v518 = vld [vmem:[#allocation7 + $0x178] sm:$0xff]
    %v519 = vld [vmem:[#allocation7 + $0x180] sm:$0xff]
    %v520 = vld [vmem:[#allocation7 + $0x188] sm:$0xff]
    %v521 = vld [vmem:[#allocation7 + $0x190] sm:$0xff]
    %v522 = vld [vmem:[#allocation7 + $0x198] sm:$0xff]
    %v523 = vld [vmem:[#allocation7 + $0x1a0] sm:$0xff]
    %v524 = vld [vmem:[#allocation7 + $0x1a8] sm:$0xff]
    %v525 = vld [vmem:[#allocation7 + $0x1b0] sm:$0xff]
    %v526 = vld [vmem:[#allocation7 + $0x1b8] sm:$0xff]
    %v527 = vld [vmem:[#allocation7 + $0x1c0] sm:$0xff]
    %v528 = vld [vmem:[#allocation7 + $0x1c8] sm:$0xff]
    %v529 = vld [vmem:[#allocation7 + $0x1d0] sm:$0xff]
    %v530 = vld [vmem:[#allocation7 + $0x1d8] sm:$0xff]
    %v531 = vld [vmem:[#allocation7 + $0x1e0] sm:$0xff]
    %v532 = vld [vmem:[#allocation7 + $0x1e8] sm:$0xff]
    %v533 = vld [vmem:[#allocation7 + $0x1f0] sm:$0xff]
    %v534 = vld [vmem:[#allocation7 + $0x1f8] sm:$0xff]
    %v535 = vld [vmem:[#allocation8] sm:$0xff]
    %v537 = vlaneseq
    %v538 = vshrl.u32 %v537, 7
    %v539 = vsub.s32 0, %v538
    %v540 = vrot.slane %v535, %v539
    %v541 = vlaneseq
    %v542 = vshrl.u32 %v541, 7
    %v543 = vsub.s32 1, %v542
    %v544 = vrot.slane %v535, %v543
    %v545 = vlaneseq
    %v546 = vshrl.u32 %v545, 7
    %v547 = vsub.s32 2, %v546
    %v548 = vrot.slane %v535, %v547
    %v549 = vlaneseq
    %v550 = vshrl.u32 %v549, 7
    %v551 = vsub.s32 3, %v550
    %v552 = vrot.slane %v535, %v551
    %v553 = vlaneseq
    %v554 = vshrl.u32 %v553, 7
    %v555 = vsub.s32 4, %v554
    %v556 = vrot.slane %v535, %v555
    %v557 = vlaneseq
    %v558 = vshrl.u32 %v557, 7
    %v559 = vsub.s32 5, %v558
    %v560 = vrot.slane %v535, %v559
    %v561 = vlaneseq
    %v562 = vshrl.u32 %v561, 7
    %v563 = vsub.s32 6, %v562
    %v564 = vrot.slane %v535, %v563
    %v565 = vlaneseq
    %v566 = vshrl.u32 %v565, 7
    %v567 = vsub.s32 7, %v566
    %v568 = vrot.slane %v535, %v567
    %v641 = vunpack.c.l.b16 %v471
    %v642 = vunpack.c.h.b16 %v471
    %v643 = vunpack.c.l.b16 %v472
    %v644 = vunpack.c.h.b16 %v472
    %v645 = vunpack.c.l.b16 %v473
    %v646 = vunpack.c.h.b16 %v473
    %v647 = vunpack.c.l.b16 %v474
    %v648 = vunpack.c.h.b16 %v474
    %v649 = vunpack.c.l.b16 %v475
    %v650 = vunpack.c.h.b16 %v475
    %v651 = vunpack.c.l.b16 %v476
    %v652 = vunpack.c.h.b16 %v476
    %v653 = vunpack.c.l.b16 %v477
    %v654 = vunpack.c.h.b16 %v477
    %v655 = vunpack.c.l.b16 %v478
    %v656 = vunpack.c.h.b16 %v478
    %v657 = vunpack.c.l.b16 %v479
    %v658 = vunpack.c.h.b16 %v479
    %v659 = vunpack.c.l.b16 %v480
    %v660 = vunpack.c.h.b16 %v480
    %v661 = vunpack.c.l.b16 %v481
    %v662 = vunpack.c.h.b16 %v481
    %v663 = vunpack.c.l.b16 %v482
    %v664 = vunpack.c.h.b16 %v482
    %v665 = vunpack.c.l.b16 %v483
    %v666 = vunpack.c.h.b16 %v483
    %v667 = vunpack.c.l.b16 %v484
    %v668 = vunpack.c.h.b16 %v484
    %v669 = vunpack.c.l.b16 %v485
    %v670 = vunpack.c.h.b16 %v485
    %v671 = vunpack.c.l.b16 %v486
    %v672 = vunpack.c.h.b16 %v486
    %v673 = vunpack.c.l.b16 %v487
    %v674 = vunpack.c.h.b16 %v487
    %v675 = vunpack.c.l.b16 %v488
    %v676 = vunpack.c.h.b16 %v488
    %v677 = vunpack.c.l.b16 %v489
    %v678 = vunpack.c.h.b16 %v489
    %v679 = vunpack.c.l.b16 %v490
    %v680 = vunpack.c.h.b16 %v490
    %v681 = vunpack.c.l.b16 %v491
    %v682 = vunpack.c.h.b16 %v491
    %v683 = vunpack.c.l.b16 %v492
    %v684 = vunpack.c.h.b16 %v492
    %v685 = vunpack.c.l.b16 %v493
    %v686 = vunpack.c.h.b16 %v493
    %v687 = vunpack.c.l.b16 %v494
    %v688 = vunpack.c.h.b16 %v494
    %v689 = vunpack.c.l.b16 %v495
    %v690 = vunpack.c.h.b16 %v495
    %v691 = vunpack.c.l.b16 %v496
    %v692 = vunpack.c.h.b16 %v496
    %v693 = vunpack.c.l.b16 %v497
    %v694 = vunpack.c.h.b16 %v497
    %v695 = vunpack.c.l.b16 %v498
    %v696 = vunpack.c.h.b16 %v498
    %v697 = vunpack.c.l.b16 %v499
    %v698 = vunpack.c.h.b16 %v499
    %v699 = vunpack.c.l.b16 %v500
    %v700 = vunpack.c.h.b16 %v500
    %v701 = vunpack.c.l.b16 %v501
    %v702 = vunpack.c.h.b16 %v501
    %v703 = vunpack.c.l.b16 %v502
    %v704 = vunpack.c.h.b16 %v502
    %v705 = vunpack.c.l.b16 %v503
    %v706 = vunpack.c.h.b16 %v503
    %v707 = vunpack.c.l.b16 %v504
    %v708 = vunpack.c.h.b16 %v504
    %v709 = vunpack.c.l.b16 %v505
    %v710 = vunpack.c.h.b16 %v505
    %v711 = vunpack.c.l.b16 %v506
    %v712 = vunpack.c.h.b16 %v506
    %v713 = vunpack.c.l.b16 %v507
    %v714 = vunpack.c.h.b16 %v507
    %v715 = vunpack.c.l.b16 %v508
    %v716 = vunpack.c.h.b16 %v508
    %v717 = vunpack.c.l.b16 %v509
    %v718 = vunpack.c.h.b16 %v509
    %v719 = vunpack.c.l.b16 %v510
    %v720 = vunpack.c.h.b16 %v510
    %v721 = vunpack.c.l.b16 %v511
    %v722 = vunpack.c.h.b16 %v511
    %v723 = vunpack.c.l.b16 %v512
    %v724 = vunpack.c.h.b16 %v512
    %v725 = vunpack.c.l.b16 %v513
    %v726 = vunpack.c.h.b16 %v513
    %v727 = vunpack.c.l.b16 %v514
    %v728 = vunpack.c.h.b16 %v514
    %v729 = vunpack.c.l.b16 %v515
    %v730 = vunpack.c.h.b16 %v515
    %v731 = vunpack.c.l.b16 %v516
    %v732 = vunpack.c.h.b16 %v516
    %v733 = vunpack.c.l.b16 %v517
    %v734 = vunpack.c.h.b16 %v517
    %v735 = vunpack.c.l.b16 %v518
    %v736 = vunpack.c.h.b16 %v518
    %v737 = vunpack.c.l.b16 %v519
    %v738 = vunpack.c.h.b16 %v519
    %v739 = vunpack.c.l.b16 %v520
    %v740 = vunpack.c.h.b16 %v520
    %v741 = vunpack.c.l.b16 %v521
    %v742 = vunpack.c.h.b16 %v521
    %v743 = vunpack.c.l.b16 %v522
    %v744 = vunpack.c.h.b16 %v522
    %v745 = vunpack.c.l.b16 %v523
    %v746 = vunpack.c.h.b16 %v523
    %v747 = vunpack.c.l.b16 %v524
    %v748 = vunpack.c.h.b16 %v524
    %v749 = vunpack.c.l.b16 %v525
    %v750 = vunpack.c.h.b16 %v525
    %v751 = vunpack.c.l.b16 %v526
    %v752 = vunpack.c.h.b16 %v526
    %v753 = vunpack.c.l.b16 %v527
    %v754 = vunpack.c.h.b16 %v527
    %v755 = vunpack.c.l.b16 %v528
    %v756 = vunpack.c.h.b16 %v528
    %v757 = vunpack.c.l.b16 %v529
    %v758 = vunpack.c.h.b16 %v529
    %v759 = vunpack.c.l.b16 %v530
    %v760 = vunpack.c.h.b16 %v530
    %v761 = vunpack.c.l.b16 %v531
    %v762 = vunpack.c.h.b16 %v531
    %v763 = vunpack.c.l.b16 %v532
    %v764 = vunpack.c.h.b16 %v532
    %v765 = vunpack.c.l.b16 %v533
    %v766 = vunpack.c.h.b16 %v533
    %v767 = vunpack.c.l.b16 %v534
    %v768 = vunpack.c.h.b16 %v534
    %v769 = vpack.c.b16 %v649, %v641
    %v770 = vpack.c.b16 %v650, %v642
    %v771 = vpack.c.b16 %v651, %v643
    %v772 = vpack.c.b16 %v652, %v644
    %v773 = vpack.c.b16 %v653, %v645
    %v774 = vpack.c.b16 %v654, %v646
    %v775 = vpack.c.b16 %v655, %v647
    %v776 = vpack.c.b16 %v656, %v648
    %v777 = vpack.c.b16 %v665, %v657
    %v778 = vpack.c.b16 %v666, %v658
    %v779 = vpack.c.b16 %v667, %v659
    %v780 = vpack.c.b16 %v668, %v660
    %v781 = vpack.c.b16 %v669, %v661
    %v782 = vpack.c.b16 %v670, %v662
    %v783 = vpack.c.b16 %v671, %v663
    %v784 = vpack.c.b16 %v672, %v664
    %v785 = vpack.c.b16 %v681, %v673
    %v786 = vpack.c.b16 %v682, %v674
    %v787 = vpack.c.b16 %v683, %v675
    %v788 = vpack.c.b16 %v684, %v676
    %v789 = vpack.c.b16 %v685, %v677
    %v790 = vpack.c.b16 %v686, %v678
    %v791 = vpack.c.b16 %v687, %v679
    %v792 = vpack.c.b16 %v688, %v680
    %v793 = vpack.c.b16 %v697, %v689
    %v794 = vpack.c.b16 %v698, %v690
    %v795 = vpack.c.b16 %v699, %v691
    %v796 = vpack.c.b16 %v700, %v692
    %v797 = vpack.c.b16 %v701, %v693
    %v798 = vpack.c.b16 %v702, %v694
    %v799 = vpack.c.b16 %v703, %v695
    %v800 = vpack.c.b16 %v704, %v696
    %v801 = vpack.c.b16 %v713, %v705
    %v802 = vpack.c.b16 %v714, %v706
    %v803 = vpack.c.b16 %v715, %v707
    %v804 = vpack.c.b16 %v716, %v708
    %v805 = vpack.c.b16 %v717, %v709
    %v806 = vpack.c.b16 %v718, %v710
    %v807 = vpack.c.b16 %v719, %v711
    %v808 = vpack.c.b16 %v720, %v712
    %v809 = vpack.c.b16 %v729, %v721
    %v810 = vpack.c.b16 %v730, %v722
    %v811 = vpack.c.b16 %v731, %v723
    %v812 = vpack.c.b16 %v732, %v724
    %v813 = vpack.c.b16 %v733, %v725
    %v814 = vpack.c.b16 %v734, %v726
    %v815 = vpack.c.b16 %v735, %v727
    %v816 = vpack.c.b16 %v736, %v728
    %v817 = vpack.c.b16 %v745, %v737
    %v818 = vpack.c.b16 %v746, %v738
    %v819 = vpack.c.b16 %v747, %v739
    %v820 = vpack.c.b16 %v748, %v740
    %v821 = vpack.c.b16 %v749, %v741
    %v822 = vpack.c.b16 %v750, %v742
    %v823 = vpack.c.b16 %v751, %v743
    %v824 = vpack.c.b16 %v752, %v744
    %v825 = vpack.c.b16 %v761, %v753
    %v826 = vpack.c.b16 %v762, %v754
    %v827 = vpack.c.b16 %v763, %v755
    %v828 = vpack.c.b16 %v764, %v756
    %v829 = vpack.c.b16 %v765, %v757
    %v830 = vpack.c.b16 %v766, %v758
    %v831 = vpack.c.b16 %v767, %v759
    %v832 = vpack.c.b16 %v768, %v760
    %897 = vmatprep.subr.bf16.mxu0 %v770
    %898 = vmatpush1.bf16.msra.mxu0 %v769
    %899 = vmatprep.subr.bf16.mxu0 %v778
    %900 = vmatpush1.bf16.msra.mxu0 %v777
    %901 = vmatprep.subr.bf16.mxu0 %v786
    %902 = vmatpush1.bf16.msra.mxu0 %v785
    %903 = vmatprep.subr.bf16.mxu0 %v794
    %904 = vmatpush1.bf16.msra.mxu0 %v793
    %905 = vmatprep.subr.bf16.mxu0 %v802
    %906 = vmatpush1.bf16.msra.mxu0 %v801
    %907 = vmatprep.subr.bf16.mxu0 %v810
    %908 = vmatpush1.bf16.msra.mxu0 %v809
    %909 = vmatprep.subr.bf16.mxu0 %v818
    %910 = vmatpush1.bf16.msra.mxu0 %v817
    %911 = vmatprep.subr.bf16.mxu0 %v826
    %912 = vmatpush1.bf16.msra.mxu0 %v825
    %913 = vmatprep.subr.bf16.mxu0 0
    %914 = vmatpush1.bf16.msra.mxu0 0
    %915 = vmatprep.subr.bf16.mxu0 0
    %916 = vmatpush1.bf16.msra.mxu0 0
    %917 = vmatprep.subr.bf16.mxu0 0
    %918 = vmatpush1.bf16.msra.mxu0 0
    %919 = vmatprep.subr.bf16.mxu0 0
    %920 = vmatpush1.bf16.msra.mxu0 0
    %921 = vmatprep.subr.bf16.mxu0 0
    %922 = vmatpush1.bf16.msra.mxu0 0
    %923 = vmatprep.subr.bf16.mxu0 0
    %924 = vmatpush1.bf16.msra.mxu0 0
    %925 = vmatprep.subr.bf16.mxu0 0
    %926 = vmatpush1.bf16.msra.mxu0 0
    %927 = vmatprep.subr.bf16.mxu0 0
    %928 = vmatpush1.bf16.msra.mxu0 0
    %929 = vmatprep.mubr.bf16.mxu0 0
    %930 = vmatmul.mubr.bf16.gmra.mrb[0].mxu0 %v470
    %v931 = vpop.f32.mrb[0].mxu0
    %v932 = vadd.f32 %v540, %v931
    %v933 = vpop.f32.mrb[0].mxu0
    %v934 = vadd.f32 %v544, %v933
    %v935 = vpop.f32.mrb[0].mxu0
    %v936 = vadd.f32 %v540, %v935
    %v937 = vpop.f32.mrb[0].mxu0
    %v938 = vadd.f32 %v544, %v937
    %939 = vdwg.mxu0
    %940 = vmatprep.subr.bf16.mxu0 %v772
    %941 = vmatpush1.bf16.msra.mxu0 %v771
    %942 = vmatprep.subr.bf16.mxu0 %v780
    %943 = vmatpush1.bf16.msra.mxu0 %v779
    %944 = vmatprep.subr.bf16.mxu0 %v788
    %945 = vmatpush1.bf16.msra.mxu0 %v787
    %946 = vmatprep.subr.bf16.mxu0 %v796
    %947 = vmatpush1.bf16.msra.mxu0 %v795
    %948 = vmatprep.subr.bf16.mxu0 %v804
    %949 = vmatpush1.bf16.msra.mxu0 %v803
    %950 = vmatprep.subr.bf16.mxu0 %v812
    %951 = vmatpush1.bf16.msra.mxu0 %v811
    %952 = vmatprep.subr.bf16.mxu0 %v820
    %953 = vmatpush1.bf16.msra.mxu0 %v819
    %954 = vmatprep.subr.bf16.mxu0 %v828
    %955 = vmatpush1.bf16.msra.mxu0 %v827
    %956 = vmatprep.subr.bf16.mxu0 0
    %957 = vmatpush1.bf16.msra.mxu0 0
    %958 = vmatprep.subr.bf16.mxu0 0
    %959 = vmatpush1.bf16.msra.mxu0 0
    %960 = vmatprep.subr.bf16.mxu0 0
    %961 = vmatpush1.bf16.msra.mxu0 0
    %962 = vmatprep.subr.bf16.mxu0 0
    %963 = vmatpush1.bf16.msra.mxu0 0
    %964 = vmatprep.subr.bf16.mxu0 0
    %965 = vmatpush1.bf16.msra.mxu0 0
    %966 = vmatprep.subr.bf16.mxu0 0
    %967 = vmatpush1.bf16.msra.mxu0 0
    %968 = vmatprep.subr.bf16.mxu0 0
    %969 = vmatpush1.bf16.msra.mxu0 0
    %970 = vmatprep.subr.bf16.mxu0 0
    %971 = vmatpush1.bf16.msra.mxu0 0
    %972 = vmatprep.mubr.bf16.mxu0 0
    %973 = vmatmul.mubr.bf16.gmra.mrb[0].mxu0 %v470
    %v974 = vpop.f32.mrb[0].mxu0
    %v975 = vadd.f32 %v548, %v974
    %v976 = vpop.f32.mrb[0].mxu0
    %v977 = vadd.f32 %v552, %v976
    %v978 = vpop.f32.mrb[0].mxu0
    %v979 = vadd.f32 %v548, %v978
    %v980 = vpop.f32.mrb[0].mxu0
    %v981 = vadd.f32 %v552, %v980
    %982 = vdwg.mxu0
    %983 = vmatprep.subr.bf16.mxu0 %v774
    %984 = vmatpush1.bf16.msra.mxu0 %v773
    %985 = vmatprep.subr.bf16.mxu0 %v782
    %986 = vmatpush1.bf16.msra.mxu0 %v781
    %987 = vmatprep.subr.bf16.mxu0 %v790
    %988 = vmatpush1.bf16.msra.mxu0 %v789
    %989 = vmatprep.subr.bf16.mxu0 %v798
    %990 = vmatpush1.bf16.msra.mxu0 %v797
    %991 = vmatprep.subr.bf16.mxu0 %v806
    %992 = vmatpush1.bf16.msra.mxu0 %v805
    %993 = vmatprep.subr.bf16.mxu0 %v814
    %994 = vmatpush1.bf16.msra.mxu0 %v813
    %995 = vmatprep.subr.bf16.mxu0 %v822
    %996 = vmatpush1.bf16.msra.mxu0 %v821
    %997 = vmatprep.subr.bf16.mxu0 %v830
    %998 = vmatpush1.bf16.msra.mxu0 %v829
    %999 = vmatprep.subr.bf16.mxu0 0
    %1000 = vmatpush1.bf16.msra.mxu0 0
    %1001 = vmatprep.subr.bf16.mxu0 0
    %1002 = vmatpush1.bf16.msra.mxu0 0
    %1003 = vmatprep.subr.bf16.mxu0 0
    %1004 = vmatpush1.bf16.msra.mxu0 0
    %1005 = vmatprep.subr.bf16.mxu0 0
    %1006 = vmatpush1.bf16.msra.mxu0 0
    %1007 = vmatprep.subr.bf16.mxu0 0
    %1008 = vmatpush1.bf16.msra.mxu0 0
    %1009 = vmatprep.subr.bf16.mxu0 0
    %1010 = vmatpush1.bf16.msra.mxu0 0
    %1011 = vmatprep.subr.bf16.mxu0 0
    %1012 = vmatpush1.bf16.msra.mxu0 0
    %1013 = vmatprep.subr.bf16.mxu0 0
    %1014 = vmatpush1.bf16.msra.mxu0 0
    %1015 = vmatprep.mubr.bf16.mxu0 0
    %1016 = vmatmul.mubr.bf16.gmra.mrb[0].mxu0 %v470
    %v1017 = vpop.f32.mrb[0].mxu0
    %v1018 = vadd.f32 %v556, %v1017
    %v1019 = vpop.f32.mrb[0].mxu0
    %v1020 = vadd.f32 %v560, %v1019
    %v1021 = vpop.f32.mrb[0].mxu0
    %v1022 = vadd.f32 %v556, %v1021
    %v1023 = vpop.f32.mrb[0].mxu0
    %v1024 = vadd.f32 %v560, %v1023
    %1025 = vdwg.mxu0
    %1026 = vmatprep.subr.bf16.mxu0 %v776
    %1027 = vmatpush1.bf16.msra.mxu0 %v775
    %1028 = vmatprep.subr.bf16.mxu0 %v784
    %1029 = vmatpush1.bf16.msra.mxu0 %v783
    %1030 = vmatprep.subr.bf16.mxu0 %v792
    %1031 = vmatpush1.bf16.msra.mxu0 %v791
    %1032 = vmatprep.subr.bf16.mxu0 %v800
    %1033 = vmatpush1.bf16.msra.mxu0 %v799
    %1034 = vmatprep.subr.bf16.mxu0 %v808
    %1035 = vmatpush1.bf16.msra.mxu0 %v807
    %1036 = vmatprep.subr.bf16.mxu0 %v816
    %1037 = vmatpush1.bf16.msra.mxu0 %v815
    %1038 = vmatprep.subr.bf16.mxu0 %v824
    %1039 = vmatpush1.bf16.msra.mxu0 %v823
    %1040 = vmatprep.subr.bf16.mxu0 %v832
    %1041 = vmatpush1.bf16.msra.mxu0 %v831
    %1042 = vmatprep.subr.bf16.mxu0 0
    %1043 = vmatpush1.bf16.msra.mxu0 0
    %1044 = vmatprep.subr.bf16.mxu0 0
    %1045 = vmatpush1.bf16.msra.mxu0 0
    %1046 = vmatprep.subr.bf16.mxu0 0
    %1047 = vmatpush1.bf16.msra.mxu0 0
    %1048 = vmatprep.subr.bf16.mxu0 0
    %1049 = vmatpush1.bf16.msra.mxu0 0
    %1050 = vmatprep.subr.bf16.mxu0 0
    %1051 = vmatpush1.bf16.msra.mxu0 0
    %1052 = vmatprep.subr.bf16.mxu0 0
    %1053 = vmatpush1.bf16.msra.mxu0 0
    %1054 = vmatprep.subr.bf16.mxu0 0
    %1055 = vmatpush1.bf16.msra.mxu0 0
    %1056 = vmatprep.subr.bf16.mxu0 0
    %1057 = vmatpush1.bf16.msra.mxu0 0
    %1058 = vmatprep.mubr.bf16.mxu0 0
    %1059 = vmatmul.mubr.bf16.gmra.mrb[0].mxu0 %v470
    %v1060 = vpop.f32.mrb[0].mxu0
    %v1061 = vadd.f32 %v564, %v1060
    %v1062 = vpop.f32.mrb[0].mxu0
    %v1063 = vadd.f32 %v568, %v1062
    %v1064 = vpop.f32.mrb[0].mxu0
    %v1065 = vadd.f32 %v564, %v1064
    %v1066 = vpop.f32.mrb[0].mxu0
    %v1067 = vadd.f32 %v568, %v1066
    %1068 = vdwg.mxu0
    %v1069 = vtanh.pop %v932
    %v1070 = vtanh.pop %v934
    %v1071 = vtanh.pop %v975
    %v1072 = vtanh.pop %v977
    %v1073 = vtanh.pop %v936
    %v1074 = vtanh.pop %v938
    %v1075 = vtanh.pop %v979
    %v1076 = vtanh.pop %v981
    %v1077 = vmul.f32 %v1069, 1.442695
    %v1078 = vpow.pop %v1077
    %v1079 = vmul.f32 %v1070, 1.442695
    %v1080 = vpow.pop %v1079
    %v1081 = vmul.f32 %v1071, 1.442695
    %v1082 = vpow.pop %v1081
    %v1083 = vmul.f32 %v1072, 1.442695
    %v1084 = vpow.pop %v1083
    %v1085 = vmul.f32 %v1073, 1.442695
    %v1086 = vpow.pop %v1085
    %v1087 = vmul.f32 %v1074, 1.442695
    %v1088 = vpow.pop %v1087
    %v1089 = vmul.f32 %v1075, 1.442695
    %v1090 = vpow.pop %v1089
    %v1091 = vmul.f32 %v1076, 1.442695
    %v1092 = vpow.pop %v1091
    %v1093 = vmul.f32 %v95, %v1078
    %v1094 = vmul.f32 %v96, %v1080
    %v1095 = vmul.f32 %v97, %v1082
    %v1096 = vmul.f32 %v98, %v1084
    %v1097 = vmul.f32 %v99, %v1086
    %v1098 = vmul.f32 %v100, %v1088
    %v1099 = vmul.f32 %v101, %v1090
    %v1100 = vmul.f32 %v102, %v1092
    %v1101 = vadd.f32 %v1093, %v1018
    %v1102 = vadd.f32 %v1094, %v1020
    %v1103 = vadd.f32 %v1095, %v1061
    %v1104 = vadd.f32 %v1096, %v1063
    %v1105 = vadd.f32 %v1097, %v1022
    %v1106 = vadd.f32 %v1098, %v1024
    %v1107 = vadd.f32 %v1099, %v1065
    %v1108 = vadd.f32 %v1100, %v1067
    %v1109 = vadd.f32 %v1069, %v1070
    %v1110 = vadd.f32 %v1109, %v1071
    %v1111 = vadd.f32 %v1110, %v1072
    %1112 = vadd.xlane.f32.xlu0 %v1111
    %v1113 = vpop.xlane.xlu0 %1112
    %v1114 = vadd.f32 %v1073, %v1074
    %v1115 = vadd.f32 %v1114, %v1075
    %v1116 = vadd.f32 %v1115, %v1076
    %1117 = vadd.xlane.f32.xlu0 %v1116
    %v1118 = vpop.xlane.xlu0 %1117
    %v1119 = vadd.f32 %v1113, 0.0
    %v1120 = vadd.f32 %v1118, 0.0
    %v1121 = vpack.c.bf16 %v1105, %v1101
    %v1122 = vpack.c.bf16 %v1106, %v1102
    %v1123 = vpack.c.bf16 %v1107, %v1103
    %v1124 = vpack.c.bf16 %v1108, %v1104
    %s1125 = scalar_lea.vmem [#allocation5], 256
    %v1126 = vld [vmem:[%s1125] sm:$0xf]
    %v1127 = vld [vmem:[%s1125 + $0x4] sm:$0xf]
    %v1128 = vld [vmem:[%s1125 + $0x8] sm:$0xf]
    %v1129 = vld [vmem:[%s1125 + $0xc] sm:$0xf]
    %v1130 = vld [vmem:[%s1125 + $0x10] sm:$0xf]
    %v1131 = vld [vmem:[%s1125 + $0x14] sm:$0xf]
    %v1132 = vld [vmem:[%s1125 + $0x18] sm:$0xf]
    %v1133 = vld [vmem:[%s1125 + $0x1c] sm:$0xf]
    %v1134 = vld [vmem:[%s1125 + $0x20] sm:$0xf]
    %v1135 = vld [vmem:[%s1125 + $0x24] sm:$0xf]
    %v1136 = vld [vmem:[%s1125 + $0x28] sm:$0xf]
    %v1137 = vld [vmem:[%s1125 + $0x2c] sm:$0xf]
    %v1138 = vld [vmem:[%s1125 + $0x30] sm:$0xf]
    %v1139 = vld [vmem:[%s1125 + $0x34] sm:$0xf]
    %v1140 = vld [vmem:[%s1125 + $0x38] sm:$0xf]
    %v1141 = vld [vmem:[%s1125 + $0x3c] sm:$0xf]
    %v1142 = vld [vmem:[%s1125 + $0x40] sm:$0xf]
    %v1143 = vld [vmem:[%s1125 + $0x44] sm:$0xf]
    %v1144 = vld [vmem:[%s1125 + $0x48] sm:$0xf]
    %v1145 = vld [vmem:[%s1125 + $0x4c] sm:$0xf]
    %v1146 = vld [vmem:[%s1125 + $0x50] sm:$0xf]
    %v1147 = vld [vmem:[%s1125 + $0x54] sm:$0xf]
    %v1148 = vld [vmem:[%s1125 + $0x58] sm:$0xf]
    %v1149 = vld [vmem:[%s1125 + $0x5c] sm:$0xf]
    %v1150 = vld [vmem:[%s1125 + $0x60] sm:$0xf]
    %v1151 = vld [vmem:[%s1125 + $0x64] sm:$0xf]
    %v1152 = vld [vmem:[%s1125 + $0x68] sm:$0xf]
    %v1153 = vld [vmem:[%s1125 + $0x6c] sm:$0xf]
    %v1154 = vld [vmem:[%s1125 + $0x70] sm:$0xf]
    %v1155 = vld [vmem:[%s1125 + $0x74] sm:$0xf]
    %v1156 = vld [vmem:[%s1125 + $0x78] sm:$0xf]
    %v1157 = vld [vmem:[%s1125 + $0x7c] sm:$0xf]
    %v1158 = vld [vmem:[%s1125 + $0x80] sm:$0xf]
    %v1159 = vld [vmem:[%s1125 + $0x84] sm:$0xf]
    %v1160 = vld [vmem:[%s1125 + $0x88] sm:$0xf]
    %v1161 = vld [vmem:[%s1125 + $0x8c] sm:$0xf]
    %v1162 = vld [vmem:[%s1125 + $0x90] sm:$0xf]
    %v1163 = vld [vmem:[%s1125 + $0x94] sm:$0xf]
    %v1164 = vld [vmem:[%s1125 + $0x98] sm:$0xf]
    %v1165 = vld [vmem:[%s1125 + $0x9c] sm:$0xf]
    %v1166 = vld [vmem:[%s1125 + $0xa0] sm:$0xf]
    %v1167 = vld [vmem:[%s1125 + $0xa4] sm:$0xf]
    %v1168 = vld [vmem:[%s1125 + $0xa8] sm:$0xf]
    %v1169 = vld [vmem:[%s1125 + $0xac] sm:$0xf]
    %v1170 = vld [vmem:[%s1125 + $0xb0] sm:$0xf]
    %v1171 = vld [vmem:[%s1125 + $0xb4] sm:$0xf]
    %v1172 = vld [vmem:[%s1125 + $0xb8] sm:$0xf]
    %v1173 = vld [vmem:[%s1125 + $0xbc] sm:$0xf]
    %v1174 = vld [vmem:[%s1125 + $0xc0] sm:$0xf]
    %v1175 = vld [vmem:[%s1125 + $0xc4] sm:$0xf]
    %v1176 = vld [vmem:[%s1125 + $0xc8] sm:$0xf]
    %v1177 = vld [vmem:[%s1125 + $0xcc] sm:$0xf]
    %v1178 = vld [vmem:[%s1125 + $0xd0] sm:$0xf]
    %v1179 = vld [vmem:[%s1125 + $0xd4] sm:$0xf]
    %v1180 = vld [vmem:[%s1125 + $0xd8] sm:$0xf]
    %v1181 = vld [vmem:[%s1125 + $0xdc] sm:$0xf]
    %v1182 = vld [vmem:[%s1125 + $0xe0] sm:$0xf]
    %v1183 = vld [vmem:[%s1125 + $0xe4] sm:$0xf]
    %v1184 = vld [vmem:[%s1125 + $0xe8] sm:$0xf]
    %v1185 = vld [vmem:[%s1125 + $0xec] sm:$0xf]
    %v1186 = vld [vmem:[%s1125 + $0xf0] sm:$0xf]
    %v1187 = vld [vmem:[%s1125 + $0xf4] sm:$0xf]
    %v1188 = vld [vmem:[%s1125 + $0xf8] sm:$0xf]
    %v1189 = vld [vmem:[%s1125 + $0xfc] sm:$0xf]
    %s1190 = scalar_lea.vmem %s2, 1
    %v1191 = vld [vmem:[%s1190] sm:$0x1]
    %v1193 = vlaneseq
    %v1194 = vshrl.u32 %v1193, 7
    %v1195 = vsub.s32 0, %v1194
    %v1196 = vrot.slane %v1191, %v1195
    %v1262 = vunpack.c.l.b16 %v1126
    %v1263 = vunpack.c.l.b16 %v1127
    %v1264 = vunpack.c.l.b16 %v1128
    %v1265 = vunpack.c.l.b16 %v1129
    %v1266 = vunpack.c.l.b16 %v1130
    %v1267 = vunpack.c.l.b16 %v1131
    %v1268 = vunpack.c.l.b16 %v1132
    %v1269 = vunpack.c.l.b16 %v1133
    %v1270 = vunpack.c.l.b16 %v1134
    %v1271 = vunpack.c.l.b16 %v1135
    %v1272 = vunpack.c.l.b16 %v1136
    %v1273 = vunpack.c.l.b16 %v1137
    %v1274 = vunpack.c.l.b16 %v1138
    %v1275 = vunpack.c.l.b16 %v1139
    %v1276 = vunpack.c.l.b16 %v1140
    %v1277 = vunpack.c.l.b16 %v1141
    %v1278 = vunpack.c.l.b16 %v1142
    %v1279 = vunpack.c.l.b16 %v1143
    %v1280 = vunpack.c.l.b16 %v1144
    %v1281 = vunpack.c.l.b16 %v1145
    %v1282 = vunpack.c.l.b16 %v1146
    %v1283 = vunpack.c.l.b16 %v1147
    %v1284 = vunpack.c.l.b16 %v1148
    %v1285 = vunpack.c.l.b16 %v1149
    %v1286 = vunpack.c.l.b16 %v1150
    %v1287 = vunpack.c.l.b16 %v1151
    %v1288 = vunpack.c.l.b16 %v1152
    %v1289 = vunpack.c.l.b16 %v1153
    %v1290 = vunpack.c.l.b16 %v1154
    %v1291 = vunpack.c.l.b16 %v1155
    %v1292 = vunpack.c.l.b16 %v1156
    %v1293 = vunpack.c.l.b16 %v1157
    %v1294 = vunpack.c.l.b16 %v1158
    %v1295 = vunpack.c.l.b16 %v1159
    %v1296 = vunpack.c.l.b16 %v1160
    %v1297 = vunpack.c.l.b16 %v1161
    %v1298 = vunpack.c.l.b16 %v1162
    %v1299 = vunpack.c.l.b16 %v1163
    %v1300 = vunpack.c.l.b16 %v1164
    %v1301 = vunpack.c.l.b16 %v1165
    %v1302 = vunpack.c.l.b16 %v1166
    %v1303 = vunpack.c.l.b16 %v1167
    %v1304 = vunpack.c.l.b16 %v1168
    %v1305 = vunpack.c.l.b16 %v1169
    %v1306 = vunpack.c.l.b16 %v1170
    %v1307 = vunpack.c.l.b16 %v1171
    %v1308 = vunpack.c.l.b16 %v1172
    %v1309 = vunpack.c.l.b16 %v1173
    %v1310 = vunpack.c.l.b16 %v1174
    %v1311 = vunpack.c.l.b16 %v1175
    %v1312 = vunpack.c.l.b16 %v1176
    %v1313 = vunpack.c.l.b16 %v1177
    %v1314 = vunpack.c.l.b16 %v1178
    %v1315 = vunpack.c.l.b16 %v1179
    %v1316 = vunpack.c.l.b16 %v1180
    %v1317 = vunpack.c.l.b16 %v1181
    %v1318 = vunpack.c.l.b16 %v1182
    %v1319 = vunpack.c.l.b16 %v1183
    %v1320 = vunpack.c.l.b16 %v1184
    %v1321 = vunpack.c.l.b16 %v1185
    %v1322 = vunpack.c.l.b16 %v1186
    %v1323 = vunpack.c.l.b16 %v1187
    %v1324 = vunpack.c.l.b16 %v1188
    %v1325 = vunpack.c.l.b16 %v1189
    %v1326 = vpack.c.b16 %v1263, %v1262
    %v1327 = vpack.c.b16 %v1265, %v1264
    %v1328 = vpack.c.b16 %v1267, %v1266
    %v1329 = vpack.c.b16 %v1269, %v1268
    %v1330 = vpack.c.b16 %v1271, %v1270
    %v1331 = vpack.c.b16 %v1273, %v1272
    %v1332 = vpack.c.b16 %v1275, %v1274
    %v1333 = vpack.c.b16 %v1277, %v1276
    %v1334 = vpack.c.b16 %v1279, %v1278
    %v1335 = vpack.c.b16 %v1281, %v1280
    %v1336 = vpack.c.b16 %v1283, %v1282
    %v1337 = vpack.c.b16 %v1285, %v1284
    %v1338 = vpack.c.b16 %v1287, %v1286
    %v1339 = vpack.c.b16 %v1289, %v1288
    %v1340 = vpack.c.b16 %v1291, %v1290
    %v1341 = vpack.c.b16 %v1293, %v1292
    %v1342 = vpack.c.b16 %v1295, %v1294
    %v1343 = vpack.c.b16 %v1297, %v1296
    %v1344 = vpack.c.b16 %v1299, %v1298
    %v1345 = vpack.c.b16 %v1301, %v1300
    %v1346 = vpack.c.b16 %v1303, %v1302
    %v1347 = vpack.c.b16 %v1305, %v1304
    %v1348 = vpack.c.b16 %v1307, %v1306
    %v1349 = vpack.c.b16 %v1309, %v1308
    %v1350 = vpack.c.b16 %v1311, %v1310
    %v1351 = vpack.c.b16 %v1313, %v1312
    %v1352 = vpack.c.b16 %v1315, %v1314
    %v1353 = vpack.c.b16 %v1317, %v1316
    %v1354 = vpack.c.b16 %v1319, %v1318
    %v1355 = vpack.c.b16 %v1321, %v1320
    %v1356 = vpack.c.b16 %v1323, %v1322
    %v1357 = vpack.c.b16 %v1325, %v1324
    %1390 = vmatprep.subr.bf16.mxu0 0
    %1391 = vmatpush1.bf16.msra.mxu0 %v1326
    %1392 = vmatprep.subr.bf16.mxu0 0
    %1393 = vmatpush1.bf16.msra.mxu0 %v1327
    %1394 = vmatprep.subr.bf16.mxu0 0
    %1395 = vmatpush1.bf16.msra.mxu0 %v1328
    %1396 = vmatprep.subr.bf16.mxu0 0
    %1397 = vmatpush1.bf16.msra.mxu0 %v1329
    %1398 = vmatprep.subr.bf16.mxu0 0
    %1399 = vmatpush1.bf16.msra.mxu0 %v1330
    %1400 = vmatprep.subr.bf16.mxu0 0
    %1401 = vmatpush1.bf16.msra.mxu0 %v1331
    %1402 = vmatprep.subr.bf16.mxu0 0
    %1403 = vmatpush1.bf16.msra.mxu0 %v1332
    %1404 = vmatprep.subr.bf16.mxu0 0
    %1405 = vmatpush1.bf16.msra.mxu0 %v1333
    %1406 = vmatprep.subr.bf16.mxu0 0
    %1407 = vmatpush1.bf16.msra.mxu0 %v1334
    %1408 = vmatprep.subr.bf16.mxu0 0
    %1409 = vmatpush1.bf16.msra.mxu0 %v1335
    %1410 = vmatprep.subr.bf16.mxu0 0
    %1411 = vmatpush1.bf16.msra.mxu0 %v1336
    %1412 = vmatprep.subr.bf16.mxu0 0
    %1413 = vmatpush1.bf16.msra.mxu0 %v1337
    %1414 = vmatprep.subr.bf16.mxu0 0
    %1415 = vmatpush1.bf16.msra.mxu0 %v1338
    %1416 = vmatprep.subr.bf16.mxu0 0
    %1417 = vmatpush1.bf16.msra.mxu0 %v1339
    %1418 = vmatprep.subr.bf16.mxu0 0
    %1419 = vmatpush1.bf16.msra.mxu0 %v1340
    %1420 = vmatprep.subr.bf16.mxu0 0
    %1421 = vmatpush1.bf16.msra.mxu0 %v1341
    %1422 = vmatprep.mubr.bf16.mxu0 %v1122
    %1423 = vmatmul.mubr.bf16.gmra.mrb[0].mxu0 %v1121
    %v1424 = vpop.f32.mrb[0].mxu0
    %v1425 = vadd.f32 %v1196, %v1424
    %v1426 = vpop.f32.mrb[0].mxu0
    %v1427 = vpop.f32.mrb[0].mxu0
    %v1428 = vadd.f32 %v1196, %v1427
    %v1429 = vpop.f32.mrb[0].mxu0
    %1430 = vdwg.mxu0
    %1431 = vmatprep.subr.bf16.mxu0 0
    %1432 = vmatpush1.bf16.msra.mxu0 %v1342
    %1433 = vmatprep.subr.bf16.mxu0 0
    %1434 = vmatpush1.bf16.msra.mxu0 %v1343
    %1435 = vmatprep.subr.bf16.mxu0 0
    %1436 = vmatpush1.bf16.msra.mxu0 %v1344
    %1437 = vmatprep.subr.bf16.mxu0 0
    %1438 = vmatpush1.bf16.msra.mxu0 %v1345
    %1439 = vmatprep.subr.bf16.mxu0 0
    %1440 = vmatpush1.bf16.msra.mxu0 %v1346
    %1441 = vmatprep.subr.bf16.mxu0 0
    %1442 = vmatpush1.bf16.msra.mxu0 %v1347
    %1443 = vmatprep.subr.bf16.mxu0 0
    %1444 = vmatpush1.bf16.msra.mxu0 %v1348
    %1445 = vmatprep.subr.bf16.mxu0 0
    %1446 = vmatpush1.bf16.msra.mxu0 %v1349
    %1447 = vmatprep.subr.bf16.mxu0 0
    %1448 = vmatpush1.bf16.msra.mxu0 %v1350
    %1449 = vmatprep.subr.bf16.mxu0 0
    %1450 = vmatpush1.bf16.msra.mxu0 %v1351
    %1451 = vmatprep.subr.bf16.mxu0 0
    %1452 = vmatpush1.bf16.msra.mxu0 %v1352
    %1453 = vmatprep.subr.bf16.mxu0 0
    %1454 = vmatpush1.bf16.msra.mxu0 %v1353
    %1455 = vmatprep.subr.bf16.mxu0 0
    %1456 = vmatpush1.bf16.msra.mxu0 %v1354
    %1457 = vmatprep.subr.bf16.mxu0 0
    %1458 = vmatpush1.bf16.msra.mxu0 %v1355
    %1459 = vmatprep.subr.bf16.mxu0 0
    %1460 = vmatpush1.bf16.msra.mxu0 %v1356
    %1461 = vmatprep.subr.bf16.mxu0 0
    %1462 = vmatpush1.bf16.msra.mxu0 %v1357
    %1463 = vmatprep.mubr.bf16.mxu0 %v1124
    %1464 = vmatmul.mubr.bf16.gmra.mrb[0].mxu0 %v1123
    %v1465 = vpop.f32.mrb[0].mxu0
    %v1466 = vadd.f32 %v1425, %v1465
    %v1467 = vpop.f32.mrb[0].mxu0
    %v1468 = vpop.f32.mrb[0].mxu0
    %v1469 = vadd.f32 %v1428, %v1468
    %v1470 = vpop.f32.mrb[0].mxu0
    %1471 = vdwg.mxu0
    %v1472 = vtanh.pop %v1466
    %v1473 = vtanh.pop %v1469
    %v1474 = vpack.c.bf16 %v1473, %v1472
    %s1475 = scalar_lea.vmem [#allocation7], 512
    %v1476 = vld [vmem:[%s1475] sm:$0xff]
    %v1477 = vld [vmem:[%s1475 + $0x8] sm:$0xff]
    %v1478 = vld [vmem:[%s1475 + $0x10] sm:$0xff]
    %v1479 = vld [vmem:[%s1475 + $0x18] sm:$0xff]
    %v1480 = vld [vmem:[%s1475 + $0x20] sm:$0xff]
    %v1481 = vld [vmem:[%s1475 + $0x28] sm:$0xff]
    %v1482 = vld [vmem:[%s1475 + $0x30] sm:$0xff]
    %v1483 = vld [vmem:[%s1475 + $0x38] sm:$0xff]
    %v1484 = vld [vmem:[%s1475 + $0x40] sm:$0xff]
    %v1485 = vld [vmem:[%s1475 + $0x48] sm:$0xff]
    %v1486 = vld [vmem:[%s1475 + $0x50] sm:$0xff]
    %v1487 = vld [vmem:[%s1475 + $0x58] sm:$0xff]
    %v1488 = vld [vmem:[%s1475 + $0x60] sm:$0xff]
    %v1489 = vld [vmem:[%s1475 + $0x68] sm:$0xff]
    %v1490 = vld [vmem:[%s1475 + $0x70] sm:$0xff]
    %v1491 = vld [vmem:[%s1475 + $0x78] sm:$0xff]
    %v1492 = vld [vmem:[%s1475 + $0x80] sm:$0xff]
    %v1493 = vld [vmem:[%s1475 + $0x88] sm:$0xff]
    %v1494 = vld [vmem:[%s1475 + $0x90] sm:$0xff]
    %v1495 = vld [vmem:[%s1475 + $0x98] sm:$0xff]
    %v1496 = vld [vmem:[%s1475 + $0xa0] sm:$0xff]
    %v1497 = vld [vmem:[%s1475 + $0xa8] sm:$0xff]
    %v1498 = vld [vmem:[%s1475 + $0xb0] sm:$0xff]
    %v1499 = vld [vmem:[%s1475 + $0xb8] sm:$0xff]
    %v1500 = vld [vmem:[%s1475 + $0xc0] sm:$0xff]
    %v1501 = vld [vmem:[%s1475 + $0xc8] sm:$0xff]
    %v1502 = vld [vmem:[%s1475 + $0xd0] sm:$0xff]
    %v1503 = vld [vmem:[%s1475 + $0xd8] sm:$0xff]
    %v1504 = vld [vmem:[%s1475 + $0xe0] sm:$0xff]
    %v1505 = vld [vmem:[%s1475 + $0xe8] sm:$0xff]
    %v1506 = vld [vmem:[%s1475 + $0xf0] sm:$0xff]
    %v1507 = vld [vmem:[%s1475 + $0xf8] sm:$0xff]
    %v1508 = vld [vmem:[%s1475 + $0x100] sm:$0xff]
    %v1509 = vld [vmem:[%s1475 + $0x108] sm:$0xff]
    %v1510 = vld [vmem:[%s1475 + $0x110] sm:$0xff]
    %v1511 = vld [vmem:[%s1475 + $0x118] sm:$0xff]
    %v1512 = vld [vmem:[%s1475 + $0x120] sm:$0xff]
    %v1513 = vld [vmem:[%s1475 + $0x128] sm:$0xff]
    %v1514 = vld [vmem:[%s1475 + $0x130] sm:$0xff]
    %v1515 = vld [vmem:[%s1475 + $0x138] sm:$0xff]
    %v1516 = vld [vmem:[%s1475 + $0x140] sm:$0xff]
    %v1517 = vld [vmem:[%s1475 + $0x148] sm:$0xff]
    %v1518 = vld [vmem:[%s1475 + $0x150] sm:$0xff]
    %v1519 = vld [vmem:[%s1475 + $0x158] sm:$0xff]
    %v1520 = vld [vmem:[%s1475 + $0x160] sm:$0xff]
    %v1521 = vld [vmem:[%s1475 + $0x168] sm:$0xff]
    %v1522 = vld [vmem:[%s1475 + $0x170] sm:$0xff]
    %v1523 = vld [vmem:[%s1475 + $0x178] sm:$0xff]
    %v1524 = vld [vmem:[%s1475 + $0x180] sm:$0xff]
    %v1525 = vld [vmem:[%s1475 + $0x188] sm:$0xff]
    %v1526 = vld [vmem:[%s1475 + $0x190] sm:$0xff]
    %v1527 = vld [vmem:[%s1475 + $0x198] sm:$0xff]
    %v1528 = vld [vmem:[%s1475 + $0x1a0] sm:$0xff]
    %v1529 = vld [vmem:[%s1475 + $0x1a8] sm:$0xff]
    %v1530 = vld [vmem:[%s1475 + $0x1b0] sm:$0xff]
    %v1531 = vld [vmem:[%s1475 + $0x1b8] sm:$0xff]
    %v1532 = vld [vmem:[%s1475 + $0x1c0] sm:$0xff]
    %v1533 = vld [vmem:[%s1475 + $0x1c8] sm:$0xff]
    %v1534 = vld [vmem:[%s1475 + $0x1d0] sm:$0xff]
    %v1535 = vld [vmem:[%s1475 + $0x1d8] sm:$0xff]
    %v1536 = vld [vmem:[%s1475 + $0x1e0] sm:$0xff]
    %v1537 = vld [vmem:[%s1475 + $0x1e8] sm:$0xff]
    %v1538 = vld [vmem:[%s1475 + $0x1f0] sm:$0xff]
    %v1539 = vld [vmem:[%s1475 + $0x1f8] sm:$0xff]
    %s1540 = scalar_lea.vmem [#allocation8], 8
    %v1541 = vld [vmem:[%s1540] sm:$0xff]
    %v1543 = vlaneseq
    %v1544 = vshrl.u32 %v1543, 7
    %v1545 = vsub.s32 0, %v1544
    %v1546 = vrot.slane %v1541, %v1545
    %v1547 = vlaneseq
    %v1548 = vshrl.u32 %v1547, 7
    %v1549 = vsub.s32 1, %v1548
    %v1550 = vrot.slane %v1541, %v1549
    %v1551 = vlaneseq
    %v1552 = vshrl.u32 %v1551, 7
    %v1553 = vsub.s32 2, %v1552
    %v1554 = vrot.slane %v1541, %v1553
    %v1555 = vlaneseq
    %v1556 = vshrl.u32 %v1555, 7
    %v1557 = vsub.s32 3, %v1556
    %v1558 = vrot.slane %v1541, %v1557
    %v1559 = vlaneseq
    %v1560 = vshrl.u32 %v1559, 7
    %v1561 = vsub.s32 4, %v1560
    %v1562 = vrot.slane %v1541, %v1561
    %v1563 = vlaneseq
    %v1564 = vshrl.u32 %v1563, 7
    %v1565 = vsub.s32 5, %v1564
    %v1566 = vrot.slane %v1541, %v1565
    %v1567 = vlaneseq
    %v1568 = vshrl.u32 %v1567, 7
    %v1569 = vsub.s32 6, %v1568
    %v1570 = vrot.slane %v1541, %v1569
    %v1571 = vlaneseq
    %v1572 = vshrl.u32 %v1571, 7
    %v1573 = vsub.s32 7, %v1572
    %v1574 = vrot.slane %v1541, %v1573
    %v1647 = vunpack.c.l.b16 %v1476
    %v1648 = vunpack.c.h.b16 %v1476
    %v1649 = vunpack.c.l.b16 %v1477
    %v1650 = vunpack.c.h.b16 %v1477
    %v1651 = vunpack.c.l.b16 %v1478
    %v1652 = vunpack.c.h.b16 %v1478
    %v1653 = vunpack.c.l.b16 %v1479
    %v1654 = vunpack.c.h.b16 %v1479
    %v1655 = vunpack.c.l.b16 %v1480
    %v1656 = vunpack.c.h.b16 %v1480
    %v1657 = vunpack.c.l.b16 %v1481
    %v1658 = vunpack.c.h.b16 %v1481
    %v1659 = vunpack.c.l.b16 %v1482
    %v1660 = vunpack.c.h.b16 %v1482
    %v1661 = vunpack.c.l.b16 %v1483
    %v1662 = vunpack.c.h.b16 %v1483
    %v1663 = vunpack.c.l.b16 %v1484
    %v1664 = vunpack.c.h.b16 %v1484
    %v1665 = vunpack.c.l.b16 %v1485
    %v1666 = vunpack.c.h.b16 %v1485
    %v1667 = vunpack.c.l.b16 %v1486
    %v1668 = vunpack.c.h.b16 %v1486
    %v1669 = vunpack.c.l.b16 %v1487
    %v1670 = vunpack.c.h.b16 %v1487
    %v1671 = vunpack.c.l.b16 %v1488
    %v1672 = vunpack.c.h.b16 %v1488
    %v1673 = vunpack.c.l.b16 %v1489
    %v1674 = vunpack.c.h.b16 %v1489
    %v1675 = vunpack.c.l.b16 %v1490
    %v1676 = vunpack.c.h.b16 %v1490
    %v1677 = vunpack.c.l.b16 %v1491
    %v1678 = vunpack.c.h.b16 %v1491
    %v1679 = vunpack.c.l.b16 %v1492
    %v1680 = vunpack.c.h.b16 %v1492
    %v1681 = vunpack.c.l.b16 %v1493
    %v1682 = vunpack.c.h.b16 %v1493
    %v1683 = vunpack.c.l.b16 %v1494
    %v1684 = vunpack.c.h.b16 %v1494
    %v1685 = vunpack.c.l.b16 %v1495
    %v1686 = vunpack.c.h.b16 %v1495
    %v1687 = vunpack.c.l.b16 %v1496
    %v1688 = vunpack.c.h.b16 %v1496
    %v1689 = vunpack.c.l.b16 %v1497
    %v1690 = vunpack.c.h.b16 %v1497
    %v1691 = vunpack.c.l.b16 %v1498
    %v1692 = vunpack.c.h.b16 %v1498
    %v1693 = vunpack.c.l.b16 %v1499
    %v1694 = vunpack.c.h.b16 %v1499
    %v1695 = vunpack.c.l.b16 %v1500
    %v1696 = vunpack.c.h.b16 %v1500
    %v1697 = vunpack.c.l.b16 %v1501
    %v1698 = vunpack.c.h.b16 %v1501
    %v1699 = vunpack.c.l.b16 %v1502
    %v1700 = vunpack.c.h.b16 %v1502
    %v1701 = vunpack.c.l.b16 %v1503
    %v1702 = vunpack.c.h.b16 %v1503
    %v1703 = vunpack.c.l.b16 %v1504
    %v1704 = vunpack.c.h.b16 %v1504
    %v1705 = vunpack.c.l.b16 %v1505
    %v1706 = vunpack.c.h.b16 %v1505
    %v1707 = vunpack.c.l.b16 %v1506
    %v1708 = vunpack.c.h.b16 %v1506
    %v1709 = vunpack.c.l.b16 %v1507
    %v1710 = vunpack.c.h.b16 %v1507
    %v1711 = vunpack.c.l.b16 %v1508
    %v1712 = vunpack.c.h.b16 %v1508
    %v1713 = vunpack.c.l.b16 %v1509
    %v1714 = vunpack.c.h.b16 %v1509
    %v1715 = vunpack.c.l.b16 %v1510
    %v1716 = vunpack.c.h.b16 %v1510
    %v1717 = vunpack.c.l.b16 %v1511
    %v1718 = vunpack.c.h.b16 %v1511
    %v1719 = vunpack.c.l.b16 %v1512
    %v1720 = vunpack.c.h.b16 %v1512
    %v1721 = vunpack.c.l.b16 %v1513
    %v1722 = vunpack.c.h.b16 %v1513
    %v1723 = vunpack.c.l.b16 %v1514
    %v1724 = vunpack.c.h.b16 %v1514
    %v1725 = vunpack.c.l.b16 %v1515
    %v1726 = vunpack.c.h.b16 %v1515
    %v1727 = vunpack.c.l.b16 %v1516
    %v1728 = vunpack.c.h.b16 %v1516
    %v1729 = vunpack.c.l.b16 %v1517
    %v1730 = vunpack.c.h.b16 %v1517
    %v1731 = vunpack.c.l.b16 %v1518
    %v1732 = vunpack.c.h.b16 %v1518
    %v1733 = vunpack.c.l.b16 %v1519
    %v1734 = vunpack.c.h.b16 %v1519
    %v1735 = vunpack.c.l.b16 %v1520
    %v1736 = vunpack.c.h.b16 %v1520
    %v1737 = vunpack.c.l.b16 %v1521
    %v1738 = vunpack.c.h.b16 %v1521
    %v1739 = vunpack.c.l.b16 %v1522
    %v1740 = vunpack.c.h.b16 %v1522
    %v1741 = vunpack.c.l.b16 %v1523
    %v1742 = vunpack.c.h.b16 %v1523
    %v1743 = vunpack.c.l.b16 %v1524
    %v1744 = vunpack.c.h.b16 %v1524
    %v1745 = vunpack.c.l.b16 %v1525
    %v1746 = vunpack.c.h.b16 %v1525
    %v1747 = vunpack.c.l.b16 %v1526
    %v1748 = vunpack.c.h.b16 %v1526
    %v1749 = vunpack.c.l.b16 %v1527
    %v1750 = vunpack.c.h.b16 %v1527
    %v1751 = vunpack.c.l.b16 %v1528
    %v1752 = vunpack.c.h.b16 %v1528
    %v1753 = vunpack.c.l.b16 %v1529
    %v1754 = vunpack.c.h.b16 %v1529
    %v1755 = vunpack.c.l.b16 %v1530
    %v1756 = vunpack.c.h.b16 %v1530
    %v1757 = vunpack.c.l.b16 %v1531
    %v1758 = vunpack.c.h.b16 %v1531
    %v1759 = vunpack.c.l.b16 %v1532
    %v1760 = vunpack.c.h.b16 %v1532
    %v1761 = vunpack.c.l.b16 %v1533
    %v1762 = vunpack.c.h.b16 %v1533
    %v1763 = vunpack.c.l.b16 %v1534
    %v1764 = vunpack.c.h.b16 %v1534
    %v1765 = vunpack.c.l.b16 %v1535
    %v1766 = vunpack.c.h.b16 %v1535
    %v1767 = vunpack.c.l.b16 %v1536
    %v1768 = vunpack.c.h.b16 %v1536
    %v1769 = vunpack.c.l.b16 %v1537
    %v1770 = vunpack.c.h.b16 %v1537
    %v1771 = vunpack.c.l.b16 %v1538
    %v1772 = vunpack.c.h.b16 %v1538
    %v1773 = vunpack.c.l.b16 %v1539
    %v1774 = vunpack.c.h.b16 %v1539
    %v1775 = vpack.c.b16 %v1655, %v1647
    %v1776 = vpack.c.b16 %v1656, %v1648
    %v1777 = vpack.c.b16 %v1657, %v1649
    %v1778 = vpack.c.b16 %v1658, %v1650
    %v1779 = vpack.c.b16 %v1659, %v1651
    %v1780 = vpack.c.b16 %v1660, %v1652
    %v1781 = vpack.c.b16 %v1661, %v1653
    %v1782 = vpack.c.b16 %v1662, %v1654
    %v1783 = vpack.c.b16 %v1671, %v1663
    %v1784 = vpack.c.b16 %v1672, %v1664
    %v1785 = vpack.c.b16 %v1673, %v1665
    %v1786 = vpack.c.b16 %v1674, %v1666
    %v1787 = vpack.c.b16 %v1675, %v1667
    %v1788 = vpack.c.b16 %v1676, %v1668
    %v1789 = vpack.c.b16 %v1677, %v1669
    %v1790 = vpack.c.b16 %v1678, %v1670
    %v1791 = vpack.c.b16 %v1687, %v1679
    %v1792 = vpack.c.b16 %v1688, %v1680
    %v1793 = vpack.c.b16 %v1689, %v1681
    %v1794 = vpack.c.b16 %v1690, %v1682
    %v1795 = vpack.c.b16 %v1691, %v1683
    %v1796 = vpack.c.b16 %v1692, %v1684
    %v1797 = vpack.c.b16 %v1693, %v1685
    %v1798 = vpack.c.b16 %v1694, %v1686
    %v1799 = vpack.c.b16 %v1703, %v1695
    %v1800 = vpack.c.b16 %v1704, %v1696
    %v1801 = vpack.c.b16 %v1705, %v1697
    %v1802 = vpack.c.b16 %v1706, %v1698
    %v1803 = vpack.c.b16 %v1707, %v1699
    %v1804 = vpack.c.b16 %v1708, %v1700
    %v1805 = vpack.c.b16 %v1709, %v1701
    %v1806 = vpack.c.b16 %v1710, %v1702
    %v1807 = vpack.c.b16 %v1719, %v1711
    %v1808 = vpack.c.b16 %v1720, %v1712
    %v1809 = vpack.c.b16 %v1721, %v1713
    %v1810 = vpack.c.b16 %v1722, %v1714
    %v1811 = vpack.c.b16 %v1723, %v1715
    %v1812 = vpack.c.b16 %v1724, %v1716
    %v1813 = vpack.c.b16 %v1725, %v1717
    %v1814 = vpack.c.b16 %v1726, %v1718
    %v1815 = vpack.c.b16 %v1735, %v1727
    %v1816 = vpack.c.b16 %v1736, %v1728
    %v1817 = vpack.c.b16 %v1737, %v1729
    %v1818 = vpack.c.b16 %v1738, %v1730
    %v1819 = vpack.c.b16 %v1739, %v1731
    %v1820 = vpack.c.b16 %v1740, %v1732
    %v1821 = vpack.c.b16 %v1741, %v1733
    %v1822 = vpack.c.b16 %v1742, %v1734
    %v1823 = vpack.c.b16 %v1751, %v1743
    %v1824 = vpack.c.b16 %v1752, %v1744
    %v1825 = vpack.c.b16 %v1753, %v1745
    %v1826 = vpack.c.b16 %v1754, %v1746
    %v1827 = vpack.c.b16 %v1755, %v1747
    %v1828 = vpack.c.b16 %v1756, %v1748
    %v1829 = vpack.c.b16 %v1757, %v1749
    %v1830 = vpack.c.b16 %v1758, %v1750
    %v1831 = vpack.c.b16 %v1767, %v1759
    %v1832 = vpack.c.b16 %v1768, %v1760
    %v1833 = vpack.c.b16 %v1769, %v1761
    %v1834 = vpack.c.b16 %v1770, %v1762
    %v1835 = vpack.c.b16 %v1771, %v1763
    %v1836 = vpack.c.b16 %v1772, %v1764
    %v1837 = vpack.c.b16 %v1773, %v1765
    %v1838 = vpack.c.b16 %v1774, %v1766
    %1903 = vmatprep.subr.bf16.mxu0 %v1776
    %1904 = vmatpush1.bf16.msra.mxu0 %v1775
    %1905 = vmatprep.subr.bf16.mxu0 %v1784
    %1906 = vmatpush1.bf16.msra.mxu0 %v1783
    %1907 = vmatprep.subr.bf16.mxu0 %v1792
    %1908 = vmatpush1.bf16.msra.mxu0 %v1791
    %1909 = vmatprep.subr.bf16.mxu0 %v1800
    %1910 = vmatpush1.bf16.msra.mxu0 %v1799
    %1911 = vmatprep.subr.bf16.mxu0 %v1808
    %1912 = vmatpush1.bf16.msra.mxu0 %v1807
    %1913 = vmatprep.subr.bf16.mxu0 %v1816
    %1914 = vmatpush1.bf16.msra.mxu0 %v1815
    %1915 = vmatprep.subr.bf16.mxu0 %v1824
    %1916 = vmatpush1.bf16.msra.mxu0 %v1823
    %1917 = vmatprep.subr.bf16.mxu0 %v1832
    %1918 = vmatpush1.bf16.msra.mxu0 %v1831
    %1919 = vmatprep.subr.bf16.mxu0 0
    %1920 = vmatpush1.bf16.msra.mxu0 0
    %1921 = vmatprep.subr.bf16.mxu0 0
    %1922 = vmatpush1.bf16.msra.mxu0 0
    %1923 = vmatprep.subr.bf16.mxu0 0
    %1924 = vmatpush1.bf16.msra.mxu0 0
    %1925 = vmatprep.subr.bf16.mxu0 0
    %1926 = vmatpush1.bf16.msra.mxu0 0
    %1927 = vmatprep.subr.bf16.mxu0 0
    %1928 = vmatpush1.bf16.msra.mxu0 0
    %1929 = vmatprep.subr.bf16.mxu0 0
    %1930 = vmatpush1.bf16.msra.mxu0 0
    %1931 = vmatprep.subr.bf16.mxu0 0
    %1932 = vmatpush1.bf16.msra.mxu0 0
    %1933 = vmatprep.subr.bf16.mxu0 0
    %1934 = vmatpush1.bf16.msra.mxu0 0
    %1935 = vmatprep.mubr.bf16.mxu0 0
    %1936 = vmatmul.mubr.bf16.gmra.mrb[0].mxu0 %v1474
    %v1937 = vpop.f32.mrb[0].mxu0
    %v1938 = vadd.f32 %v1546, %v1937
    %v1939 = vpop.f32.mrb[0].mxu0
    %v1940 = vadd.f32 %v1550, %v1939
    %v1941 = vpop.f32.mrb[0].mxu0
    %v1942 = vadd.f32 %v1546, %v1941
    %v1943 = vpop.f32.mrb[0].mxu0
    %v1944 = vadd.f32 %v1550, %v1943
    %1945 = vdwg.mxu0
    %1946 = vmatprep.subr.bf16.mxu0 %v1778
    %1947 = vmatpush1.bf16.msra.mxu0 %v1777
    %1948 = vmatprep.subr.bf16.mxu0 %v1786
    %1949 = vmatpush1.bf16.msra.mxu0 %v1785
    %1950 = vmatprep.subr.bf16.mxu0 %v1794
    %1951 = vmatpush1.bf16.msra.mxu0 %v1793
    %1952 = vmatprep.subr.bf16.mxu0 %v1802
    %1953 = vmatpush1.bf16.msra.mxu0 %v1801
    %1954 = vmatprep.subr.bf16.mxu0 %v1810
    %1955 = vmatpush1.bf16.msra.mxu0 %v1809
    %1956 = vmatprep.subr.bf16.mxu0 %v1818
    %1957 = vmatpush1.bf16.msra.mxu0 %v1817
    %1958 = vmatprep.subr.bf16.mxu0 %v1826
    %1959 = vmatpush1.bf16.msra.mxu0 %v1825
    %1960 = vmatprep.subr.bf16.mxu0 %v1834
    %1961 = vmatpush1.bf16.msra.mxu0 %v1833
    %1962 = vmatprep.subr.bf16.mxu0 0
    %1963 = vmatpush1.bf16.msra.mxu0 0
    %1964 = vmatprep.subr.bf16.mxu0 0
    %1965 = vmatpush1.bf16.msra.mxu0 0
    %1966 = vmatprep.subr.bf16.mxu0 0
    %1967 = vmatpush1.bf16.msra.mxu0 0
    %1968 = vmatprep.subr.bf16.mxu0 0
    %1969 = vmatpush1.bf16.msra.mxu0 0
    %1970 = vmatprep.subr.bf16.mxu0 0
    %1971 = vmatpush1.bf16.msra.mxu0 0
    %1972 = vmatprep.subr.bf16.mxu0 0
    %1973 = vmatpush1.bf16.msra.mxu0 0
    %1974 = vmatprep.subr.bf16.mxu0 0
    %1975 = vmatpush1.bf16.msra.mxu0 0
    %1976 = vmatprep.subr.bf16.mxu0 0
    %1977 = vmatpush1.bf16.msra.mxu0 0
    %1978 = vmatprep.mubr.bf16.mxu0 0
    %1979 = vmatmul.mubr.bf16.gmra.mrb[0].mxu0 %v1474
    %v1980 = vpop.f32.mrb[0].mxu0
    %v1981 = vadd.f32 %v1554, %v1980
    %v1982 = vpop.f32.mrb[0].mxu0
    %v1983 = vadd.f32 %v1558, %v1982
    %v1984 = vpop.f32.mrb[0].mxu0
    %v1985 = vadd.f32 %v1554, %v1984
    %v1986 = vpop.f32.mrb[0].mxu0
    %v1987 = vadd.f32 %v1558, %v1986
    %1988 = vdwg.mxu0
    %1989 = vmatprep.subr.bf16.mxu0 %v1780
    %1990 = vmatpush1.bf16.msra.mxu0 %v1779
    %1991 = vmatprep.subr.bf16.mxu0 %v1788
    %1992 = vmatpush1.bf16.msra.mxu0 %v1787
    %1993 = vmatprep.subr.bf16.mxu0 %v1796
    %1994 = vmatpush1.bf16.msra.mxu0 %v1795
    %1995 = vmatprep.subr.bf16.mxu0 %v1804
    %1996 = vmatpush1.bf16.msra.mxu0 %v1803
    %1997 = vmatprep.subr.bf16.mxu0 %v1812
    %1998 = vmatpush1.bf16.msra.mxu0 %v1811
    %1999 = vmatprep.subr.bf16.mxu0 %v1820
    %2000 = vmatpush1.bf16.msra.mxu0 %v1819
    %2001 = vmatprep.subr.bf16.mxu0 %v1828
    %2002 = vmatpush1.bf16.msra.mxu0 %v1827
    %2003 = vmatprep.subr.bf16.mxu0 %v1836
    %2004 = vmatpush1.bf16.msra.mxu0 %v1835
    %2005 = vmatprep.subr.bf16.mxu0 0
    %2006 = vmatpush1.bf16.msra.mxu0 0
    %2007 = vmatprep.subr.bf16.mxu0 0
    %2008 = vmatpush1.bf16.msra.mxu0 0
    %2009 = vmatprep.subr.bf16.mxu0 0
    %2010 = vmatpush1.bf16.msra.mxu0 0
    %2011 = vmatprep.subr.bf16.mxu0 0
    %2012 = vmatpush1.bf16.msra.mxu0 0
    %2013 = vmatprep.subr.bf16.mxu0 0
    %2014 = vmatpush1.bf16.msra.mxu0 0
    %2015 = vmatprep.subr.bf16.mxu0 0
    %2016 = vmatpush1.bf16.msra.mxu0 0
    %2017 = vmatprep.subr.bf16.mxu0 0
    %2018 = vmatpush1.bf16.msra.mxu0 0
    %2019 = vmatprep.subr.bf16.mxu0 0
    %2020 = vmatpush1.bf16.msra.mxu0 0
    %2021 = vmatprep.mubr.bf16.mxu0 0
    %2022 = vmatmul.mubr.bf16.gmra.mrb[0].mxu0 %v1474
    %v2023 = vpop.f32.mrb[0].mxu0
    %v2024 = vadd.f32 %v1562, %v2023
    %v2025 = vpop.f32.mrb[0].mxu0
    %v2026 = vadd.f32 %v1566, %v2025
    %v2027 = vpop.f32.mrb[0].mxu0
    %v2028 = vadd.f32 %v1562, %v2027
    %v2029 = vpop.f32.mrb[0].mxu0
    %v2030 = vadd.f32 %v1566, %v2029
    %2031 = vdwg.mxu0
    %2032 = vmatprep.subr.bf16.mxu0 %v1782
    %2033 = vmatpush1.bf16.msra.mxu0 %v1781
    %2034 = vmatprep.subr.bf16.mxu0 %v1790
    %2035 = vmatpush1.bf16.msra.mxu0 %v1789
    %2036 = vmatprep.subr.bf16.mxu0 %v1798
    %2037 = vmatpush1.bf16.msra.mxu0 %v1797
    %2038 = vmatprep.subr.bf16.mxu0 %v1806
    %2039 = vmatpush1.bf16.msra.mxu0 %v1805
    %2040 = vmatprep.subr.bf16.mxu0 %v1814
    %2041 = vmatpush1.bf16.msra.mxu0 %v1813
    %2042 = vmatprep.subr.bf16.mxu0 %v1822
    %2043 = vmatpush1.bf16.msra.mxu0 %v1821
    %2044 = vmatprep.subr.bf16.mxu0 %v1830
    %2045 = vmatpush1.bf16.msra.mxu0 %v1829
    %2046 = vmatprep.subr.bf16.mxu0 %v1838
    %2047 = vmatpush1.bf16.msra.mxu0 %v1837
    %2048 = vmatprep.subr.bf16.mxu0 0
    %2049 = vmatpush1.bf16.msra.mxu0 0
    %2050 = vmatprep.subr.bf16.mxu0 0
    %2051 = vmatpush1.bf16.msra.mxu0 0
    %2052 = vmatprep.subr.bf16.mxu0 0
    %2053 = vmatpush1.bf16.msra.mxu0 0
    %2054 = vmatprep.subr.bf16.mxu0 0
    %2055 = vmatpush1.bf16.msra.mxu0 0
    %2056 = vmatprep.subr.bf16.mxu0 0
    %2057 = vmatpush1.bf16.msra.mxu0 0
    %2058 = vmatprep.subr.bf16.mxu0 0
    %2059 = vmatpush1.bf16.msra.mxu0 0
    %2060 = vmatprep.subr.bf16.mxu0 0
    %2061 = vmatpush1.bf16.msra.mxu0 0
    %2062 = vmatprep.subr.bf16.mxu0 0
    %2063 = vmatpush1.bf16.msra.mxu0 0
    %2064 = vmatprep.mubr.bf16.mxu0 0
    %2065 = vmatmul.mubr.bf16.gmra.mrb[0].mxu0 %v1474
    %v2066 = vpop.f32.mrb[0].mxu0
    %v2067 = vadd.f32 %v1570, %v2066
    %v2068 = vpop.f32.mrb[0].mxu0
    %v2069 = vadd.f32 %v1574, %v2068
    %v2070 = vpop.f32.mrb[0].mxu0
    %v2071 = vadd.f32 %v1570, %v2070
    %v2072 = vpop.f32.mrb[0].mxu0
    %v2073 = vadd.f32 %v1574, %v2072
    %2074 = vdwg.mxu0
    %v2075 = vtanh.pop %v1938
    %v2076 = vtanh.pop %v1940
    %v2077 = vtanh.pop %v1981
    %v2078 = vtanh.pop %v1983
    %v2079 = vtanh.pop %v1942
    %v2080 = vtanh.pop %v1944
    %v2081 = vtanh.pop %v1985
    %v2082 = vtanh.pop %v1987
    %v2083 = vmul.f32 %v2075, 1.442695
    %v2084 = vpow.pop %v2083
    %v2085 = vmul.f32 %v2076, 1.442695
    %v2086 = vpow.pop %v2085
    %v2087 = vmul.f32 %v2077, 1.442695
    %v2088 = vpow.pop %v2087
    %v2089 = vmul.f32 %v2078, 1.442695
    %v2090 = vpow.pop %v2089
    %v2091 = vmul.f32 %v2079, 1.442695
    %v2092 = vpow.pop %v2091
    %v2093 = vmul.f32 %v2080, 1.442695
    %v2094 = vpow.pop %v2093
    %v2095 = vmul.f32 %v2081, 1.442695
    %v2096 = vpow.pop %v2095
    %v2097 = vmul.f32 %v2082, 1.442695
    %v2098 = vpow.pop %v2097
    %v2099 = vmul.f32 %v83, %v2084
    %v2100 = vmul.f32 %v84, %v2086
    %v2101 = vmul.f32 %v85, %v2088
    %v2102 = vmul.f32 %v86, %v2090
    %v2103 = vmul.f32 %v87, %v2092
    %v2104 = vmul.f32 %v88, %v2094
    %v2105 = vmul.f32 %v89, %v2096
    %v2106 = vmul.f32 %v90, %v2098
    %v2107 = vadd.f32 %v2099, %v2024
    %v2108 = vadd.f32 %v2100, %v2026
    %v2109 = vadd.f32 %v2101, %v2067
    %v2110 = vadd.f32 %v2102, %v2069
    %v2111 = vadd.f32 %v2103, %v2028
    %v2112 = vadd.f32 %v2104, %v2030
    %v2113 = vadd.f32 %v2105, %v2071
    %v2114 = vadd.f32 %v2106, %v2073
    %v2115 = vadd.f32 %v2075, %v2076
    %v2116 = vadd.f32 %v2115, %v2077
    %v2117 = vadd.f32 %v2116, %v2078
    %2118 = vadd.xlane.f32.xlu0 %v2117
    %v2119 = vpop.xlane.xlu0 %2118
    %v2120 = vadd.f32 %v2079, %v2080
    %v2121 = vadd.f32 %v2120, %v2081
    %v2122 = vadd.f32 %v2121, %v2082
    %2123 = vadd.xlane.f32.xlu0 %v2122
    %v2124 = vpop.xlane.xlu0 %2123
    %v2125 = vadd.f32 %v1119, %v2119
    %v2126 = vadd.f32 %v1120, %v2124
    %v2127 = vpack.c.bf16 %v2111, %v2107
    %v2128 = vpack.c.bf16 %v2112, %v2108
    %v2129 = vpack.c.bf16 %v2113, %v2109
    %v2130 = vpack.c.bf16 %v2114, %v2110
    %s2131 = scalar_lea.vmem [#allocation5], 512
    %v2132 = vld [vmem:[%s2131] sm:$0xf]
    %v2133 = vld [vmem:[%s2131 + $0x4] sm:$0xf]
    %v2134 = vld [vmem:[%s2131 + $0x8] sm:$0xf]
    %v2135 = vld [vmem:[%s2131 + $0xc] sm:$0xf]
    %v2136 = vld [vmem:[%s2131 + $0x10] sm:$0xf]
    %v2137 = vld [vmem:[%s2131 + $0x14] sm:$0xf]
    %v2138 = vld [vmem:[%s2131 + $0x18] sm:$0xf]
    %v2139 = vld [vmem:[%s2131 + $0x1c] sm:$0xf]
    %v2140 = vld [vmem:[%s2131 + $0x20] sm:$0xf]
    %v2141 = vld [vmem:[%s2131 + $0x24] sm:$0xf]
    %v2142 = vld [vmem:[%s2131 + $0x28] sm:$0xf]
    %v2143 = vld [vmem:[%s2131 + $0x2c] sm:$0xf]
    %v2144 = vld [vmem:[%s2131 + $0x30] sm:$0xf]
    %v2145 = vld [vmem:[%s2131 + $0x34] sm:$0xf]
    %v2146 = vld [vmem:[%s2131 + $0x38] sm:$0xf]
    %v2147 = vld [vmem:[%s2131 + $0x3c] sm:$0xf]
    %v2148 = vld [vmem:[%s2131 + $0x40] sm:$0xf]
    %v2149 = vld [vmem:[%s2131 + $0x44] sm:$0xf]
    %v2150 = vld [vmem:[%s2131 + $0x48] sm:$0xf]
    %v2151 = vld [vmem:[%s2131 + $0x4c] sm:$0xf]
    %v2152 = vld [vmem:[%s2131 + $0x50] sm:$0xf]
    %v2153 = vld [vmem:[%s2131 + $0x54] sm:$0xf]
    %v2154 = vld [vmem:[%s2131 + $0x58] sm:$0xf]
    %v2155 = vld [vmem:[%s2131 + $0x5c] sm:$0xf]
    %v2156 = vld [vmem:[%s2131 + $0x60] sm:$0xf]
    %v2157 = vld [vmem:[%s2131 + $0x64] sm:$0xf]
    %v2158 = vld [vmem:[%s2131 + $0x68] sm:$0xf]
    %v2159 = vld [vmem:[%s2131 + $0x6c] sm:$0xf]
    %v2160 = vld [vmem:[%s2131 + $0x70] sm:$0xf]
    %v2161 = vld [vmem:[%s2131 + $0x74] sm:$0xf]
    %v2162 = vld [vmem:[%s2131 + $0x78] sm:$0xf]
    %v2163 = vld [vmem:[%s2131 + $0x7c] sm:$0xf]
    %v2164 = vld [vmem:[%s2131 + $0x80] sm:$0xf]
    %v2165 = vld [vmem:[%s2131 + $0x84] sm:$0xf]
    %v2166 = vld [vmem:[%s2131 + $0x88] sm:$0xf]
    %v2167 = vld [vmem:[%s2131 + $0x8c] sm:$0xf]
    %v2168 = vld [vmem:[%s2131 + $0x90] sm:$0xf]
    %v2169 = vld [vmem:[%s2131 + $0x94] sm:$0xf]
    %v2170 = vld [vmem:[%s2131 + $0x98] sm:$0xf]
    %v2171 = vld [vmem:[%s2131 + $0x9c] sm:$0xf]
    %v2172 = vld [vmem:[%s2131 + $0xa0] sm:$0xf]
    %v2173 = vld [vmem:[%s2131 + $0xa4] sm:$0xf]
    %v2174 = vld [vmem:[%s2131 + $0xa8] sm:$0xf]
    %v2175 = vld [vmem:[%s2131 + $0xac] sm:$0xf]
    %v2176 = vld [vmem:[%s2131 + $0xb0] sm:$0xf]
    %v2177 = vld [vmem:[%s2131 + $0xb4] sm:$0xf]
    %v2178 = vld [vmem:[%s2131 + $0xb8] sm:$0xf]
    %v2179 = vld [vmem:[%s2131 + $0xbc] sm:$0xf]
    %v2180 = vld [vmem:[%s2131 + $0xc0] sm:$0xf]
    %v2181 = vld [vmem:[%s2131 + $0xc4] sm:$0xf]
    %v2182 = vld [vmem:[%s2131 + $0xc8] sm:$0xf]
    %v2183 = vld [vmem:[%s2131 + $0xcc] sm:$0xf]
    %v2184 = vld [vmem:[%s2131 + $0xd0] sm:$0xf]
    %v2185 = vld [vmem:[%s2131 + $0xd4] sm:$0xf]
    %v2186 = vld [vmem:[%s2131 + $0xd8] sm:$0xf]
    %v2187 = vld [vmem:[%s2131 + $0xdc] sm:$0xf]
    %v2188 = vld [vmem:[%s2131 + $0xe0] sm:$0xf]
    %v2189 = vld [vmem:[%s2131 + $0xe4] sm:$0xf]
    %v2190 = vld [vmem:[%s2131 + $0xe8] sm:$0xf]
    %v2191 = vld [vmem:[%s2131 + $0xec] sm:$0xf]
    %v2192 = vld [vmem:[%s2131 + $0xf0] sm:$0xf]
    %v2193 = vld [vmem:[%s2131 + $0xf4] sm:$0xf]
    %v2194 = vld [vmem:[%s2131 + $0xf8] sm:$0xf]
    %v2195 = vld [vmem:[%s2131 + $0xfc] sm:$0xf]
    %s2196 = scalar_lea.vmem %s2, 2
    %v2197 = vld [vmem:[%s2196] sm:$0x1]
    %v2199 = vlaneseq
    %v2200 = vshrl.u32 %v2199, 7
    %v2201 = vsub.s32 0, %v2200
    %v2202 = vrot.slane %v2197, %v2201
    %v2268 = vunpack.c.l.b16 %v2132
    %v2269 = vunpack.c.l.b16 %v2133
    %v2270 = vunpack.c.l.b16 %v2134
    %v2271 = vunpack.c.l.b16 %v2135
    %v2272 = vunpack.c.l.b16 %v2136
    %v2273 = vunpack.c.l.b16 %v2137
    %v2274 = vunpack.c.l.b16 %v2138
    %v2275 = vunpack.c.l.b16 %v2139
    %v2276 = vunpack.c.l.b16 %v2140
    %v2277 = vunpack.c.l.b16 %v2141
    %v2278 = vunpack.c.l.b16 %v2142
    %v2279 = vunpack.c.l.b16 %v2143
    %v2280 = vunpack.c.l.b16 %v2144
    %v2281 = vunpack.c.l.b16 %v2145
    %v2282 = vunpack.c.l.b16 %v2146
    %v2283 = vunpack.c.l.b16 %v2147
    %v2284 = vunpack.c.l.b16 %v2148
    %v2285 = vunpack.c.l.b16 %v2149
    %v2286 = vunpack.c.l.b16 %v2150
    %v2287 = vunpack.c.l.b16 %v2151
    %v2288 = vunpack.c.l.b16 %v2152
    %v2289 = vunpack.c.l.b16 %v2153
    %v2290 = vunpack.c.l.b16 %v2154
    %v2291 = vunpack.c.l.b16 %v2155
    %v2292 = vunpack.c.l.b16 %v2156
    %v2293 = vunpack.c.l.b16 %v2157
    %v2294 = vunpack.c.l.b16 %v2158
    %v2295 = vunpack.c.l.b16 %v2159
    %v2296 = vunpack.c.l.b16 %v2160
    %v2297 = vunpack.c.l.b16 %v2161
    %v2298 = vunpack.c.l.b16 %v2162
    %v2299 = vunpack.c.l.b16 %v2163
    %v2300 = vunpack.c.l.b16 %v2164
    %v2301 = vunpack.c.l.b16 %v2165
    %v2302 = vunpack.c.l.b16 %v2166
    %v2303 = vunpack.c.l.b16 %v2167
    %v2304 = vunpack.c.l.b16 %v2168
    %v2305 = vunpack.c.l.b16 %v2169
    %v2306 = vunpack.c.l.b16 %v2170
    %v2307 = vunpack.c.l.b16 %v2171
    %v2308 = vunpack.c.l.b16 %v2172
    %v2309 = vunpack.c.l.b16 %v2173
    %v2310 = vunpack.c.l.b16 %v2174
    %v2311 = vunpack.c.l.b16 %v2175
    %v2312 = vunpack.c.l.b16 %v2176
    %v2313 = vunpack.c.l.b16 %v2177
    %v2314 = vunpack.c.l.b16 %v2178
    %v2315 = vunpack.c.l.b16 %v2179
    %v2316 = vunpack.c.l.b16 %v2180
    %v2317 = vunpack.c.l.b16 %v2181
    %v2318 = vunpack.c.l.b16 %v2182
    %v2319 = vunpack.c.l.b16 %v2183
    %v2320 = vunpack.c.l.b16 %v2184
    %v2321 = vunpack.c.l.b16 %v2185
    %v2322 = vunpack.c.l.b16 %v2186
    %v2323 = vunpack.c.l.b16 %v2187
    %v2324 = vunpack.c.l.b16 %v2188
    %v2325 = vunpack.c.l.b16 %v2189
    %v2326 = vunpack.c.l.b16 %v2190
    %v2327 = vunpack.c.l.b16 %v2191
    %v2328 = vunpack.c.l.b16 %v2192
    %v2329 = vunpack.c.l.b16 %v2193
    %v2330 = vunpack.c.l.b16 %v2194
    %v2331 = vunpack.c.l.b16 %v2195
    %v2332 = vpack.c.b16 %v2269, %v2268
    %v2333 = vpack.c.b16 %v2271, %v2270
    %v2334 = vpack.c.b16 %v2273, %v2272
    %v2335 = vpack.c.b16 %v2275, %v2274
    %v2336 = vpack.c.b16 %v2277, %v2276
    %v2337 = vpack.c.b16 %v2279, %v2278
    %v2338 = vpack.c.b16 %v2281, %v2280
    %v2339 = vpack.c.b16 %v2283, %v2282
    %v2340 = vpack.c.b16 %v2285, %v2284
    %v2341 = vpack.c.b16 %v2287, %v2286
    %v2342 = vpack.c.b16 %v2289, %v2288
    %v2343 = vpack.c.b16 %v2291, %v2290
    %v2344 = vpack.c.b16 %v2293, %v2292
    %v2345 = vpack.c.b16 %v2295, %v2294
    %v2346 = vpack.c.b16 %v2297, %v2296
    %v2347 = vpack.c.b16 %v2299, %v2298
    %v2348 = vpack.c.b16 %v2301, %v2300
    %v2349 = vpack.c.b16 %v2303, %v2302
    %v2350 = vpack.c.b16 %v2305, %v2304
    %v2351 = vpack.c.b16 %v2307, %v2306
    %v2352 = vpack.c.b16 %v2309, %v2308
    %v2353 = vpack.c.b16 %v2311, %v2310
    %v2354 = vpack.c.b16 %v2313, %v2312
    %v2355 = vpack.c.b16 %v2315, %v2314
    %v2356 = vpack.c.b16 %v2317, %v2316
    %v2357 = vpack.c.b16 %v2319, %v2318
    %v2358 = vpack.c.b16 %v2321, %v2320
    %v2359 = vpack.c.b16 %v2323, %v2322
    %v2360 = vpack.c.b16 %v2325, %v2324
    %v2361 = vpack.c.b16 %v2327, %v2326
    %v2362 = vpack.c.b16 %v2329, %v2328
    %v2363 = vpack.c.b16 %v2331, %v2330
    %2396 = vmatprep.subr.bf16.mxu0 0
    %2397 = vmatpush1.bf16.msra.mxu0 %v2332
    %2398 = vmatprep.subr.bf16.mxu0 0
    %2399 = vmatpush1.bf16.msra.mxu0 %v2333
    %2400 = vmatprep.subr.bf16.mxu0 0
    %2401 = vmatpush1.bf16.msra.mxu0 %v2334
    %2402 = vmatprep.subr.bf16.mxu0 0
    %2403 = vmatpush1.bf16.msra.mxu0 %v2335
    %2404 = vmatprep.subr.bf16.mxu0 0
    %2405 = vmatpush1.bf16.msra.mxu0 %v2336
    %2406 = vmatprep.subr.bf16.mxu0 0
    %2407 = vmatpush1.bf16.msra.mxu0 %v2337
    %2408 = vmatprep.subr.bf16.mxu0 0
    %2409 = vmatpush1.bf16.msra.mxu0 %v2338
    %2410 = vmatprep.subr.bf16.mxu0 0
    %2411 = vmatpush1.bf16.msra.mxu0 %v2339
    %2412 = vmatprep.subr.bf16.mxu0 0
    %2413 = vmatpush1.bf16.msra.mxu0 %v2340
    %2414 = vmatprep.subr.bf16.mxu0 0
    %2415 = vmatpush1.bf16.msra.mxu0 %v2341
    %2416 = vmatprep.subr.bf16.mxu0 0
    %2417 = vmatpush1.bf16.msra.mxu0 %v2342
    %2418 = vmatprep.subr.bf16.mxu0 0
    %2419 = vmatpush1.bf16.msra.mxu0 %v2343
    %2420 = vmatprep.subr.bf16.mxu0 0
    %2421 = vmatpush1.bf16.msra.mxu0 %v2344
    %2422 = vmatprep.subr.bf16.mxu0 0
    %2423 = vmatpush1.bf16.msra.mxu0 %v2345
    %2424 = vmatprep.subr.bf16.mxu0 0
    %2425 = vmatpush1.bf16.msra.mxu0 %v2346
    %2426 = vmatprep.subr.bf16.mxu0 0
    %2427 = vmatpush1.bf16.msra.mxu0 %v2347
    %2428 = vmatprep.mubr.bf16.mxu0 %v2128
    %2429 = vmatmul.mubr.bf16.gmra.mrb[0].mxu0 %v2127
    %v2430 = vpop.f32.mrb[0].mxu0
    %v2431 = vadd.f32 %v2202, %v2430
    %v2432 = vpop.f32.mrb[0].mxu0
    %v2433 = vpop.f32.mrb[0].mxu0
    %v2434 = vadd.f32 %v2202, %v2433
    %v2435 = vpop.f32.mrb[0].mxu0
    %2436 = vdwg.mxu0
    %2437 = vmatprep.subr.bf16.mxu0 0
    %2438 = vmatpush1.bf16.msra.mxu0 %v2348
    %2439 = vmatprep.subr.bf16.mxu0 0
    %2440 = vmatpush1.bf16.msra.mxu0 %v2349
    %2441 = vmatprep.subr.bf16.mxu0 0
    %2442 = vmatpush1.bf16.msra.mxu0 %v2350
    %2443 = vmatprep.subr.bf16.mxu0 0
    %2444 = vmatpush1.bf16.msra.mxu0 %v2351
    %2445 = vmatprep.subr.bf16.mxu0 0
    %2446 = vmatpush1.bf16.msra.mxu0 %v2352
    %2447 = vmatprep.subr.bf16.mxu0 0
    %2448 = vmatpush1.bf16.msra.mxu0 %v2353
    %2449 = vmatprep.subr.bf16.mxu0 0
    %2450 = vmatpush1.bf16.msra.mxu0 %v2354
    %2451 = vmatprep.subr.bf16.mxu0 0
    %2452 = vmatpush1.bf16.msra.mxu0 %v2355
    %2453 = vmatprep.subr.bf16.mxu0 0
    %2454 = vmatpush1.bf16.msra.mxu0 %v2356
    %2455 = vmatprep.subr.bf16.mxu0 0
    %2456 = vmatpush1.bf16.msra.mxu0 %v2357
    %2457 = vmatprep.subr.bf16.mxu0 0
    %2458 = vmatpush1.bf16.msra.mxu0 %v2358
    %2459 = vmatprep.subr.bf16.mxu0 0
    %2460 = vmatpush1.bf16.msra.mxu0 %v2359
    %2461 = vmatprep.subr.bf16.mxu0 0
    %2462 = vmatpush1.bf16.msra.mxu0 %v2360
    %2463 = vmatprep.subr.bf16.mxu0 0
    %2464 = vmatpush1.bf16.msra.mxu0 %v2361
    %2465 = vmatprep.subr.bf16.mxu0 0
    %2466 = vmatpush1.bf16.msra.mxu0 %v2362
    %2467 = vmatprep.subr.bf16.mxu0 0
    %2468 = vmatpush1.bf16.msra.mxu0 %v2363
    %2469 = vmatprep.mubr.bf16.mxu0 %v2130
    %2470 = vmatmul.mubr.bf16.gmra.mrb[0].mxu0 %v2129
    %v2471 = vpop.f32.mrb[0].mxu0
    %v2472 = vadd.f32 %v2431, %v2471
    %v2473 = vpop.f32.mrb[0].mxu0
    %v2474 = vpop.f32.mrb[0].mxu0
    %v2475 = vadd.f32 %v2434, %v2474
    %v2476 = vpop.f32.mrb[0].mxu0
    %2477 = vdwg.mxu0
    %v2478 = vtanh.pop %v2472
    %v2479 = vtanh.pop %v2475
    %v2480 = vpack.c.bf16 %v2479, %v2478
    %s2481 = scalar_lea.vmem [#allocation7], 1024
    %v2482 = vld [vmem:[%s2481] sm:$0xff]
    %v2483 = vld [vmem:[%s2481 + $0x8] sm:$0xff]
    %v2484 = vld [vmem:[%s2481 + $0x10] sm:$0xff]
    %v2485 = vld [vmem:[%s2481 + $0x18] sm:$0xff]
    %v2486 = vld [vmem:[%s2481 + $0x20] sm:$0xff]
    %v2487 = vld [vmem:[%s2481 + $0x28] sm:$0xff]
    %v2488 = vld [vmem:[%s2481 + $0x30] sm:$0xff]
    %v2489 = vld [vmem:[%s2481 + $0x38] sm:$0xff]
    %v2490 = vld [vmem:[%s2481 + $0x40] sm:$0xff]
    %v2491 = vld [vmem:[%s2481 + $0x48] sm:$0xff]
    %v2492 = vld [vmem:[%s2481 + $0x50] sm:$0xff]
    %v2493 = vld [vmem:[%s2481 + $0x58] sm:$0xff]
    %v2494 = vld [vmem:[%s2481 + $0x60] sm:$0xff]
    %v2495 = vld [vmem:[%s2481 + $0x68] sm:$0xff]
    %v2496 = vld [vmem:[%s2481 + $0x70] sm:$0xff]
    %v2497 = vld [vmem:[%s2481 + $0x78] sm:$0xff]
    %v2498 = vld [vmem:[%s2481 + $0x80] sm:$0xff]
    %v2499 = vld [vmem:[%s2481 + $0x88] sm:$0xff]
    %v2500 = vld [vmem:[%s2481 + $0x90] sm:$0xff]
    %v2501 = vld [vmem:[%s2481 + $0x98] sm:$0xff]
    %v2502 = vld [vmem:[%s2481 + $0xa0] sm:$0xff]
    %v2503 = vld [vmem:[%s2481 + $0xa8] sm:$0xff]
    %v2504 = vld [vmem:[%s2481 + $0xb0] sm:$0xff]
    %v2505 = vld [vmem:[%s2481 + $0xb8] sm:$0xff]
    %v2506 = vld [vmem:[%s2481 + $0xc0] sm:$0xff]
    %v2507 = vld [vmem:[%s2481 + $0xc8] sm:$0xff]
    %v2508 = vld [vmem:[%s2481 + $0xd0] sm:$0xff]
    %v2509 = vld [vmem:[%s2481 + $0xd8] sm:$0xff]
    %v2510 = vld [vmem:[%s2481 + $0xe0] sm:$0xff]
    %v2511 = vld [vmem:[%s2481 + $0xe8] sm:$0xff]
    %v2512 = vld [vmem:[%s2481 + $0xf0] sm:$0xff]
    %v2513 = vld [vmem:[%s2481 + $0xf8] sm:$0xff]
    %v2514 = vld [vmem:[%s2481 + $0x100] sm:$0xff]
    %v2515 = vld [vmem:[%s2481 + $0x108] sm:$0xff]
    %v2516 = vld [vmem:[%s2481 + $0x110] sm:$0xff]
    %v2517 = vld [vmem:[%s2481 + $0x118] sm:$0xff]
    %v2518 = vld [vmem:[%s2481 + $0x120] sm:$0xff]
    %v2519 = vld [vmem:[%s2481 + $0x128] sm:$0xff]
    %v2520 = vld [vmem:[%s2481 + $0x130] sm:$0xff]
    %v2521 = vld [vmem:[%s2481 + $0x138] sm:$0xff]
    %v2522 = vld [vmem:[%s2481 + $0x140] sm:$0xff]
    %v2523 = vld [vmem:[%s2481 + $0x148] sm:$0xff]
    %v2524 = vld [vmem:[%s2481 + $0x150] sm:$0xff]
    %v2525 = vld [vmem:[%s2481 + $0x158] sm:$0xff]
    %v2526 = vld [vmem:[%s2481 + $0x160] sm:$0xff]
    %v2527 = vld [vmem:[%s2481 + $0x168] sm:$0xff]
    %v2528 = vld [vmem:[%s2481 + $0x170] sm:$0xff]
    %v2529 = vld [vmem:[%s2481 + $0x178] sm:$0xff]
    %v2530 = vld [vmem:[%s2481 + $0x180] sm:$0xff]
    %v2531 = vld [vmem:[%s2481 + $0x188] sm:$0xff]
    %v2532 = vld [vmem:[%s2481 + $0x190] sm:$0xff]
    %v2533 = vld [vmem:[%s2481 + $0x198] sm:$0xff]
    %v2534 = vld [vmem:[%s2481 + $0x1a0] sm:$0xff]
    %v2535 = vld [vmem:[%s2481 + $0x1a8] sm:$0xff]
    %v2536 = vld [vmem:[%s2481 + $0x1b0] sm:$0xff]
    %v2537 = vld [vmem:[%s2481 + $0x1b8] sm:$0xff]
    %v2538 = vld [vmem:[%s2481 + $0x1c0] sm:$0xff]
    %v2539 = vld [vmem:[%s2481 + $0x1c8] sm:$0xff]
    %v2540 = vld [vmem:[%s2481 + $0x1d0] sm:$0xff]
    %v2541 = vld [vmem:[%s2481 + $0x1d8] sm:$0xff]
    %v2542 = vld [vmem:[%s2481 + $0x1e0] sm:$0xff]
    %v2543 = vld [vmem:[%s2481 + $0x1e8] sm:$0xff]
    %v2544 = vld [vmem:[%s2481 + $0x1f0] sm:$0xff]
    %v2545 = vld [vmem:[%s2481 + $0x1f8] sm:$0xff]
    %s2546 = scalar_lea.vmem [#allocation8], 16
    %v2547 = vld [vmem:[%s2546] sm:$0xff]
    %v2549 = vlaneseq
    %v2550 = vshrl.u32 %v2549, 7
    %v2551 = vsub.s32 0, %v2550
    %v2552 = vrot.slane %v2547, %v2551
    %v2553 = vlaneseq
    %v2554 = vshrl.u32 %v2553, 7
    %v2555 = vsub.s32 1, %v2554
    %v2556 = vrot.slane %v2547, %v2555
    %v2557 = vlaneseq
    %v2558 = vshrl.u32 %v2557, 7
    %v2559 = vsub.s32 2, %v2558
    %v2560 = vrot.slane %v2547, %v2559
    %v2561 = vlaneseq
    %v2562 = vshrl.u32 %v2561, 7
    %v2563 = vsub.s32 3, %v2562
    %v2564 = vrot.slane %v2547, %v2563
    %v2565 = vlaneseq
    %v2566 = vshrl.u32 %v2565, 7
    %v2567 = vsub.s32 4, %v2566
    %v2568 = vrot.slane %v2547, %v2567
    %v2569 = vlaneseq
    %v2570 = vshrl.u32 %v2569, 7
    %v2571 = vsub.s32 5, %v2570
    %v2572 = vrot.slane %v2547, %v2571
    %v2573 = vlaneseq
    %v2574 = vshrl.u32 %v2573, 7
    %v2575 = vsub.s32 6, %v2574
    %v2576 = vrot.slane %v2547, %v2575
    %v2577 = vlaneseq
    %v2578 = vshrl.u32 %v2577, 7
    %v2579 = vsub.s32 7, %v2578
    %v2580 = vrot.slane %v2547, %v2579
    %v2653 = vunpack.c.l.b16 %v2482
    %v2654 = vunpack.c.h.b16 %v2482
    %v2655 = vunpack.c.l.b16 %v2483
    %v2656 = vunpack.c.h.b16 %v2483
    %v2657 = vunpack.c.l.b16 %v2484
    %v2658 = vunpack.c.h.b16 %v2484
    %v2659 = vunpack.c.l.b16 %v2485
    %v2660 = vunpack.c.h.b16 %v2485
    %v2661 = vunpack.c.l.b16 %v2486
    %v2662 = vunpack.c.h.b16 %v2486
    %v2663 = vunpack.c.l.b16 %v2487
    %v2664 = vunpack.c.h.b16 %v2487
    %v2665 = vunpack.c.l.b16 %v2488
    %v2666 = vunpack.c.h.b16 %v2488
    %v2667 = vunpack.c.l.b16 %v2489
    %v2668 = vunpack.c.h.b16 %v2489
    %v2669 = vunpack.c.l.b16 %v2490
    %v2670 = vunpack.c.h.b16 %v2490
    %v2671 = vunpack.c.l.b16 %v2491
    %v2672 = vunpack.c.h.b16 %v2491
    %v2673 = vunpack.c.l.b16 %v2492
    %v2674 = vunpack.c.h.b16 %v2492
    %v2675 = vunpack.c.l.b16 %v2493
    %v2676 = vunpack.c.h.b16 %v2493
    %v2677 = vunpack.c.l.b16 %v2494
    %v2678 = vunpack.c.h.b16 %v2494
    %v2679 = vunpack.c.l.b16 %v2495
    %v2680 = vunpack.c.h.b16 %v2495
    %v2681 = vunpack.c.l.b16 %v2496
    %v2682 = vunpack.c.h.b16 %v2496
    %v2683 = vunpack.c.l.b16 %v2497
    %v2684 = vunpack.c.h.b16 %v2497
    %v2685 = vunpack.c.l.b16 %v2498
    %v2686 = vunpack.c.h.b16 %v2498
    %v2687 = vunpack.c.l.b16 %v2499
    %v2688 = vunpack.c.h.b16 %v2499
    %v2689 = vunpack.c.l.b16 %v2500
    %v2690 = vunpack.c.h.b16 %v2500
    %v2691 = vunpack.c.l.b16 %v2501
    %v2692 = vunpack.c.h.b16 %v2501
    %v2693 = vunpack.c.l.b16 %v2502
    %v2694 = vunpack.c.h.b16 %v2502
    %v2695 = vunpack.c.l.b16 %v2503
    %v2696 = vunpack.c.h.b16 %v2503
    %v2697 = vunpack.c.l.b16 %v2504
    %v2698 = vunpack.c.h.b16 %v2504
    %v2699 = vunpack.c.l.b16 %v2505
    %v2700 = vunpack.c.h.b16 %v2505
    %v2701 = vunpack.c.l.b16 %v2506
    %v2702 = vunpack.c.h.b16 %v2506
    %v2703 = vunpack.c.l.b16 %v2507
    %v2704 = vunpack.c.h.b16 %v2507
    %v2705 = vunpack.c.l.b16 %v2508
    %v2706 = vunpack.c.h.b16 %v2508
    %v2707 = vunpack.c.l.b16 %v2509
    %v2708 = vunpack.c.h.b16 %v2509
    %v2709 = vunpack.c.l.b16 %v2510
    %v2710 = vunpack.c.h.b16 %v2510
    %v2711 = vunpack.c.l.b16 %v2511
    %v2712 = vunpack.c.h.b16 %v2511
    %v2713 = vunpack.c.l.b16 %v2512
    %v2714 = vunpack.c.h.b16 %v2512
    %v2715 = vunpack.c.l.b16 %v2513
    %v2716 = vunpack.c.h.b16 %v2513
    %v2717 = vunpack.c.l.b16 %v2514
    %v2718 = vunpack.c.h.b16 %v2514
    %v2719 = vunpack.c.l.b16 %v2515
    %v2720 = vunpack.c.h.b16 %v2515
    %v2721 = vunpack.c.l.b16 %v2516
    %v2722 = vunpack.c.h.b16 %v2516
    %v2723 = vunpack.c.l.b16 %v2517
    %v2724 = vunpack.c.h.b16 %v2517
    %v2725 = vunpack.c.l.b16 %v2518
    %v2726 = vunpack.c.h.b16 %v2518
    %v2727 = vunpack.c.l.b16 %v2519
    %v2728 = vunpack.c.h.b16 %v2519
    %v2729 = vunpack.c.l.b16 %v2520
    %v2730 = vunpack.c.h.b16 %v2520
    %v2731 = vunpack.c.l.b16 %v2521
    %v2732 = vunpack.c.h.b16 %v2521
    %v2733 = vunpack.c.l.b16 %v2522
    %v2734 = vunpack.c.h.b16 %v2522
    %v2735 = vunpack.c.l.b16 %v2523
    %v2736 = vunpack.c.h.b16 %v2523
    %v2737 = vunpack.c.l.b16 %v2524
    %v2738 = vunpack.c.h.b16 %v2524
    %v2739 = vunpack.c.l.b16 %v2525
    %v2740 = vunpack.c.h.b16 %v2525
    %v2741 = vunpack.c.l.b16 %v2526
    %v2742 = vunpack.c.h.b16 %v2526
    %v2743 = vunpack.c.l.b16 %v2527
    %v2744 = vunpack.c.h.b16 %v2527
    %v2745 = vunpack.c.l.b16 %v2528
    %v2746 = vunpack.c.h.b16 %v2528
    %v2747 = vunpack.c.l.b16 %v2529
    %v2748 = vunpack.c.h.b16 %v2529
    %v2749 = vunpack.c.l.b16 %v2530
    %v2750 = vunpack.c.h.b16 %v2530
    %v2751 = vunpack.c.l.b16 %v2531
    %v2752 = vunpack.c.h.b16 %v2531
    %v2753 = vunpack.c.l.b16 %v2532
    %v2754 = vunpack.c.h.b16 %v2532
    %v2755 = vunpack.c.l.b16 %v2533
    %v2756 = vunpack.c.h.b16 %v2533
    %v2757 = vunpack.c.l.b16 %v2534
    %v2758 = vunpack.c.h.b16 %v2534
    %v2759 = vunpack.c.l.b16 %v2535
    %v2760 = vunpack.c.h.b16 %v2535
    %v2761 = vunpack.c.l.b16 %v2536
    %v2762 = vunpack.c.h.b16 %v2536
    %v2763 = vunpack.c.l.b16 %v2537
    %v2764 = vunpack.c.h.b16 %v2537
    %v2765 = vunpack.c.l.b16 %v2538
    %v2766 = vunpack.c.h.b16 %v2538
    %v2767 = vunpack.c.l.b16 %v2539
    %v2768 = vunpack.c.h.b16 %v2539
    %v2769 = vunpack.c.l.b16 %v2540
    %v2770 = vunpack.c.h.b16 %v2540
    %v2771 = vunpack.c.l.b16 %v2541
    %v2772 = vunpack.c.h.b16 %v2541
    %v2773 = vunpack.c.l.b16 %v2542
    %v2774 = vunpack.c.h.b16 %v2542
    %v2775 = vunpack.c.l.b16 %v2543
    %v2776 = vunpack.c.h.b16 %v2543
    %v2777 = vunpack.c.l.b16 %v2544
    %v2778 = vunpack.c.h.b16 %v2544
    %v2779 = vunpack.c.l.b16 %v2545
    %v2780 = vunpack.c.h.b16 %v2545
    %v2781 = vpack.c.b16 %v2661, %v2653
    %v2782 = vpack.c.b16 %v2662, %v2654
    %v2783 = vpack.c.b16 %v2663, %v2655
    %v2784 = vpack.c.b16 %v2664, %v2656
    %v2785 = vpack.c.b16 %v2665, %v2657
    %v2786 = vpack.c.b16 %v2666, %v2658
    %v2787 = vpack.c.b16 %v2667, %v2659
    %v2788 = vpack.c.b16 %v2668, %v2660
    %v2789 = vpack.c.b16 %v2677, %v2669
    %v2790 = vpack.c.b16 %v2678, %v2670
    %v2791 = vpack.c.b16 %v2679, %v2671
    %v2792 = vpack.c.b16 %v2680, %v2672
    %v2793 = vpack.c.b16 %v2681, %v2673
    %v2794 = vpack.c.b16 %v2682, %v2674
    %v2795 = vpack.c.b16 %v2683, %v2675
    %v2796 = vpack.c.b16 %v2684, %v2676
    %v2797 = vpack.c.b16 %v2693, %v2685
    %v2798 = vpack.c.b16 %v2694, %v2686
    %v2799 = vpack.c.b16 %v2695, %v2687
    %v2800 = vpack.c.b16 %v2696, %v2688
    %v2801 = vpack.c.b16 %v2697, %v2689
    %v2802 = vpack.c.b16 %v2698, %v2690
    %v2803 = vpack.c.b16 %v2699, %v2691
    %v2804 = vpack.c.b16 %v2700, %v2692
    %v2805 = vpack.c.b16 %v2709, %v2701
    %v2806 = vpack.c.b16 %v2710, %v2702
    %v2807 = vpack.c.b16 %v2711, %v2703
    %v2808 = vpack.c.b16 %v2712, %v2704
    %v2809 = vpack.c.b16 %v2713, %v2705
    %v2810 = vpack.c.b16 %v2714, %v2706
    %v2811 = vpack.c.b16 %v2715, %v2707
    %v2812 = vpack.c.b16 %v2716, %v2708
    %v2813 = vpack.c.b16 %v2725, %v2717
    %v2814 = vpack.c.b16 %v2726, %v2718
    %v2815 = vpack.c.b16 %v2727, %v2719
    %v2816 = vpack.c.b16 %v2728, %v2720
    %v2817 = vpack.c.b16 %v2729, %v2721
    %v2818 = vpack.c.b16 %v2730, %v2722
    %v2819 = vpack.c.b16 %v2731, %v2723
    %v2820 = vpack.c.b16 %v2732, %v2724
    %v2821 = vpack.c.b16 %v2741, %v2733
    %v2822 = vpack.c.b16 %v2742, %v2734
    %v2823 = vpack.c.b16 %v2743, %v2735
    %v2824 = vpack.c.b16 %v2744, %v2736
    %v2825 = vpack.c.b16 %v2745, %v2737
    %v2826 = vpack.c.b16 %v2746, %v2738
    %v2827 = vpack.c.b16 %v2747, %v2739
    %v2828 = vpack.c.b16 %v2748, %v2740
    %v2829 = vpack.c.b16 %v2757, %v2749
    %v2830 = vpack.c.b16 %v2758, %v2750
    %v2831 = vpack.c.b16 %v2759, %v2751
    %v2832 = vpack.c.b16 %v2760, %v2752
    %v2833 = vpack.c.b16 %v2761, %v2753
    %v2834 = vpack.c.b16 %v2762, %v2754
    %v2835 = vpack.c.b16 %v2763, %v2755
    %v2836 = vpack.c.b16 %v2764, %v2756
    %v2837 = vpack.c.b16 %v2773, %v2765
    %v2838 = vpack.c.b16 %v2774, %v2766
    %v2839 = vpack.c.b16 %v2775, %v2767
    %v2840 = vpack.c.b16 %v2776, %v2768
    %v2841 = vpack.c.b16 %v2777, %v2769
    %v2842 = vpack.c.b16 %v2778, %v2770
    %v2843 = vpack.c.b16 %v2779, %v2771
    %v2844 = vpack.c.b16 %v2780, %v2772
    %2909 = vmatprep.subr.bf16.mxu0 %v2782
    %2910 = vmatpush1.bf16.msra.mxu0 %v2781
    %2911 = vmatprep.subr.bf16.mxu0 %v2790
    %2912 = vmatpush1.bf16.msra.mxu0 %v2789
    %2913 = vmatprep.subr.bf16.mxu0 %v2798
    %2914 = vmatpush1.bf16.msra.mxu0 %v2797
    %2915 = vmatprep.subr.bf16.mxu0 %v2806
    %2916 = vmatpush1.bf16.msra.mxu0 %v2805
    %2917 = vmatprep.subr.bf16.mxu0 %v2814
    %2918 = vmatpush1.bf16.msra.mxu0 %v2813
    %2919 = vmatprep.subr.bf16.mxu0 %v2822
    %2920 = vmatpush1.bf16.msra.mxu0 %v2821
    %2921 = vmatprep.subr.bf16.mxu0 %v2830
    %2922 = vmatpush1.bf16.msra.mxu0 %v2829
    %2923 = vmatprep.subr.bf16.mxu0 %v2838
    %2924 = vmatpush1.bf16.msra.mxu0 %v2837
    %2925 = vmatprep.subr.bf16.mxu0 0
    %2926 = vmatpush1.bf16.msra.mxu0 0
    %2927 = vmatprep.subr.bf16.mxu0 0
    %2928 = vmatpush1.bf16.msra.mxu0 0
    %2929 = vmatprep.subr.bf16.mxu0 0
    %2930 = vmatpush1.bf16.msra.mxu0 0
    %2931 = vmatprep.subr.bf16.mxu0 0
    %2932 = vmatpush1.bf16.msra.mxu0 0
    %2933 = vmatprep.subr.bf16.mxu0 0
    %2934 = vmatpush1.bf16.msra.mxu0 0
    %2935 = vmatprep.subr.bf16.mxu0 0
    %2936 = vmatpush1.bf16.msra.mxu0 0
    %2937 = vmatprep.subr.bf16.mxu0 0
    %2938 = vmatpush1.bf16.msra.mxu0 0
    %2939 = vmatprep.subr.bf16.mxu0 0
    %2940 = vmatpush1.bf16.msra.mxu0 0
    %2941 = vmatprep.mubr.bf16.mxu0 0
    %2942 = vmatmul.mubr.bf16.gmra.mrb[0].mxu0 %v2480
    %v2943 = vpop.f32.mrb[0].mxu0
    %v2944 = vadd.f32 %v2552, %v2943
    %v2945 = vpop.f32.mrb[0].mxu0
    %v2946 = vadd.f32 %v2556, %v2945
    %v2947 = vpop.f32.mrb[0].mxu0
    %v2948 = vadd.f32 %v2552, %v2947
    %v2949 = vpop.f32.mrb[0].mxu0
    %v2950 = vadd.f32 %v2556, %v2949
    %2951 = vdwg.mxu0
    %2952 = vmatprep.subr.bf16.mxu0 %v2784
    %2953 = vmatpush1.bf16.msra.mxu0 %v2783
    %2954 = vmatprep.subr.bf16.mxu0 %v2792
    %2955 = vmatpush1.bf16.msra.mxu0 %v2791
    %2956 = vmatprep.subr.bf16.mxu0 %v2800
    %2957 = vmatpush1.bf16.msra.mxu0 %v2799
    %2958 = vmatprep.subr.bf16.mxu0 %v2808
    %2959 = vmatpush1.bf16.msra.mxu0 %v2807
    %2960 = vmatprep.subr.bf16.mxu0 %v2816
    %2961 = vmatpush1.bf16.msra.mxu0 %v2815
    %2962 = vmatprep.subr.bf16.mxu0 %v2824
    %2963 = vmatpush1.bf16.msra.mxu0 %v2823
    %2964 = vmatprep.subr.bf16.mxu0 %v2832
    %2965 = vmatpush1.bf16.msra.mxu0 %v2831
    %2966 = vmatprep.subr.bf16.mxu0 %v2840
    %2967 = vmatpush1.bf16.msra.mxu0 %v2839
    %2968 = vmatprep.subr.bf16.mxu0 0
    %2969 = vmatpush1.bf16.msra.mxu0 0
    %2970 = vmatprep.subr.bf16.mxu0 0
    %2971 = vmatpush1.bf16.msra.mxu0 0
    %2972 = vmatprep.subr.bf16.mxu0 0
    %2973 = vmatpush1.bf16.msra.mxu0 0
    %2974 = vmatprep.subr.bf16.mxu0 0
    %2975 = vmatpush1.bf16.msra.mxu0 0
    %2976 = vmatprep.subr.bf16.mxu0 0
    %2977 = vmatpush1.bf16.msra.mxu0 0
    %2978 = vmatprep.subr.bf16.mxu0 0
    %2979 = vmatpush1.bf16.msra.mxu0 0
    %2980 = vmatprep.subr.bf16.mxu0 0
    %2981 = vmatpush1.bf16.msra.mxu0 0
    %2982 = vmatprep.subr.bf16.mxu0 0
    %2983 = vmatpush1.bf16.msra.mxu0 0
    %2984 = vmatprep.mubr.bf16.mxu0 0
    %2985 = vmatmul.mubr.bf16.gmra.mrb[0].mxu0 %v2480
    %v2986 = vpop.f32.mrb[0].mxu0
    %v2987 = vadd.f32 %v2560, %v2986
    %v2988 = vpop.f32.mrb[0].mxu0
    %v2989 = vadd.f32 %v2564, %v2988
    %v2990 = vpop.f32.mrb[0].mxu0
    %v2991 = vadd.f32 %v2560, %v2990
    %v2992 = vpop.f32.mrb[0].mxu0
    %v2993 = vadd.f32 %v2564, %v2992
    %2994 = vdwg.mxu0
    %2995 = vmatprep.subr.bf16.mxu0 %v2786
    %2996 = vmatpush1.bf16.msra.mxu0 %v2785
    %2997 = vmatprep.subr.bf16.mxu0 %v2794
    %2998 = vmatpush1.bf16.msra.mxu0 %v2793
    %2999 = vmatprep.subr.bf16.mxu0 %v2802
    %3000 = vmatpush1.bf16.msra.mxu0 %v2801
    %3001 = vmatprep.subr.bf16.mxu0 %v2810
    %3002 = vmatpush1.bf16.msra.mxu0 %v2809
    %3003 = vmatprep.subr.bf16.mxu0 %v2818
    %3004 = vmatpush1.bf16.msra.mxu0 %v2817
    %3005 = vmatprep.subr.bf16.mxu0 %v2826
    %3006 = vmatpush1.bf16.msra.mxu0 %v2825
    %3007 = vmatprep.subr.bf16.mxu0 %v2834
    %3008 = vmatpush1.bf16.msra.mxu0 %v2833
    %3009 = vmatprep.subr.bf16.mxu0 %v2842
    %3010 = vmatpush1.bf16.msra.mxu0 %v2841
    %3011 = vmatprep.subr.bf16.mxu0 0
    %3012 = vmatpush1.bf16.msra.mxu0 0
    %3013 = vmatprep.subr.bf16.mxu0 0
    %3014 = vmatpush1.bf16.msra.mxu0 0
    %3015 = vmatprep.subr.bf16.mxu0 0
    %3016 = vmatpush1.bf16.msra.mxu0 0
    %3017 = vmatprep.subr.bf16.mxu0 0
    %3018 = vmatpush1.bf16.msra.mxu0 0
    %3019 = vmatprep.subr.bf16.mxu0 0
    %3020 = vmatpush1.bf16.msra.mxu0 0
    %3021 = vmatprep.subr.bf16.mxu0 0
    %3022 = vmatpush1.bf16.msra.mxu0 0
    %3023 = vmatprep.subr.bf16.mxu0 0
    %3024 = vmatpush1.bf16.msra.mxu0 0
    %3025 = vmatprep.subr.bf16.mxu0 0
    %3026 = vmatpush1.bf16.msra.mxu0 0
    %3027 = vmatprep.mubr.bf16.mxu0 0
    %3028 = vmatmul.mubr.bf16.gmra.mrb[0].mxu0 %v2480
    %v3029 = vpop.f32.mrb[0].mxu0
    %v3030 = vadd.f32 %v2568, %v3029
    %v3031 = vpop.f32.mrb[0].mxu0
    %v3032 = vadd.f32 %v2572, %v3031
    %v3033 = vpop.f32.mrb[0].mxu0
    %v3034 = vadd.f32 %v2568, %v3033
    %v3035 = vpop.f32.mrb[0].mxu0
    %v3036 = vadd.f32 %v2572, %v3035
    %3037 = vdwg.mxu0
    %3038 = vmatprep.subr.bf16.mxu0 %v2788
    %3039 = vmatpush1.bf16.msra.mxu0 %v2787
    %3040 = vmatprep.subr.bf16.mxu0 %v2796
    %3041 = vmatpush1.bf16.msra.mxu0 %v2795
    %3042 = vmatprep.subr.bf16.mxu0 %v2804
    %3043 = vmatpush1.bf16.msra.mxu0 %v2803
    %3044 = vmatprep.subr.bf16.mxu0 %v2812
    %3045 = vmatpush1.bf16.msra.mxu0 %v2811
    %3046 = vmatprep.subr.bf16.mxu0 %v2820
    %3047 = vmatpush1.bf16.msra.mxu0 %v2819
    %3048 = vmatprep.subr.bf16.mxu0 %v2828
    %3049 = vmatpush1.bf16.msra.mxu0 %v2827
    %3050 = vmatprep.subr.bf16.mxu0 %v2836
    %3051 = vmatpush1.bf16.msra.mxu0 %v2835
    %3052 = vmatprep.subr.bf16.mxu0 %v2844
    %3053 = vmatpush1.bf16.msra.mxu0 %v2843
    %3054 = vmatprep.subr.bf16.mxu0 0
    %3055 = vmatpush1.bf16.msra.mxu0 0
    %3056 = vmatprep.subr.bf16.mxu0 0
    %3057 = vmatpush1.bf16.msra.mxu0 0
    %3058 = vmatprep.subr.bf16.mxu0 0
    %3059 = vmatpush1.bf16.msra.mxu0 0
    %3060 = vmatprep.subr.bf16.mxu0 0
    %3061 = vmatpush1.bf16.msra.mxu0 0
    %3062 = vmatprep.subr.bf16.mxu0 0
    %3063 = vmatpush1.bf16.msra.mxu0 0
    %3064 = vmatprep.subr.bf16.mxu0 0
    %3065 = vmatpush1.bf16.msra.mxu0 0
    %3066 = vmatprep.subr.bf16.mxu0 0
    %3067 = vmatpush1.bf16.msra.mxu0 0
    %3068 = vmatprep.subr.bf16.mxu0 0
    %3069 = vmatpush1.bf16.msra.mxu0 0
    %3070 = vmatprep.mubr.bf16.mxu0 0
    %3071 = vmatmul.mubr.bf16.gmra.mrb[0].mxu0 %v2480
    %v3072 = vpop.f32.mrb[0].mxu0
    %v3073 = vadd.f32 %v2576, %v3072
    %v3074 = vpop.f32.mrb[0].mxu0
    %v3075 = vadd.f32 %v2580, %v3074
    %v3076 = vpop.f32.mrb[0].mxu0
    %v3077 = vadd.f32 %v2576, %v3076
    %v3078 = vpop.f32.mrb[0].mxu0
    %v3079 = vadd.f32 %v2580, %v3078
    %3080 = vdwg.mxu0
    %v3081 = vtanh.pop %v2944
    %v3082 = vtanh.pop %v2946
    %v3083 = vtanh.pop %v2987
    %v3084 = vtanh.pop %v2989
    %v3085 = vtanh.pop %v2948
    %v3086 = vtanh.pop %v2950
    %v3087 = vtanh.pop %v2991
    %v3088 = vtanh.pop %v2993
    %v3089 = vmul.f32 %v3081, 1.442695
    %v3090 = vpow.pop %v3089
    %v3091 = vmul.f32 %v3082, 1.442695
    %v3092 = vpow.pop %v3091
    %v3093 = vmul.f32 %v3083, 1.442695
    %v3094 = vpow.pop %v3093
    %v3095 = vmul.f32 %v3084, 1.442695
    %v3096 = vpow.pop %v3095
    %v3097 = vmul.f32 %v3085, 1.442695
    %v3098 = vpow.pop %v3097
    %v3099 = vmul.f32 %v3086, 1.442695
    %v3100 = vpow.pop %v3099
    %v3101 = vmul.f32 %v3087, 1.442695
    %v3102 = vpow.pop %v3101
    %v3103 = vmul.f32 %v3088, 1.442695
    %v3104 = vpow.pop %v3103
    %v3105 = vmul.f32 %v1101, %v3090
    %v3106 = vmul.f32 %v1102, %v3092
    %v3107 = vmul.f32 %v1103, %v3094
    %v3108 = vmul.f32 %v1104, %v3096
    %v3109 = vmul.f32 %v1105, %v3098
    %v3110 = vmul.f32 %v1106, %v3100
    %v3111 = vmul.f32 %v1107, %v3102
    %v3112 = vmul.f32 %v1108, %v3104
    %v3113 = vadd.f32 %v3105, %v3030
    %v3114 = vadd.f32 %v3106, %v3032
    %v3115 = vadd.f32 %v3107, %v3073
    %v3116 = vadd.f32 %v3108, %v3075
    %v3117 = vadd.f32 %v3109, %v3034
    %v3118 = vadd.f32 %v3110, %v3036
    %v3119 = vadd.f32 %v3111, %v3077
    %v3120 = vadd.f32 %v3112, %v3079
    %v3121 = vadd.f32 %v3081, %v3082
    %v3122 = vadd.f32 %v3121, %v3083
    %v3123 = vadd.f32 %v3122, %v3084
    %3124 = vadd.xlane.f32.xlu0 %v3123
    %v3125 = vpop.xlane.xlu0 %3124
    %v3126 = vadd.f32 %v3085, %v3086
    %v3127 = vadd.f32 %v3126, %v3087
    %v3128 = vadd.f32 %v3127, %v3088
    %3129 = vadd.xlane.f32.xlu0 %v3128
    %v3130 = vpop.xlane.xlu0 %3129
    %v3131 = vadd.f32 %v2125, %v3125
    %v3132 = vadd.f32 %v2126, %v3130
    %v3133 = vpack.c.bf16 %v3117, %v3113
    %v3134 = vpack.c.bf16 %v3118, %v3114
    %v3135 = vpack.c.bf16 %v3119, %v3115
    %v3136 = vpack.c.bf16 %v3120, %v3116
    %s3137 = scalar_lea.vmem [#allocation5], 768
    %v3138 = vld [vmem:[%s3137] sm:$0xf]
    %v3139 = vld [vmem:[%s3137 + $0x4] sm:$0xf]
    %v3140 = vld [vmem:[%s3137 + $0x8] sm:$0xf]
    %v3141 = vld [vmem:[%s3137 + $0xc] sm:$0xf]
    %v3142 = vld [vmem:[%s3137 + $0x10] sm:$0xf]
    %v3143 = vld [vmem:[%s3137 + $0x14] sm:$0xf]
    %v3144 = vld [vmem:[%s3137 + $0x18] sm:$0xf]
    %v3145 = vld [vmem:[%s3137 + $0x1c] sm:$0xf]
    %v3146 = vld [vmem:[%s3137 + $0x20] sm:$0xf]
    %v3147 = vld [vmem:[%s3137 + $0x24] sm:$0xf]
    %v3148 = vld [vmem:[%s3137 + $0x28] sm:$0xf]
    %v3149 = vld [vmem:[%s3137 + $0x2c] sm:$0xf]
    %v3150 = vld [vmem:[%s3137 + $0x30] sm:$0xf]
    %v3151 = vld [vmem:[%s3137 + $0x34] sm:$0xf]
    %v3152 = vld [vmem:[%s3137 + $0x38] sm:$0xf]
    %v3153 = vld [vmem:[%s3137 + $0x3c] sm:$0xf]
    %v3154 = vld [vmem:[%s3137 + $0x40] sm:$0xf]
    %v3155 = vld [vmem:[%s3137 + $0x44] sm:$0xf]
    %v3156 = vld [vmem:[%s3137 + $0x48] sm:$0xf]
    %v3157 = vld [vmem:[%s3137 + $0x4c] sm:$0xf]
    %v3158 = vld [vmem:[%s3137 + $0x50] sm:$0xf]
    %v3159 = vld [vmem:[%s3137 + $0x54] sm:$0xf]
    %v3160 = vld [vmem:[%s3137 + $0x58] sm:$0xf]
    %v3161 = vld [vmem:[%s3137 + $0x5c] sm:$0xf]
    %v3162 = vld [vmem:[%s3137 + $0x60] sm:$0xf]
    %v3163 = vld [vmem:[%s3137 + $0x64] sm:$0xf]
    %v3164 = vld [vmem:[%s3137 + $0x68] sm:$0xf]
    %v3165 = vld [vmem:[%s3137 + $0x6c] sm:$0xf]
    %v3166 = vld [vmem:[%s3137 + $0x70] sm:$0xf]
    %v3167 = vld [vmem:[%s3137 + $0x74] sm:$0xf]
    %v3168 = vld [vmem:[%s3137 + $0x78] sm:$0xf]
    %v3169 = vld [vmem:[%s3137 + $0x7c] sm:$0xf]
    %v3170 = vld [vmem:[%s3137 + $0x80] sm:$0xf]
    %v3171 = vld [vmem:[%s3137 + $0x84] sm:$0xf]
    %v3172 = vld [vmem:[%s3137 + $0x88] sm:$0xf]
    %v3173 = vld [vmem:[%s3137 + $0x8c] sm:$0xf]
    %v3174 = vld [vmem:[%s3137 + $0x90] sm:$0xf]
    %v3175 = vld [vmem:[%s3137 + $0x94] sm:$0xf]
    %v3176 = vld [vmem:[%s3137 + $0x98] sm:$0xf]
    %v3177 = vld [vmem:[%s3137 + $0x9c] sm:$0xf]
    %v3178 = vld [vmem:[%s3137 + $0xa0] sm:$0xf]
    %v3179 = vld [vmem:[%s3137 + $0xa4] sm:$0xf]
    %v3180 = vld [vmem:[%s3137 + $0xa8] sm:$0xf]
    %v3181 = vld [vmem:[%s3137 + $0xac] sm:$0xf]
    %v3182 = vld [vmem:[%s3137 + $0xb0] sm:$0xf]
    %v3183 = vld [vmem:[%s3137 + $0xb4] sm:$0xf]
    %v3184 = vld [vmem:[%s3137 + $0xb8] sm:$0xf]
    %v3185 = vld [vmem:[%s3137 + $0xbc] sm:$0xf]
    %v3186 = vld [vmem:[%s3137 + $0xc0] sm:$0xf]
    %v3187 = vld [vmem:[%s3137 + $0xc4] sm:$0xf]
    %v3188 = vld [vmem:[%s3137 + $0xc8] sm:$0xf]
    %v3189 = vld [vmem:[%s3137 + $0xcc] sm:$0xf]
    %v3190 = vld [vmem:[%s3137 + $0xd0] sm:$0xf]
    %v3191 = vld [vmem:[%s3137 + $0xd4] sm:$0xf]
    %v3192 = vld [vmem:[%s3137 + $0xd8] sm:$0xf]
    %v3193 = vld [vmem:[%s3137 + $0xdc] sm:$0xf]
    %v3194 = vld [vmem:[%s3137 + $0xe0] sm:$0xf]
    %v3195 = vld [vmem:[%s3137 + $0xe4] sm:$0xf]
    %v3196 = vld [vmem:[%s3137 + $0xe8] sm:$0xf]
    %v3197 = vld [vmem:[%s3137 + $0xec] sm:$0xf]
    %v3198 = vld [vmem:[%s3137 + $0xf0] sm:$0xf]
    %v3199 = vld [vmem:[%s3137 + $0xf4] sm:$0xf]
    %v3200 = vld [vmem:[%s3137 + $0xf8] sm:$0xf]
    %v3201 = vld [vmem:[%s3137 + $0xfc] sm:$0xf]
    %s3202 = scalar_lea.vmem %s2, 3
    %v3203 = vld [vmem:[%s3202] sm:$0x1]
    %v3205 = vlaneseq
    %v3206 = vshrl.u32 %v3205, 7
    %v3207 = vsub.s32 0, %v3206
    %v3208 = vrot.slane %v3203, %v3207
    %v3274 = vunpack.c.l.b16 %v3138
    %v3275 = vunpack.c.l.b16 %v3139
    %v3276 = vunpack.c.l.b16 %v3140
    %v3277 = vunpack.c.l.b16 %v3141
    %v3278 = vunpack.c.l.b16 %v3142
    %v3279 = vunpack.c.l.b16 %v3143
    %v3280 = vunpack.c.l.b16 %v3144
    %v3281 = vunpack.c.l.b16 %v3145
    %v3282 = vunpack.c.l.b16 %v3146
    %v3283 = vunpack.c.l.b16 %v3147
    %v3284 = vunpack.c.l.b16 %v3148
    %v3285 = vunpack.c.l.b16 %v3149
    %v3286 = vunpack.c.l.b16 %v3150
    %v3287 = vunpack.c.l.b16 %v3151
    %v3288 = vunpack.c.l.b16 %v3152
    %v3289 = vunpack.c.l.b16 %v3153
    %v3290 = vunpack.c.l.b16 %v3154
    %v3291 = vunpack.c.l.b16 %v3155
    %v3292 = vunpack.c.l.b16 %v3156
    %v3293 = vunpack.c.l.b16 %v3157
    %v3294 = vunpack.c.l.b16 %v3158
    %v3295 = vunpack.c.l.b16 %v3159
    %v3296 = vunpack.c.l.b16 %v3160
    %v3297 = vunpack.c.l.b16 %v3161
    %v3298 = vunpack.c.l.b16 %v3162
    %v3299 = vunpack.c.l.b16 %v3163
    %v3300 = vunpack.c.l.b16 %v3164
    %v3301 = vunpack.c.l.b16 %v3165
    %v3302 = vunpack.c.l.b16 %v3166
    %v3303 = vunpack.c.l.b16 %v3167
    %v3304 = vunpack.c.l.b16 %v3168
    %v3305 = vunpack.c.l.b16 %v3169
    %v3306 = vunpack.c.l.b16 %v3170
    %v3307 = vunpack.c.l.b16 %v3171
    %v3308 = vunpack.c.l.b16 %v3172
    %v3309 = vunpack.c.l.b16 %v3173
    %v3310 = vunpack.c.l.b16 %v3174
    %v3311 = vunpack.c.l.b16 %v3175
    %v3312 = vunpack.c.l.b16 %v3176
    %v3313 = vunpack.c.l.b16 %v3177
    %v3314 = vunpack.c.l.b16 %v3178
    %v3315 = vunpack.c.l.b16 %v3179
    %v3316 = vunpack.c.l.b16 %v3180
    %v3317 = vunpack.c.l.b16 %v3181
    %v3318 = vunpack.c.l.b16 %v3182
    %v3319 = vunpack.c.l.b16 %v3183
    %v3320 = vunpack.c.l.b16 %v3184
    %v3321 = vunpack.c.l.b16 %v3185
    %v3322 = vunpack.c.l.b16 %v3186
    %v3323 = vunpack.c.l.b16 %v3187
    %v3324 = vunpack.c.l.b16 %v3188
    %v3325 = vunpack.c.l.b16 %v3189
    %v3326 = vunpack.c.l.b16 %v3190
    %v3327 = vunpack.c.l.b16 %v3191
    %v3328 = vunpack.c.l.b16 %v3192
    %v3329 = vunpack.c.l.b16 %v3193
    %v3330 = vunpack.c.l.b16 %v3194
    %v3331 = vunpack.c.l.b16 %v3195
    %v3332 = vunpack.c.l.b16 %v3196
    %v3333 = vunpack.c.l.b16 %v3197
    %v3334 = vunpack.c.l.b16 %v3198
    %v3335 = vunpack.c.l.b16 %v3199
    %v3336 = vunpack.c.l.b16 %v3200
    %v3337 = vunpack.c.l.b16 %v3201
    %v3338 = vpack.c.b16 %v3275, %v3274
    %v3339 = vpack.c.b16 %v3277, %v3276
    %v3340 = vpack.c.b16 %v3279, %v3278
    %v3341 = vpack.c.b16 %v3281, %v3280
    %v3342 = vpack.c.b16 %v3283, %v3282
    %v3343 = vpack.c.b16 %v3285, %v3284
    %v3344 = vpack.c.b16 %v3287, %v3286
    %v3345 = vpack.c.b16 %v3289, %v3288
    %v3346 = vpack.c.b16 %v3291, %v3290
    %v3347 = vpack.c.b16 %v3293, %v3292
    %v3348 = vpack.c.b16 %v3295, %v3294
    %v3349 = vpack.c.b16 %v3297, %v3296
    %v3350 = vpack.c.b16 %v3299, %v3298
    %v3351 = vpack.c.b16 %v3301, %v3300
    %v3352 = vpack.c.b16 %v3303, %v3302
    %v3353 = vpack.c.b16 %v3305, %v3304
    %v3354 = vpack.c.b16 %v3307, %v3306
    %v3355 = vpack.c.b16 %v3309, %v3308
    %v3356 = vpack.c.b16 %v3311, %v3310
    %v3357 = vpack.c.b16 %v3313, %v3312
    %v3358 = vpack.c.b16 %v3315, %v3314
    %v3359 = vpack.c.b16 %v3317, %v3316
    %v3360 = vpack.c.b16 %v3319, %v3318
    %v3361 = vpack.c.b16 %v3321, %v3320
    %v3362 = vpack.c.b16 %v3323, %v3322
    %v3363 = vpack.c.b16 %v3325, %v3324
    %v3364 = vpack.c.b16 %v3327, %v3326
    %v3365 = vpack.c.b16 %v3329, %v3328
    %v3366 = vpack.c.b16 %v3331, %v3330
    %v3367 = vpack.c.b16 %v3333, %v3332
    %v3368 = vpack.c.b16 %v3335, %v3334
    %v3369 = vpack.c.b16 %v3337, %v3336
    %3402 = vmatprep.subr.bf16.mxu0 0
    %3403 = vmatpush1.bf16.msra.mxu0 %v3338
    %3404 = vmatprep.subr.bf16.mxu0 0
    %3405 = vmatpush1.bf16.msra.mxu0 %v3339
    %3406 = vmatprep.subr.bf16.mxu0 0
    %3407 = vmatpush1.bf16.msra.mxu0 %v3340
    %3408 = vmatprep.subr.bf16.mxu0 0
    %3409 = vmatpush1.bf16.msra.mxu0 %v3341
    %3410 = vmatprep.subr.bf16.mxu0 0
    %3411 = vmatpush1.bf16.msra.mxu0 %v3342
    %3412 = vmatprep.subr.bf16.mxu0 0
    %3413 = vmatpush1.bf16.msra.mxu0 %v3343
    %3414 = vmatprep.subr.bf16.mxu0 0
    %3415 = vmatpush1.bf16.msra.mxu0 %v3344
    %3416 = vmatprep.subr.bf16.mxu0 0
    %3417 = vmatpush1.bf16.msra.mxu0 %v3345
    %3418 = vmatprep.subr.bf16.mxu0 0
    %3419 = vmatpush1.bf16.msra.mxu0 %v3346
    %3420 = vmatprep.subr.bf16.mxu0 0
    %3421 = vmatpush1.bf16.msra.mxu0 %v3347
    %3422 = vmatprep.subr.bf16.mxu0 0
    %3423 = vmatpush1.bf16.msra.mxu0 %v3348
    %3424 = vmatprep.subr.bf16.mxu0 0
    %3425 = vmatpush1.bf16.msra.mxu0 %v3349
    %3426 = vmatprep.subr.bf16.mxu0 0
    %3427 = vmatpush1.bf16.msra.mxu0 %v3350
    %3428 = vmatprep.subr.bf16.mxu0 0
    %3429 = vmatpush1.bf16.msra.mxu0 %v3351
    %3430 = vmatprep.subr.bf16.mxu0 0
    %3431 = vmatpush1.bf16.msra.mxu0 %v3352
    %3432 = vmatprep.subr.bf16.mxu0 0
    %3433 = vmatpush1.bf16.msra.mxu0 %v3353
    %3434 = vmatprep.mubr.bf16.mxu0 %v3134
    %3435 = vmatmul.mubr.bf16.gmra.mrb[0].mxu0 %v3133
    %v3436 = vpop.f32.mrb[0].mxu0
    %v3437 = vadd.f32 %v3208, %v3436
    %v3438 = vpop.f32.mrb[0].mxu0
    %v3439 = vpop.f32.mrb[0].mxu0
    %v3440 = vadd.f32 %v3208, %v3439
    %v3441 = vpop.f32.mrb[0].mxu0
    %3442 = vdwg.mxu0
    %3443 = vmatprep.subr.bf16.mxu0 0
    %3444 = vmatpush1.bf16.msra.mxu0 %v3354
    %3445 = vmatprep.subr.bf16.mxu0 0
    %3446 = vmatpush1.bf16.msra.mxu0 %v3355
    %3447 = vmatprep.subr.bf16.mxu0 0
    %3448 = vmatpush1.bf16.msra.mxu0 %v3356
    %3449 = vmatprep.subr.bf16.mxu0 0
    %3450 = vmatpush1.bf16.msra.mxu0 %v3357
    %3451 = vmatprep.subr.bf16.mxu0 0
    %3452 = vmatpush1.bf16.msra.mxu0 %v3358
    %3453 = vmatprep.subr.bf16.mxu0 0
    %3454 = vmatpush1.bf16.msra.mxu0 %v3359
    %3455 = vmatprep.subr.bf16.mxu0 0
    %3456 = vmatpush1.bf16.msra.mxu0 %v3360
    %3457 = vmatprep.subr.bf16.mxu0 0
    %3458 = vmatpush1.bf16.msra.mxu0 %v3361
    %3459 = vmatprep.subr.bf16.mxu0 0
    %3460 = vmatpush1.bf16.msra.mxu0 %v3362
    %3461 = vmatprep.subr.bf16.mxu0 0
    %3462 = vmatpush1.bf16.msra.mxu0 %v3363
    %3463 = vmatprep.subr.bf16.mxu0 0
    %3464 = vmatpush1.bf16.msra.mxu0 %v3364
    %3465 = vmatprep.subr.bf16.mxu0 0
    %3466 = vmatpush1.bf16.msra.mxu0 %v3365
    %3467 = vmatprep.subr.bf16.mxu0 0
    %3468 = vmatpush1.bf16.msra.mxu0 %v3366
    %3469 = vmatprep.subr.bf16.mxu0 0
    %3470 = vmatpush1.bf16.msra.mxu0 %v3367
    %3471 = vmatprep.subr.bf16.mxu0 0
    %3472 = vmatpush1.bf16.msra.mxu0 %v3368
    %3473 = vmatprep.subr.bf16.mxu0 0
    %3474 = vmatpush1.bf16.msra.mxu0 %v3369
    %3475 = vmatprep.mubr.bf16.mxu0 %v3136
    %3476 = vmatmul.mubr.bf16.gmra.mrb[0].mxu0 %v3135
    %v3477 = vpop.f32.mrb[0].mxu0
    %v3478 = vadd.f32 %v3437, %v3477
    %v3479 = vpop.f32.mrb[0].mxu0
    %v3480 = vpop.f32.mrb[0].mxu0
    %v3481 = vadd.f32 %v3440, %v3480
    %v3482 = vpop.f32.mrb[0].mxu0
    %3483 = vdwg.mxu0
    %v3484 = vtanh.pop %v3478
    %v3485 = vtanh.pop %v3481
    %v3486 = vpack.c.bf16 %v3485, %v3484
    %s3487 = scalar_lea.vmem [#allocation7], 1536
    %v3488 = vld [vmem:[%s3487] sm:$0xff]
    %v3489 = vld [vmem:[%s3487 + $0x8] sm:$0xff]
    %v3490 = vld [vmem:[%s3487 + $0x10] sm:$0xff]
    %v3491 = vld [vmem:[%s3487 + $0x18] sm:$0xff]
    %v3492 = vld [vmem:[%s3487 + $0x20] sm:$0xff]
    %v3493 = vld [vmem:[%s3487 + $0x28] sm:$0xff]
    %v3494 = vld [vmem:[%s3487 + $0x30] sm:$0xff]
    %v3495 = vld [vmem:[%s3487 + $0x38] sm:$0xff]
    %v3496 = vld [vmem:[%s3487 + $0x40] sm:$0xff]
    %v3497 = vld [vmem:[%s3487 + $0x48] sm:$0xff]
    %v3498 = vld [vmem:[%s3487 + $0x50] sm:$0xff]
    %v3499 = vld [vmem:[%s3487 + $0x58] sm:$0xff]
    %v3500 = vld [vmem:[%s3487 + $0x60] sm:$0xff]
    %v3501 = vld [vmem:[%s3487 + $0x68] sm:$0xff]
    %v3502 = vld [vmem:[%s3487 + $0x70] sm:$0xff]
    %v3503 = vld [vmem:[%s3487 + $0x78] sm:$0xff]
    %v3504 = vld [vmem:[%s3487 + $0x80] sm:$0xff]
    %v3505 = vld [vmem:[%s3487 + $0x88] sm:$0xff]
    %v3506 = vld [vmem:[%s3487 + $0x90] sm:$0xff]
    %v3507 = vld [vmem:[%s3487 + $0x98] sm:$0xff]
    %v3508 = vld [vmem:[%s3487 + $0xa0] sm:$0xff]
    %v3509 = vld [vmem:[%s3487 + $0xa8] sm:$0xff]
    %v3510 = vld [vmem:[%s3487 + $0xb0] sm:$0xff]
    %v3511 = vld [vmem:[%s3487 + $0xb8] sm:$0xff]
    %v3512 = vld [vmem:[%s3487 + $0xc0] sm:$0xff]
    %v3513 = vld [vmem:[%s3487 + $0xc8] sm:$0xff]
    %v3514 = vld [vmem:[%s3487 + $0xd0] sm:$0xff]
    %v3515 = vld [vmem:[%s3487 + $0xd8] sm:$0xff]
    %v3516 = vld [vmem:[%s3487 + $0xe0] sm:$0xff]
    %v3517 = vld [vmem:[%s3487 + $0xe8] sm:$0xff]
    %v3518 = vld [vmem:[%s3487 + $0xf0] sm:$0xff]
    %v3519 = vld [vmem:[%s3487 + $0xf8] sm:$0xff]
    %v3520 = vld [vmem:[%s3487 + $0x100] sm:$0xff]
    %v3521 = vld [vmem:[%s3487 + $0x108] sm:$0xff]
    %v3522 = vld [vmem:[%s3487 + $0x110] sm:$0xff]
    %v3523 = vld [vmem:[%s3487 + $0x118] sm:$0xff]
    %v3524 = vld [vmem:[%s3487 + $0x120] sm:$0xff]
    %v3525 = vld [vmem:[%s3487 + $0x128] sm:$0xff]
    %v3526 = vld [vmem:[%s3487 + $0x130] sm:$0xff]
    %v3527 = vld [vmem:[%s3487 + $0x138] sm:$0xff]
    %v3528 = vld [vmem:[%s3487 + $0x140] sm:$0xff]
    %v3529 = vld [vmem:[%s3487 + $0x148] sm:$0xff]
    %v3530 = vld [vmem:[%s3487 + $0x150] sm:$0xff]
    %v3531 = vld [vmem:[%s3487 + $0x158] sm:$0xff]
    %v3532 = vld [vmem:[%s3487 + $0x160] sm:$0xff]
    %v3533 = vld [vmem:[%s3487 + $0x168] sm:$0xff]
    %v3534 = vld [vmem:[%s3487 + $0x170] sm:$0xff]
    %v3535 = vld [vmem:[%s3487 + $0x178] sm:$0xff]
    %v3536 = vld [vmem:[%s3487 + $0x180] sm:$0xff]
    %v3537 = vld [vmem:[%s3487 + $0x188] sm:$0xff]
    %v3538 = vld [vmem:[%s3487 + $0x190] sm:$0xff]
    %v3539 = vld [vmem:[%s3487 + $0x198] sm:$0xff]
    %v3540 = vld [vmem:[%s3487 + $0x1a0] sm:$0xff]
    %v3541 = vld [vmem:[%s3487 + $0x1a8] sm:$0xff]
    %v3542 = vld [vmem:[%s3487 + $0x1b0] sm:$0xff]
    %v3543 = vld [vmem:[%s3487 + $0x1b8] sm:$0xff]
    %v3544 = vld [vmem:[%s3487 + $0x1c0] sm:$0xff]
    %v3545 = vld [vmem:[%s3487 + $0x1c8] sm:$0xff]
    %v3546 = vld [vmem:[%s3487 + $0x1d0] sm:$0xff]
    %v3547 = vld [vmem:[%s3487 + $0x1d8] sm:$0xff]
    %v3548 = vld [vmem:[%s3487 + $0x1e0] sm:$0xff]
    %v3549 = vld [vmem:[%s3487 + $0x1e8] sm:$0xff]
    %v3550 = vld [vmem:[%s3487 + $0x1f0] sm:$0xff]
    %v3551 = vld [vmem:[%s3487 + $0x1f8] sm:$0xff]
    %s3552 = scalar_lea.vmem [#allocation8], 24
    %v3553 = vld [vmem:[%s3552] sm:$0xff]
    %v3555 = vlaneseq
    %v3556 = vshrl.u32 %v3555, 7
    %v3557 = vsub.s32 0, %v3556
    %v3558 = vrot.slane %v3553, %v3557
    %v3559 = vlaneseq
    %v3560 = vshrl.u32 %v3559, 7
    %v3561 = vsub.s32 1, %v3560
    %v3562 = vrot.slane %v3553, %v3561
    %v3563 = vlaneseq
    %v3564 = vshrl.u32 %v3563, 7
    %v3565 = vsub.s32 2, %v3564
    %v3566 = vrot.slane %v3553, %v3565
    %v3567 = vlaneseq
    %v3568 = vshrl.u32 %v3567, 7
    %v3569 = vsub.s32 3, %v3568
    %v3570 = vrot.slane %v3553, %v3569
    %v3571 = vlaneseq
    %v3572 = vshrl.u32 %v3571, 7
    %v3573 = vsub.s32 4, %v3572
    %v3574 = vrot.slane %v3553, %v3573
    %v3575 = vlaneseq
    %v3576 = vshrl.u32 %v3575, 7
    %v3577 = vsub.s32 5, %v3576
    %v3578 = vrot.slane %v3553, %v3577
    %v3579 = vlaneseq
    %v3580 = vshrl.u32 %v3579, 7
    %v3581 = vsub.s32 6, %v3580
    %v3582 = vrot.slane %v3553, %v3581
    %v3583 = vlaneseq
    %v3584 = vshrl.u32 %v3583, 7
    %v3585 = vsub.s32 7, %v3584
    %v3586 = vrot.slane %v3553, %v3585
    %v3659 = vunpack.c.l.b16 %v3488
    %v3660 = vunpack.c.h.b16 %v3488
    %v3661 = vunpack.c.l.b16 %v3489
    %v3662 = vunpack.c.h.b16 %v3489
    %v3663 = vunpack.c.l.b16 %v3490
    %v3664 = vunpack.c.h.b16 %v3490
    %v3665 = vunpack.c.l.b16 %v3491
    %v3666 = vunpack.c.h.b16 %v3491
    %v3667 = vunpack.c.l.b16 %v3492
    %v3668 = vunpack.c.h.b16 %v3492
    %v3669 = vunpack.c.l.b16 %v3493
    %v3670 = vunpack.c.h.b16 %v3493
    %v3671 = vunpack.c.l.b16 %v3494
    %v3672 = vunpack.c.h.b16 %v3494
    %v3673 = vunpack.c.l.b16 %v3495
    %v3674 = vunpack.c.h.b16 %v3495
    %v3675 = vunpack.c.l.b16 %v3496
    %v3676 = vunpack.c.h.b16 %v3496
    %v3677 = vunpack.c.l.b16 %v3497
    %v3678 = vunpack.c.h.b16 %v3497
    %v3679 = vunpack.c.l.b16 %v3498
    %v3680 = vunpack.c.h.b16 %v3498
    %v3681 = vunpack.c.l.b16 %v3499
    %v3682 = vunpack.c.h.b16 %v3499
    %v3683 = vunpack.c.l.b16 %v3500
    %v3684 = vunpack.c.h.b16 %v3500
    %v3685 = vunpack.c.l.b16 %v3501
    %v3686 = vunpack.c.h.b16 %v3501
    %v3687 = vunpack.c.l.b16 %v3502
    %v3688 = vunpack.c.h.b16 %v3502
    %v3689 = vunpack.c.l.b16 %v3503
    %v3690 = vunpack.c.h.b16 %v3503
    %v3691 = vunpack.c.l.b16 %v3504
    %v3692 = vunpack.c.h.b16 %v3504
    %v3693 = vunpack.c.l.b16 %v3505
    %v3694 = vunpack.c.h.b16 %v3505
    %v3695 = vunpack.c.l.b16 %v3506
    %v3696 = vunpack.c.h.b16 %v3506
    %v3697 = vunpack.c.l.b16 %v3507
    %v3698 = vunpack.c.h.b16 %v3507
    %v3699 = vunpack.c.l.b16 %v3508
    %v3700 = vunpack.c.h.b16 %v3508
    %v3701 = vunpack.c.l.b16 %v3509
    %v3702 = vunpack.c.h.b16 %v3509
    %v3703 = vunpack.c.l.b16 %v3510
    %v3704 = vunpack.c.h.b16 %v3510
    %v3705 = vunpack.c.l.b16 %v3511
    %v3706 = vunpack.c.h.b16 %v3511
    %v3707 = vunpack.c.l.b16 %v3512
    %v3708 = vunpack.c.h.b16 %v3512
    %v3709 = vunpack.c.l.b16 %v3513
    %v3710 = vunpack.c.h.b16 %v3513
    %v3711 = vunpack.c.l.b16 %v3514
    %v3712 = vunpack.c.h.b16 %v3514
    %v3713 = vunpack.c.l.b16 %v3515
    %v3714 = vunpack.c.h.b16 %v3515
    %v3715 = vunpack.c.l.b16 %v3516
    %v3716 = vunpack.c.h.b16 %v3516
    %v3717 = vunpack.c.l.b16 %v3517
    %v3718 = vunpack.c.h.b16 %v3517
    %v3719 = vunpack.c.l.b16 %v3518
    %v3720 = vunpack.c.h.b16 %v3518
    %v3721 = vunpack.c.l.b16 %v3519
    %v3722 = vunpack.c.h.b16 %v3519
    %v3723 = vunpack.c.l.b16 %v3520
    %v3724 = vunpack.c.h.b16 %v3520
    %v3725 = vunpack.c.l.b16 %v3521
    %v3726 = vunpack.c.h.b16 %v3521
    %v3727 = vunpack.c.l.b16 %v3522
    %v3728 = vunpack.c.h.b16 %v3522
    %v3729 = vunpack.c.l.b16 %v3523
    %v3730 = vunpack.c.h.b16 %v3523
    %v3731 = vunpack.c.l.b16 %v3524
    %v3732 = vunpack.c.h.b16 %v3524
    %v3733 = vunpack.c.l.b16 %v3525
    %v3734 = vunpack.c.h.b16 %v3525
    %v3735 = vunpack.c.l.b16 %v3526
    %v3736 = vunpack.c.h.b16 %v3526
    %v3737 = vunpack.c.l.b16 %v3527
    %v3738 = vunpack.c.h.b16 %v3527
    %v3739 = vunpack.c.l.b16 %v3528
    %v3740 = vunpack.c.h.b16 %v3528
    %v3741 = vunpack.c.l.b16 %v3529
    %v3742 = vunpack.c.h.b16 %v3529
    %v3743 = vunpack.c.l.b16 %v3530
    %v3744 = vunpack.c.h.b16 %v3530
    %v3745 = vunpack.c.l.b16 %v3531
    %v3746 = vunpack.c.h.b16 %v3531
    %v3747 = vunpack.c.l.b16 %v3532
    %v3748 = vunpack.c.h.b16 %v3532
    %v3749 = vunpack.c.l.b16 %v3533
    %v3750 = vunpack.c.h.b16 %v3533
    %v3751 = vunpack.c.l.b16 %v3534
    %v3752 = vunpack.c.h.b16 %v3534
    %v3753 = vunpack.c.l.b16 %v3535
    %v3754 = vunpack.c.h.b16 %v3535
    %v3755 = vunpack.c.l.b16 %v3536
    %v3756 = vunpack.c.h.b16 %v3536
    %v3757 = vunpack.c.l.b16 %v3537
    %v3758 = vunpack.c.h.b16 %v3537
    %v3759 = vunpack.c.l.b16 %v3538
    %v3760 = vunpack.c.h.b16 %v3538
    %v3761 = vunpack.c.l.b16 %v3539
    %v3762 = vunpack.c.h.b16 %v3539
    %v3763 = vunpack.c.l.b16 %v3540
    %v3764 = vunpack.c.h.b16 %v3540
    %v3765 = vunpack.c.l.b16 %v3541
    %v3766 = vunpack.c.h.b16 %v3541
    %v3767 = vunpack.c.l.b16 %v3542
    %v3768 = vunpack.c.h.b16 %v3542
    %v3769 = vunpack.c.l.b16 %v3543
    %v3770 = vunpack.c.h.b16 %v3543
    %v3771 = vunpack.c.l.b16 %v3544
    %v3772 = vunpack.c.h.b16 %v3544
    %v3773 = vunpack.c.l.b16 %v3545
    %v3774 = vunpack.c.h.b16 %v3545
    %v3775 = vunpack.c.l.b16 %v3546
    %v3776 = vunpack.c.h.b16 %v3546
    %v3777 = vunpack.c.l.b16 %v3547
    %v3778 = vunpack.c.h.b16 %v3547
    %v3779 = vunpack.c.l.b16 %v3548
    %v3780 = vunpack.c.h.b16 %v3548
    %v3781 = vunpack.c.l.b16 %v3549
    %v3782 = vunpack.c.h.b16 %v3549
    %v3783 = vunpack.c.l.b16 %v3550
    %v3784 = vunpack.c.h.b16 %v3550
    %v3785 = vunpack.c.l.b16 %v3551
    %v3786 = vunpack.c.h.b16 %v3551
    %v3787 = vpack.c.b16 %v3667, %v3659
    %v3788 = vpack.c.b16 %v3668, %v3660
    %v3789 = vpack.c.b16 %v3669, %v3661
    %v3790 = vpack.c.b16 %v3670, %v3662
    %v3791 = vpack.c.b16 %v3671, %v3663
    %v3792 = vpack.c.b16 %v3672, %v3664
    %v3793 = vpack.c.b16 %v3673, %v3665
    %v3794 = vpack.c.b16 %v3674, %v3666
    %v3795 = vpack.c.b16 %v3683, %v3675
    %v3796 = vpack.c.b16 %v3684, %v3676
    %v3797 = vpack.c.b16 %v3685, %v3677
    %v3798 = vpack.c.b16 %v3686, %v3678
    %v3799 = vpack.c.b16 %v3687, %v3679
    %v3800 = vpack.c.b16 %v3688, %v3680
    %v3801 = vpack.c.b16 %v3689, %v3681
    %v3802 = vpack.c.b16 %v3690, %v3682
    %v3803 = vpack.c.b16 %v3699, %v3691
    %v3804 = vpack.c.b16 %v3700, %v3692
    %v3805 = vpack.c.b16 %v3701, %v3693
    %v3806 = vpack.c.b16 %v3702, %v3694
    %v3807 = vpack.c.b16 %v3703, %v3695
    %v3808 = vpack.c.b16 %v3704, %v3696
    %v3809 = vpack.c.b16 %v3705, %v3697
    %v3810 = vpack.c.b16 %v3706, %v3698
    %v3811 = vpack.c.b16 %v3715, %v3707
    %v3812 = vpack.c.b16 %v3716, %v3708
    %v3813 = vpack.c.b16 %v3717, %v3709
    %v3814 = vpack.c.b16 %v3718, %v3710
    %v3815 = vpack.c.b16 %v3719, %v3711
    %v3816 = vpack.c.b16 %v3720, %v3712
    %v3817 = vpack.c.b16 %v3721, %v3713
    %v3818 = vpack.c.b16 %v3722, %v3714
    %v3819 = vpack.c.b16 %v3731, %v3723
    %v3820 = vpack.c.b16 %v3732, %v3724
    %v3821 = vpack.c.b16 %v3733, %v3725
    %v3822 = vpack.c.b16 %v3734, %v3726
    %v3823 = vpack.c.b16 %v3735, %v3727
    %v3824 = vpack.c.b16 %v3736, %v3728
    %v3825 = vpack.c.b16 %v3737, %v3729
    %v3826 = vpack.c.b16 %v3738, %v3730
    %v3827 = vpack.c.b16 %v3747, %v3739
    %v3828 = vpack.c.b16 %v3748, %v3740
    %v3829 = vpack.c.b16 %v3749, %v3741
    %v3830 = vpack.c.b16 %v3750, %v3742
    %v3831 = vpack.c.b16 %v3751, %v3743
    %v3832 = vpack.c.b16 %v3752, %v3744
    %v3833 = vpack.c.b16 %v3753, %v3745
    %v3834 = vpack.c.b16 %v3754, %v3746
    %v3835 = vpack.c.b16 %v3763, %v3755
    %v3836 = vpack.c.b16 %v3764, %v3756
    %v3837 = vpack.c.b16 %v3765, %v3757
    %v3838 = vpack.c.b16 %v3766, %v3758
    %v3839 = vpack.c.b16 %v3767, %v3759
    %v3840 = vpack.c.b16 %v3768, %v3760
    %v3841 = vpack.c.b16 %v3769, %v3761
    %v3842 = vpack.c.b16 %v3770, %v3762
    %v3843 = vpack.c.b16 %v3779, %v3771
    %v3844 = vpack.c.b16 %v3780, %v3772
    %v3845 = vpack.c.b16 %v3781, %v3773
    %v3846 = vpack.c.b16 %v3782, %v3774
    %v3847 = vpack.c.b16 %v3783, %v3775
    %v3848 = vpack.c.b16 %v3784, %v3776
    %v3849 = vpack.c.b16 %v3785, %v3777
    %v3850 = vpack.c.b16 %v3786, %v3778
    %3915 = vmatprep.subr.bf16.mxu0 %v3788
    %3916 = vmatpush1.bf16.msra.mxu0 %v3787
    %3917 = vmatprep.subr.bf16.mxu0 %v3796
    %3918 = vmatpush1.bf16.msra.mxu0 %v3795
    %3919 = vmatprep.subr.bf16.mxu0 %v3804
    %3920 = vmatpush1.bf16.msra.mxu0 %v3803
    %3921 = vmatprep.subr.bf16.mxu0 %v3812
    %3922 = vmatpush1.bf16.msra.mxu0 %v3811
    %3923 = vmatprep.subr.bf16.mxu0 %v3820
    %3924 = vmatpush1.bf16.msra.mxu0 %v3819
    %3925 = vmatprep.subr.bf16.mxu0 %v3828
    %3926 = vmatpush1.bf16.msra.mxu0 %v3827
    %3927 = vmatprep.subr.bf16.mxu0 %v3836
    %3928 = vmatpush1.bf16.msra.mxu0 %v3835
    %3929 = vmatprep.subr.bf16.mxu0 %v3844
    %3930 = vmatpush1.bf16.msra.mxu0 %v3843
    %3931 = vmatprep.subr.bf16.mxu0 0
    %3932 = vmatpush1.bf16.msra.mxu0 0
    %3933 = vmatprep.subr.bf16.mxu0 0
    %3934 = vmatpush1.bf16.msra.mxu0 0
    %3935 = vmatprep.subr.bf16.mxu0 0
    %3936 = vmatpush1.bf16.msra.mxu0 0
    %3937 = vmatprep.subr.bf16.mxu0 0
    %3938 = vmatpush1.bf16.msra.mxu0 0
    %3939 = vmatprep.subr.bf16.mxu0 0
    %3940 = vmatpush1.bf16.msra.mxu0 0
    %3941 = vmatprep.subr.bf16.mxu0 0
    %3942 = vmatpush1.bf16.msra.mxu0 0
    %3943 = vmatprep.subr.bf16.mxu0 0
    %3944 = vmatpush1.bf16.msra.mxu0 0
    %3945 = vmatprep.subr.bf16.mxu0 0
    %3946 = vmatpush1.bf16.msra.mxu0 0
    %3947 = vmatprep.mubr.bf16.mxu0 0
    %3948 = vmatmul.mubr.bf16.gmra.mrb[0].mxu0 %v3486
    %v3949 = vpop.f32.mrb[0].mxu0
    %v3950 = vadd.f32 %v3558, %v3949
    %v3951 = vpop.f32.mrb[0].mxu0
    %v3952 = vadd.f32 %v3562, %v3951
    %v3953 = vpop.f32.mrb[0].mxu0
    %v3954 = vadd.f32 %v3558, %v3953
    %v3955 = vpop.f32.mrb[0].mxu0
    %v3956 = vadd.f32 %v3562, %v3955
    %3957 = vdwg.mxu0
    %3958 = vmatprep.subr.bf16.mxu0 %v3790
    %3959 = vmatpush1.bf16.msra.mxu0 %v3789
    %3960 = vmatprep.subr.bf16.mxu0 %v3798
    %3961 = vmatpush1.bf16.msra.mxu0 %v3797
    %3962 = vmatprep.subr.bf16.mxu0 %v3806
    %3963 = vmatpush1.bf16.msra.mxu0 %v3805
    %3964 = vmatprep.subr.bf16.mxu0 %v3814
    %3965 = vmatpush1.bf16.msra.mxu0 %v3813
    %3966 = vmatprep.subr.bf16.mxu0 %v3822
    %3967 = vmatpush1.bf16.msra.mxu0 %v3821
    %3968 = vmatprep.subr.bf16.mxu0 %v3830
    %3969 = vmatpush1.bf16.msra.mxu0 %v3829
    %3970 = vmatprep.subr.bf16.mxu0 %v3838
    %3971 = vmatpush1.bf16.msra.mxu0 %v3837
    %3972 = vmatprep.subr.bf16.mxu0 %v3846
    %3973 = vmatpush1.bf16.msra.mxu0 %v3845
    %3974 = vmatprep.subr.bf16.mxu0 0
    %3975 = vmatpush1.bf16.msra.mxu0 0
    %3976 = vmatprep.subr.bf16.mxu0 0
    %3977 = vmatpush1.bf16.msra.mxu0 0
    %3978 = vmatprep.subr.bf16.mxu0 0
    %3979 = vmatpush1.bf16.msra.mxu0 0
    %3980 = vmatprep.subr.bf16.mxu0 0
    %3981 = vmatpush1.bf16.msra.mxu0 0
    %3982 = vmatprep.subr.bf16.mxu0 0
    %3983 = vmatpush1.bf16.msra.mxu0 0
    %3984 = vmatprep.subr.bf16.mxu0 0
    %3985 = vmatpush1.bf16.msra.mxu0 0
    %3986 = vmatprep.subr.bf16.mxu0 0
    %3987 = vmatpush1.bf16.msra.mxu0 0
    %3988 = vmatprep.subr.bf16.mxu0 0
    %3989 = vmatpush1.bf16.msra.mxu0 0
    %3990 = vmatprep.mubr.bf16.mxu0 0
    %3991 = vmatmul.mubr.bf16.gmra.mrb[0].mxu0 %v3486
    %v3992 = vpop.f32.mrb[0].mxu0
    %v3993 = vadd.f32 %v3566, %v3992
    %v3994 = vpop.f32.mrb[0].mxu0
    %v3995 = vadd.f32 %v3570, %v3994
    %v3996 = vpop.f32.mrb[0].mxu0
    %v3997 = vadd.f32 %v3566, %v3996
    %v3998 = vpop.f32.mrb[0].mxu0
    %v3999 = vadd.f32 %v3570, %v3998
    %4000 = vdwg.mxu0
    %4001 = vmatprep.subr.bf16.mxu0 %v3792
    %4002 = vmatpush1.bf16.msra.mxu0 %v3791
    %4003 = vmatprep.subr.bf16.mxu0 %v3800
    %4004 = vmatpush1.bf16.msra.mxu0 %v3799
    %4005 = vmatprep.subr.bf16.mxu0 %v3808
    %4006 = vmatpush1.bf16.msra.mxu0 %v3807
    %4007 = vmatprep.subr.bf16.mxu0 %v3816
    %4008 = vmatpush1.bf16.msra.mxu0 %v3815
    %4009 = vmatprep.subr.bf16.mxu0 %v3824
    %4010 = vmatpush1.bf16.msra.mxu0 %v3823
    %4011 = vmatprep.subr.bf16.mxu0 %v3832
    %4012 = vmatpush1.bf16.msra.mxu0 %v3831
    %4013 = vmatprep.subr.bf16.mxu0 %v3840
    %4014 = vmatpush1.bf16.msra.mxu0 %v3839
    %4015 = vmatprep.subr.bf16.mxu0 %v3848
    %4016 = vmatpush1.bf16.msra.mxu0 %v3847
    %4017 = vmatprep.subr.bf16.mxu0 0
    %4018 = vmatpush1.bf16.msra.mxu0 0
    %4019 = vmatprep.subr.bf16.mxu0 0
    %4020 = vmatpush1.bf16.msra.mxu0 0
    %4021 = vmatprep.subr.bf16.mxu0 0
    %4022 = vmatpush1.bf16.msra.mxu0 0
    %4023 = vmatprep.subr.bf16.mxu0 0
    %4024 = vmatpush1.bf16.msra.mxu0 0
    %4025 = vmatprep.subr.bf16.mxu0 0
    %4026 = vmatpush1.bf16.msra.mxu0 0
    %4027 = vmatprep.subr.bf16.mxu0 0
    %4028 = vmatpush1.bf16.msra.mxu0 0
    %4029 = vmatprep.subr.bf16.mxu0 0
    %4030 = vmatpush1.bf16.msra.mxu0 0
    %4031 = vmatprep.subr.bf16.mxu0 0
    %4032 = vmatpush1.bf16.msra.mxu0 0
    %4033 = vmatprep.mubr.bf16.mxu0 0
    %4034 = vmatmul.mubr.bf16.gmra.mrb[0].mxu0 %v3486
    %v4035 = vpop.f32.mrb[0].mxu0
    %v4036 = vadd.f32 %v3574, %v4035
    %v4037 = vpop.f32.mrb[0].mxu0
    %v4038 = vadd.f32 %v3578, %v4037
    %v4039 = vpop.f32.mrb[0].mxu0
    %v4040 = vadd.f32 %v3574, %v4039
    %v4041 = vpop.f32.mrb[0].mxu0
    %v4042 = vadd.f32 %v3578, %v4041
    %4043 = vdwg.mxu0
    %4044 = vmatprep.subr.bf16.mxu0 %v3794
    %4045 = vmatpush1.bf16.msra.mxu0 %v3793
    %4046 = vmatprep.subr.bf16.mxu0 %v3802
    %4047 = vmatpush1.bf16.msra.mxu0 %v3801
    %4048 = vmatprep.subr.bf16.mxu0 %v3810
    %4049 = vmatpush1.bf16.msra.mxu0 %v3809
    %4050 = vmatprep.subr.bf16.mxu0 %v3818
    %4051 = vmatpush1.bf16.msra.mxu0 %v3817
    %4052 = vmatprep.subr.bf16.mxu0 %v3826
    %4053 = vmatpush1.bf16.msra.mxu0 %v3825
    %4054 = vmatprep.subr.bf16.mxu0 %v3834
    %4055 = vmatpush1.bf16.msra.mxu0 %v3833
    %4056 = vmatprep.subr.bf16.mxu0 %v3842
    %4057 = vmatpush1.bf16.msra.mxu0 %v3841
    %4058 = vmatprep.subr.bf16.mxu0 %v3850
    %4059 = vmatpush1.bf16.msra.mxu0 %v3849
    %4060 = vmatprep.subr.bf16.mxu0 0
    %4061 = vmatpush1.bf16.msra.mxu0 0
    %4062 = vmatprep.subr.bf16.mxu0 0
    %4063 = vmatpush1.bf16.msra.mxu0 0
    %4064 = vmatprep.subr.bf16.mxu0 0
    %4065 = vmatpush1.bf16.msra.mxu0 0
    %4066 = vmatprep.subr.bf16.mxu0 0
    %4067 = vmatpush1.bf16.msra.mxu0 0
    %4068 = vmatprep.subr.bf16.mxu0 0
    %4069 = vmatpush1.bf16.msra.mxu0 0
    %4070 = vmatprep.subr.bf16.mxu0 0
    %4071 = vmatpush1.bf16.msra.mxu0 0
    %4072 = vmatprep.subr.bf16.mxu0 0
    %4073 = vmatpush1.bf16.msra.mxu0 0
    %4074 = vmatprep.subr.bf16.mxu0 0
    %4075 = vmatpush1.bf16.msra.mxu0 0
    %4076 = vmatprep.mubr.bf16.mxu0 0
    %4077 = vmatmul.mubr.bf16.gmra.mrb[0].mxu0 %v3486
    %v4078 = vpop.f32.mrb[0].mxu0
    %v4079 = vadd.f32 %v3582, %v4078
    %v4080 = vpop.f32.mrb[0].mxu0
    %v4081 = vadd.f32 %v3586, %v4080
    %v4082 = vpop.f32.mrb[0].mxu0
    %v4083 = vadd.f32 %v3582, %v4082
    %v4084 = vpop.f32.mrb[0].mxu0
    %v4085 = vadd.f32 %v3586, %v4084
    %4086 = vdwg.mxu0
    %v4087 = vtanh.pop %v3950
    %v4088 = vtanh.pop %v3952
    %v4089 = vtanh.pop %v3993
    %v4090 = vtanh.pop %v3995
    %v4091 = vtanh.pop %v3954
    %v4092 = vtanh.pop %v3956
    %v4093 = vtanh.pop %v3997
    %v4094 = vtanh.pop %v3999
    %v4095 = vmul.f32 %v4087, 1.442695
    %v4096 = vpow.pop %v4095
    %v4097 = vmul.f32 %v4088, 1.442695
    %v4098 = vpow.pop %v4097
    %v4099 = vmul.f32 %v4089, 1.442695
    %v4100 = vpow.pop %v4099
    %v4101 = vmul.f32 %v4090, 1.442695
    %v4102 = vpow.pop %v4101
    %v4103 = vmul.f32 %v4091, 1.442695
    %v4104 = vpow.pop %v4103
    %v4105 = vmul.f32 %v4092, 1.442695
    %v4106 = vpow.pop %v4105
    %v4107 = vmul.f32 %v4093, 1.442695
    %v4108 = vpow.pop %v4107
    %v4109 = vmul.f32 %v4094, 1.442695
    %v4110 = vpow.pop %v4109
    %v4111 = vmul.f32 %v2107, %v4096
    %v4112 = vmul.f32 %v2108, %v4098
    %v4113 = vmul.f32 %v2109, %v4100
    %v4114 = vmul.f32 %v2110, %v4102
    %v4115 = vmul.f32 %v2111, %v4104
    %v4116 = vmul.f32 %v2112, %v4106
    %v4117 = vmul.f32 %v2113, %v4108
    %v4118 = vmul.f32 %v2114, %v4110
    %v4119 = vadd.f32 %v4111, %v4036
    %v4120 = vadd.f32 %v4112, %v4038
    %v4121 = vadd.f32 %v4113, %v4079
    %v4122 = vadd.f32 %v4114, %v4081
    %v4123 = vadd.f32 %v4115, %v4040
    %v4124 = vadd.f32 %v4116, %v4042
    %v4125 = vadd.f32 %v4117, %v4083
    %v4126 = vadd.f32 %v4118, %v4085
    %v4127 = vadd.f32 %v4087, %v4088
    %v4128 = vadd.f32 %v4127, %v4089
    %v4129 = vadd.f32 %v4128, %v4090
    %4130 = vadd.xlane.f32.xlu0 %v4129
    %v4131 = vpop.xlane.xlu0 %4130
    %v4132 = vadd.f32 %v4091, %v4092
    %v4133 = vadd.f32 %v4132, %v4093
    %v4134 = vadd.f32 %v4133, %v4094
    %4135 = vadd.xlane.f32.xlu0 %v4134
    %v4136 = vpop.xlane.xlu0 %4135
    %v4137 = vadd.f32 %v3131, %v4131
    %v4138 = vadd.f32 %v3132, %v4136
    %4139 = vst [vmem:[#allocation10] sm:$0xff] %v4119
    %4140 = vst [vmem:[#allocation10 + $0x8] sm:$0xff] %v4120
    %4141 = vst [vmem:[#allocation10 + $0x10] sm:$0xff] %v4121
    %4142 = vst [vmem:[#allocation10 + $0x18] sm:$0xff] %v4122
    %4143 = vst [vmem:[#allocation10 + $0x40] sm:$0xff] %v4123
    %4144 = vst [vmem:[#allocation10 + $0x48] sm:$0xff] %v4124
    %4145 = vst [vmem:[#allocation10 + $0x50] sm:$0xff] %v4125
    %4146 = vst [vmem:[#allocation10 + $0x58] sm:$0xff] %v4126
    %4147 = vst [vmem:[#allocation10 + $0x20] sm:$0xff] %v3113
    %4148 = vst [vmem:[#allocation10 + $0x28] sm:$0xff] %v3114
    %4149 = vst [vmem:[#allocation10 + $0x30] sm:$0xff] %v3115
    %4150 = vst [vmem:[#allocation10 + $0x38] sm:$0xff] %v3116
    %4151 = vst [vmem:[#allocation10 + $0x60] sm:$0xff] %v3117
    %4152 = vst [vmem:[#allocation10 + $0x68] sm:$0xff] %v3118
    %4153 = vst [vmem:[#allocation10 + $0x70] sm:$0xff] %v3119
    %4154 = vst [vmem:[#allocation10 + $0x78] sm:$0xff] %v3120
    %vm4155 = vcmask 7168
    %4156 = vst.msk [vmem:[%s6] sm:$0xff] %vm4155, %v4137
    %4157 = vst.msk [vmem:[%s6 + $0x8] sm:$0xff] %vm4155, %v4138
    // Predicated region
    $region38: #{tpu_custom_call.1} parent=1 // pred_check
      _
    $region39: #{tpu_custom_call.1} parent=1 // pred_check_branch
      %4159 = sbr.rel (0) target = $region41
    $region40: #{tpu_custom_call.1} parent=1 // pred_region
      %s4161 = ssub.s32 2048, 2048
      %4162 = vsyncadd [#allocation4], %s4161
      %s4163 = sshll.u32 [#allocation10], 4
      %s4164 = int_to_ptr.vmem [resolvable:$true] %s4163
      %4169 = dma.vmem_to_hbm [thread:$0]  %s4164, 2048, %s5, [#allocation4], 1024, 1024, 64
    $region41: #{tpu_custom_call.1} parent=1 // pred_fallthru
      _
    // Predicated region
    $region42: #{tpu_custom_call.1} parent=1 // pred_check
      _
    $region43: #{tpu_custom_call.1} parent=1 // pred_check_branch
      %4171 = sbr.rel (0) target = $region45
    $region44: #{tpu_custom_call.1} parent=1 // pred_region
      _
    $region45: #{tpu_custom_call.1} parent=1 // pred_fallthru
      _
    // Predicated region
    $region46: #{tpu_custom_call.1} parent=1 // pred_check
      _
    $region47: #{tpu_custom_call.1} parent=1 // pred_check_branch
      %4173 = sbr.rel (0) target = $region49
    $region48: #{tpu_custom_call.1} parent=1 // pred_region
      %4174 = dma.done [#allocation4], 2048
    $region49: #{tpu_custom_call.1} parent=1 // pred_fallthru
      _
    // Predicated region
    $region50: #{tpu_custom_call.1} parent=1 // pred_check
      _
    $region51: #{tpu_custom_call.1} parent=1 // pred_check_branch
      %4176 = sbr.rel (0) target = $region53
    $region52: #{tpu_custom_call.1} parent=1 // pred_region
      _
    $region53: #{tpu_custom_call.1} parent=1 // pred_fallthru
      _
    %4177 = vsyncpa [#allocation3], 1
    %4178 = vsyncpa [#allocation6], 1
    %4179 = vsyncpa [#allocation9], 1
    %4180 = vsyncpa [#allocation4], 1

</llo_original>
